<compile_context>
chip_gen: v7x
topology: tpu7x:2x2x1
jax: 0.10.0
libtpu: 0.0.40
codegen_flags: <defaults>
</compile_context>

<pallas_src>
import jax
import jax.numpy as jnp
from jax.experimental import pallas as pl
from jax.experimental.pallas import tpu as pltpu

HIDDEN = 128        # module hidden_size (kept at the TPU lane width)
NUM_LAYER = 3
BATCH = 512         # demo batch; production should fold >=2048 rows per call


def pick_batch_tile(batch):
    """TM=128 on v7x (each of the 2 TCs needs >=2 grid steps), else TM=256."""
    kind = ""
    try:
        kind = jax.devices()[0].device_kind.lower()
    except Exception:
        pass
    tm = 128 if "v7" in kind else 256
    tm = min(tm, batch)
    while batch % tm != 0:      # keep the grid exact for arbitrary pow2 batches
        tm //= 2
    return max(tm, 8)


def deepfm_kernel(x_ref, wdnn_ref, bdnn_ref, wout_ref, bout_ref, o_ref):
    x_bf16 = x_ref[...]                               # (TM, H) bf16 tile
    x = x_bf16.astype(jnp.float32)                    # elementwise path in f32

    # FM interactions: matmul(x.unsqueeze(2), x.unsqueeze(1)).sum(2)
    #   == x[b, i] * sum_j x[b, j]; the PyTorch module applies F.relu to the
    #   summed interactions, matched by the jnp.maximum below.
    row_sum = jnp.sum(x, axis=1, keepdims=True)       # (TM, 1) f32
    interactions = jnp.maximum(x * row_sum, 0.0)      # (TM, H) f32

    # DNN tower: bf16 MXU matmuls with f32 accumulation; bias/ReLU in f32.
    h = x
    for i in range(NUM_LAYER):
        h = jnp.maximum(
            jnp.dot(h.astype(jnp.bfloat16), wdnn_ref[i],
                    preferred_element_type=jnp.float32) + bdnn_ref[i],
            0.0)

    # output_layer((hidden + interactions) / 2): the 0.5 is pre-folded into
    # w_out offline (exact: power-of-two scale commutes with the bf16 cast).
    z = h + interactions
    out = (jnp.dot(z.astype(jnp.bfloat16), wout_ref[...],
                   preferred_element_type=jnp.float32) + bout_ref[...])
    o_ref[...] = out.astype(o_ref.dtype)


def deepfm_forward(x_bf16, w_dnn_bf16, b_dnn, w_out_bf16, b_out,
                   *, tm=None, out_dtype=jnp.bfloat16,
                   single_buffer_weights=True):
    B, H = x_bf16.shape
    if tm is None:
        tm = pick_batch_tile(B)
    assert B % tm == 0, "batch must be a multiple of the batch tile"
    L = w_dnn_bf16.shape[0]

    def build(single_buffer):
        res = dict(pipeline_mode=pl.Buffered(1)) if single_buffer else {}
        return pl.pallas_call(
            deepfm_kernel,
            out_shape=jax.ShapeDtypeStruct((B, H), out_dtype),
            grid_spec=pltpu.PrefetchScalarGridSpec(
                num_scalar_prefetch=0,
                grid=(B // tm,),
                in_specs=[
                    pl.BlockSpec((tm, H), lambda i: (i, 0)),        # x: streamed
                    pl.BlockSpec((L, H, H), lambda i: (0, 0, 0), **res),
                    pl.BlockSpec((L, 1, H), lambda i: (0, 0, 0), **res),
                    pl.BlockSpec((H, H), lambda i: (0, 0), **res),
                    pl.BlockSpec((1, H), lambda i: (0, 0), **res),
                ],
                out_specs=pl.BlockSpec((tm, H), lambda i: (i, 0)),
            ),
            compiler_params=pltpu.CompilerParams(
                dimension_semantics=("parallel",)),    # megacore sharding
        )

    args = (x_bf16, w_dnn_bf16, b_dnn, w_out_bf16, b_out)
    if single_buffer_weights:
        try:
            return build(True)(*args)
        except Exception:
            # Some jax versions reject Buffered(1) on a pallas_call BlockSpec;
            # fall back to default double-buffering (correctness unaffected).
            pass
    return build(False)(*args)


def pack_params(w_dnn, b_dnn, w_out, b_out):
    """Offline weight transform: fold the 0.5 into w_out, cast weights to bf16."""
    return (w_dnn.astype(jnp.bfloat16), b_dnn,
            (0.5 * w_out).astype(jnp.bfloat16), b_out)


def deepfm_reference_f32(x, w_dnn, b_dnn, w_out, b_out):
    """Pure-f32 reference matching the PyTorch module exactly."""
    inter = jax.nn.relu(x * jnp.sum(x, axis=1, keepdims=True))
    h = x
    for i in range(w_dnn.shape[0]):
        h = jax.nn.relu(h @ w_dnn[i] + b_dnn[i])
    return ((h + inter) * 0.5) @ w_out + b_out


def deepfm_reference_bf16(x_bf16, w_dnn_bf16, b_dnn, w_out_bf16, b_out,
                          out_dtype=jnp.bfloat16):
    """Reference using the kernel's bf16-in / bf16-weight / f32-acc recipe."""
    x = x_bf16.astype(jnp.float32)
    inter = jax.nn.relu(x * jnp.sum(x, axis=1, keepdims=True))
    h = x
    for i in range(w_dnn_bf16.shape[0]):
        h = jax.nn.relu(
            jnp.dot(h.astype(jnp.bfloat16), w_dnn_bf16[i],
                    preferred_element_type=jnp.float32) + b_dnn[i])
    out = jnp.dot((h + inter).astype(jnp.bfloat16), w_out_bf16,
                  preferred_element_type=jnp.float32) + b_out
    return out.astype(out_dtype)


def init_params(key, hidden, num_layer):
    # nn.Linear-style init (uniform +/- 1/sqrt(fan_in)), weights laid out
    # (H_in, H_out) so the kernel computes h @ W + b.
    bound = 1.0 / jnp.sqrt(hidden)
    keys = jax.random.split(key, 2 * num_layer + 2)
    w_dnn = jnp.stack([
        jax.random.uniform(keys[i], (hidden, hidden), jnp.float32, -bound, bound)
        for i in range(num_layer)])                       # (L, H_in, H_out)
    b_dnn = jnp.stack([
        jax.random.uniform(keys[num_layer + i], (1, hidden), jnp.float32,
                           -bound, bound)
        for i in range(num_layer)])                       # (L, 1, H)
    w_out = jax.random.uniform(keys[-2], (hidden, hidden), jnp.float32, -bound, bound)
    b_out = jax.random.uniform(keys[-1], (1, hidden), jnp.float32, -bound, bound)
    return w_dnn, b_dnn, w_out, b_out


if __name__ == "__main__":
    key = jax.random.PRNGKey(0)
    k_x, k_p = jax.random.split(key)
    x_f32 = jax.random.normal(k_x, (BATCH, HIDDEN), jnp.float32)
    x_bf16 = x_f32.astype(jnp.bfloat16)        # serving-path input precision
    w_dnn, b_dnn, w_out, b_out = init_params(k_p, HIDDEN, NUM_LAYER)
    w_dnn_bf16, b_dnn_p, w_out_bf16, b_out_p = pack_params(w_dnn, b_dnn, w_out, b_out)

    out = deepfm_forward(x_bf16, w_dnn_bf16, b_dnn_p, w_out_bf16, b_out_p)
    out = jax.block_until_ready(out)
    assert out.shape == (BATCH, HIDDEN)
    assert out.dtype == jnp.bfloat16
    out_f32 = out.astype(jnp.float32)

    # Tight check vs. a reference using the identical bf16/f32 recipe.
    ref_bf16 = deepfm_reference_bf16(
        x_bf16, w_dnn_bf16, b_dnn_p, w_out_bf16, b_out_p).astype(jnp.float32)
    assert jnp.allclose(out_f32, ref_bf16, atol=5e-2, rtol=2e-2), \
        "mismatch vs bf16 reference"

    # Loose sanity check vs. the exact f32 PyTorch-module semantics: bounds the
    # total bf16 quantization error (input, weights, activations, output) and
    # validates the 0.5 folding.
    ref_f32 = deepfm_reference_f32(x_f32, w_dnn, b_dnn, w_out, b_out)
    rel = jnp.max(jnp.abs(out_f32 - ref_f32)) / jnp.max(jnp.abs(ref_f32))
    assert rel < 0.05, f"bf16 error too large vs f32 module reference: {rel}"

    print("KERNEL_OK")
</pallas_src>

<mosaic_0001>
module attributes {stable_mosaic.version = 11 : i64} {
  func.func @deepfm_kernel(%arg0: i32, %arg1: memref<256x128xbf16, #tpu.memory_space<vmem>>, %arg2: memref<3x128x128xbf16, #tpu.memory_space<vmem>>, %arg3: memref<3x1x128xf32, #tpu.memory_space<vmem>>, %arg4: memref<128x128xbf16, #tpu.memory_space<vmem>>, %arg5: memref<1x128xf32, #tpu.memory_space<vmem>>, %arg6: memref<256x128xbf16, #tpu.memory_space<vmem>>) attributes {dimension_semantics = [#tpu.dimension_semantics<parallel>], iteration_bounds = array<i64: 2>, scalar_prefetch = 0 : i64, scratch_operands = 0 : i64, tpu.core_type = #tpu.core_type<tc>, window_params = [{transform_indices = @transform_0, window_bounds = array<i64: 256, 128>}, {pipeline_mode = #tpu.pipeline_mode<synchronous>, transform_indices = @transform_1, window_bounds = array<i64: 3, 128, 128>}, {pipeline_mode = #tpu.pipeline_mode<synchronous>, transform_indices = @transform_2, window_bounds = array<i64: 3, 1, 128>}, {pipeline_mode = #tpu.pipeline_mode<synchronous>, transform_indices = @transform_3, window_bounds = array<i64: 128, 128>}, {pipeline_mode = #tpu.pipeline_mode<synchronous>, transform_indices = @transform_4, window_bounds = array<i64: 1, 128>}, {transform_indices = @transform_5, window_bounds = array<i64: 256, 128>}]} {
    %c0 = arith.constant 0 : index
    %c0_0 = arith.constant 0 : index
    %0 = vector.load %arg1[%c0, %c0_0] : memref<256x128xbf16, #tpu.memory_space<vmem>>, vector<256x128xbf16>
    %1 = arith.extf %0 : vector<256x128xbf16> to vector<256x128xf32>
    %cst = arith.constant dense<0.000000e+00> : vector<256xf32>
    %2 = vector.multi_reduction <add>, %1, %cst [1] : vector<256x128xf32> to vector<256xf32>
    %3 = vector.shape_cast %2 : vector<256xf32> to vector<256x1xf32>
    %4 = vector.broadcast %3 : vector<256x1xf32> to vector<256x128xf32>
    %5 = arith.mulf %1, %4 : vector<256x128xf32>
    %cst_1 = arith.constant 0.000000e+00 : f32
    %6 = vector.broadcast %cst_1 : f32 to vector<256x128xf32>
    %7 = arith.maximumf %5, %6 : vector<256x128xf32>
    %8 = arith.truncf %1 : vector<256x128xf32> to vector<256x128xbf16>
    %c0_2 = arith.constant 0 : index
    %c0_3 = arith.constant 0 : index
    %c0_4 = arith.constant 0 : index
    %9 = vector.load %arg2[%c0_2, %c0_3, %c0_4] : memref<3x128x128xbf16, #tpu.memory_space<vmem>>, vector<1x128x128xbf16>
    %10 = vector.shape_cast %9 : vector<1x128x128xbf16> to vector<128x128xbf16>
    %cst_5 = arith.constant dense<0.000000e+00> : vector<256x128xf32>
    %11 = tpu.matmul %8, %10, %cst_5 {dimension_numbers = #tpu.dot_dimension_numbers<[1], [0], [0], [1], [0, 0, 1, 1], [], []>} : vector<256x128xbf16>, vector<128x128xbf16>, vector<256x128xf32> -> vector<256x128xf32>
    %c0_6 = arith.constant 0 : index
    %c0_7 = arith.constant 0 : index
    %c0_8 = arith.constant 0 : index
    %12 = vector.load %arg3[%c0_6, %c0_7, %c0_8] : memref<3x1x128xf32, #tpu.memory_space<vmem>>, vector<1x1x128xf32>
    %13 = vector.shape_cast %12 : vector<1x1x128xf32> to vector<1x128xf32>
    %14 = vector.broadcast %13 : vector<1x128xf32> to vector<256x128xf32>
    %15 = arith.addf %11, %14 : vector<256x128xf32>
    %cst_9 = arith.constant 0.000000e+00 : f32
    %16 = vector.broadcast %cst_9 : f32 to vector<256x128xf32>
    %17 = arith.maximumf %15, %16 : vector<256x128xf32>
    %18 = arith.truncf %17 : vector<256x128xf32> to vector<256x128xbf16>
    %c1 = arith.constant 1 : index
    %c0_10 = arith.constant 0 : index
    %c0_11 = arith.constant 0 : index
    %19 = vector.load %arg2[%c1, %c0_10, %c0_11] : memref<3x128x128xbf16, #tpu.memory_space<vmem>>, vector<1x128x128xbf16>
    %20 = vector.shape_cast %19 : vector<1x128x128xbf16> to vector<128x128xbf16>
    %cst_12 = arith.constant dense<0.000000e+00> : vector<256x128xf32>
    %21 = tpu.matmul %18, %20, %cst_12 {dimension_numbers = #tpu.dot_dimension_numbers<[1], [0], [0], [1], [0, 0, 1, 1], [], []>} : vector<256x128xbf16>, vector<128x128xbf16>, vector<256x128xf32> -> vector<256x128xf32>
    %c1_13 = arith.constant 1 : index
    %c0_14 = arith.constant 0 : index
    %c0_15 = arith.constant 0 : index
    %22 = vector.load %arg3[%c1_13, %c0_14, %c0_15] : memref<3x1x128xf32, #tpu.memory_space<vmem>>, vector<1x1x128xf32>
    %23 = vector.shape_cast %22 : vector<1x1x128xf32> to vector<1x128xf32>
    %24 = vector.broadcast %23 : vector<1x128xf32> to vector<256x128xf32>
    %25 = arith.addf %21, %24 : vector<256x128xf32>
    %cst_16 = arith.constant 0.000000e+00 : f32
    %26 = vector.broadcast %cst_16 : f32 to vector<256x128xf32>
    %27 = arith.maximumf %25, %26 : vector<256x128xf32>
    %28 = arith.truncf %27 : vector<256x128xf32> to vector<256x128xbf16>
    %c2 = arith.constant 2 : index
    %c0_17 = arith.constant 0 : index
    %c0_18 = arith.constant 0 : index
    %29 = vector.load %arg2[%c2, %c0_17, %c0_18] : memref<3x128x128xbf16, #tpu.memory_space<vmem>>, vector<1x128x128xbf16>
    %30 = vector.shape_cast %29 : vector<1x128x128xbf16> to vector<128x128xbf16>
    %cst_19 = arith.constant dense<0.000000e+00> : vector<256x128xf32>
    %31 = tpu.matmul %28, %30, %cst_19 {dimension_numbers = #tpu.dot_dimension_numbers<[1], [0], [0], [1], [0, 0, 1, 1], [], []>} : vector<256x128xbf16>, vector<128x128xbf16>, vector<256x128xf32> -> vector<256x128xf32>
    %c2_20 = arith.constant 2 : index
    %c0_21 = arith.constant 0 : index
    %c0_22 = arith.constant 0 : index
    %32 = vector.load %arg3[%c2_20, %c0_21, %c0_22] : memref<3x1x128xf32, #tpu.memory_space<vmem>>, vector<1x1x128xf32>
    %33 = vector.shape_cast %32 : vector<1x1x128xf32> to vector<1x128xf32>
    %34 = vector.broadcast %33 : vector<1x128xf32> to vector<256x128xf32>
    %35 = arith.addf %31, %34 : vector<256x128xf32>
    %cst_23 = arith.constant 0.000000e+00 : f32
    %36 = vector.broadcast %cst_23 : f32 to vector<256x128xf32>
    %37 = arith.maximumf %35, %36 : vector<256x128xf32>
    %38 = arith.addf %37, %7 : vector<256x128xf32>
    %39 = arith.truncf %38 : vector<256x128xf32> to vector<256x128xbf16>
    %c0_24 = arith.constant 0 : index
    %c0_25 = arith.constant 0 : index
    %40 = vector.load %arg4[%c0_24, %c0_25] : memref<128x128xbf16, #tpu.memory_space<vmem>>, vector<128x128xbf16>
    %cst_26 = arith.constant dense<0.000000e+00> : vector<256x128xf32>
    %41 = tpu.matmul %39, %40, %cst_26 {dimension_numbers = #tpu.dot_dimension_numbers<[1], [0], [0], [1], [0, 0, 1, 1], [], []>} : vector<256x128xbf16>, vector<128x128xbf16>, vector<256x128xf32> -> vector<256x128xf32>
    %c0_27 = arith.constant 0 : index
    %c0_28 = arith.constant 0 : index
    %42 = vector.load %arg5[%c0_27, %c0_28] : memref<1x128xf32, #tpu.memory_space<vmem>>, vector<1x128xf32>
    %43 = vector.broadcast %42 : vector<1x128xf32> to vector<256x128xf32>
    %44 = arith.addf %41, %43 : vector<256x128xf32>
    %45 = arith.truncf %44 : vector<256x128xf32> to vector<256x128xbf16>
    %c0_29 = arith.constant 0 : index
    %c0_30 = arith.constant 0 : index
    %46 = vector.load %arg6[%c0_29, %c0_30] : memref<256x128xbf16, #tpu.memory_space<vmem>>, vector<256x128xbf16>
    tpu.vector_store %arg6[%c0_29, %c0_30], %45 {strides = array<i32>} : memref<256x128xbf16, #tpu.memory_space<vmem>>, vector<256x128xbf16>,
    return
  }
  func.func @transform_0(%arg0: i32) -> (i32, i32) {
    %c0_i32 = arith.constant 0 : i32
    %c0_i32_0 = arith.constant 0 : i32
    return %arg0, %c0_i32 : i32, i32
  }
  func.func @transform_1(%arg0: i32) -> (i32, i32, i32) {
    %c0_i32 = arith.constant 0 : i32
    %c0_i32_0 = arith.constant 0 : i32
    %c0_i32_1 = arith.constant 0 : i32
    %c0_i32_2 = arith.constant 0 : i32
    return %c0_i32, %c0_i32_0, %c0_i32_1 : i32, i32, i32
  }
  func.func @transform_2(%arg0: i32) -> (i32, i32, i32) {
    %c0_i32 = arith.constant 0 : i32
    %c0_i32_0 = arith.constant 0 : i32
    %c0_i32_1 = arith.constant 0 : i32
    %c0_i32_2 = arith.constant 0 : i32
    return %c0_i32, %c0_i32_0, %c0_i32_1 : i32, i32, i32
  }
  func.func @transform_3(%arg0: i32) -> (i32, i32) {
    %c0_i32 = arith.constant 0 : i32
    %c0_i32_0 = arith.constant 0 : i32
    %c0_i32_1 = arith.constant 0 : i32
    return %c0_i32, %c0_i32_0 : i32, i32
  }
  func.func @transform_4(%arg0: i32) -> (i32, i32) {
    %c0_i32 = arith.constant 0 : i32
    %c0_i32_0 = arith.constant 0 : i32
    %c0_i32_1 = arith.constant 0 : i32
    return %c0_i32, %c0_i32_0 : i32, i32
  }
  func.func @transform_5(%arg0: i32) -> (i32, i32) {
    %c0_i32 = arith.constant 0 : i32
    %c0_i32_0 = arith.constant 0 : i32
    return %arg0, %c0_i32 : i32, i32
  }
}

module attributes {stable_mosaic.version = 11 : i64} {
  func.func @deepfm_kernel(%arg0: i32, %arg1: memref<256x128xbf16, #tpu.memory_space<vmem>>, %arg2: memref<3x128x128xbf16, #tpu.memory_space<vmem>>, %arg3: memref<3x1x128xf32, #tpu.memory_space<vmem>>, %arg4: memref<128x128xbf16, #tpu.memory_space<vmem>>, %arg5: memref<1x128xf32, #tpu.memory_space<vmem>>, %arg6: memref<256x128xbf16, #tpu.memory_space<vmem>>) attributes {dimension_semantics = [#tpu.dimension_semantics<parallel>], iteration_bounds = array<i64: 2>, scalar_prefetch = 0 : i64, scratch_operands = 0 : i64, tpu.core_type = #tpu.core_type<tc>, window_params = [{transform_indices = @transform_0, window_bounds = array<i64: 256, 128>}, {pipeline_mode = #tpu.pipeline_mode<synchronous>, transform_indices = @transform_1, window_bounds = array<i64: 3, 128, 128>}, {pipeline_mode = #tpu.pipeline_mode<synchronous>, transform_indices = @transform_2, window_bounds = array<i64: 3, 1, 128>}, {pipeline_mode = #tpu.pipeline_mode<synchronous>, transform_indices = @transform_3, window_bounds = array<i64: 128, 128>}, {pipeline_mode = #tpu.pipeline_mode<synchronous>, transform_indices = @transform_4, window_bounds = array<i64: 1, 128>}, {transform_indices = @transform_5, window_bounds = array<i64: 256, 128>}]} {
    %c0 = arith.constant 0 : index
    %c0_0 = arith.constant 0 : index
    %0 = vector.load %arg1[%c0, %c0_0] : memref<256x128xbf16, #tpu.memory_space<vmem>>, vector<256x128xbf16>
    %1 = arith.extf %0 : vector<256x128xbf16> to vector<256x128xf32>
    %cst = arith.constant dense<0.000000e+00> : vector<256xf32>
    %2 = vector.multi_reduction <add>, %1, %cst [1] : vector<256x128xf32> to vector<256xf32>
    %3 = vector.shape_cast %2 : vector<256xf32> to vector<256x1xf32>
    %4 = vector.broadcast %3 : vector<256x1xf32> to vector<256x128xf32>
    %5 = arith.mulf %1, %4 : vector<256x128xf32>
    %cst_1 = arith.constant 0.000000e+00 : f32
    %6 = vector.broadcast %cst_1 : f32 to vector<256x128xf32>
    %7 = arith.maximumf %5, %6 : vector<256x128xf32>
    %8 = arith.truncf %1 : vector<256x128xf32> to vector<256x128xbf16>
    %c0_2 = arith.constant 0 : index
    %c0_3 = arith.constant 0 : index
    %c0_4 = arith.constant 0 : index
    %9 = vector.load %arg2[%c0_2, %c0_3, %c0_4] : memref<3x128x128xbf16, #tpu.memory_space<vmem>>, vector<1x128x128xbf16>
    %10 = vector.shape_cast %9 : vector<1x128x128xbf16> to vector<128x128xbf16>
    %cst_5 = arith.constant dense<0.000000e+00> : vector<256x128xf32>
    %11 = tpu.matmul %8, %10, %cst_5 {dimension_numbers = #tpu.dot_dimension_numbers<[1], [0], [0], [1], [0, 0, 1, 1], [], []>} : vector<256x128xbf16>, vector<128x128xbf16>, vector<256x128xf32> -> vector<256x128xf32>
    %c0_6 = arith.constant 0 : index
    %c0_7 = arith.constant 0 : index
    %c0_8 = arith.constant 0 : index
    %12 = vector.load %arg3[%c0_6, %c0_7, %c0_8] : memref<3x1x128xf32, #tpu.memory_space<vmem>>, vector<1x1x128xf32>
    %13 = vector.shape_cast %12 : vector<1x1x128xf32> to vector<1x128xf32>
    %14 = vector.broadcast %13 : vector<1x128xf32> to vector<256x128xf32>
    %15 = arith.addf %11, %14 : vector<256x128xf32>
    %cst_9 = arith.constant 0.000000e+00 : f32
    %16 = vector.broadcast %cst_9 : f32 to vector<256x128xf32>
    %17 = arith.maximumf %15, %16 : vector<256x128xf32>
    %18 = arith.truncf %17 : vector<256x128xf32> to vector<256x128xbf16>
    %c1 = arith.constant 1 : index
    %c0_10 = arith.constant 0 : index
    %c0_11 = arith.constant 0 : index
    %19 = vector.load %arg2[%c1, %c0_10, %c0_11] : memref<3x128x128xbf16, #tpu.memory_space<vmem>>, vector<1x128x128xbf16>
    %20 = vector.shape_cast %19 : vector<1x128x128xbf16> to vector<128x128xbf16>
    %cst_12 = arith.constant dense<0.000000e+00> : vector<256x128xf32>
    %21 = tpu.matmul %18, %20, %cst_12 {dimension_numbers = #tpu.dot_dimension_numbers<[1], [0], [0], [1], [0, 0, 1, 1], [], []>} : vector<256x128xbf16>, vector<128x128xbf16>, vector<256x128xf32> -> vector<256x128xf32>
    %c1_13 = arith.constant 1 : index
    %c0_14 = arith.constant 0 : index
    %c0_15 = arith.constant 0 : index
    %22 = vector.load %arg3[%c1_13, %c0_14, %c0_15] : memref<3x1x128xf32, #tpu.memory_space<vmem>>, vector<1x1x128xf32>
    %23 = vector.shape_cast %22 : vector<1x1x128xf32> to vector<1x128xf32>
    %24 = vector.broadcast %23 : vector<1x128xf32> to vector<256x128xf32>
    %25 = arith.addf %21, %24 : vector<256x128xf32>
    %cst_16 = arith.constant 0.000000e+00 : f32
    %26 = vector.broadcast %cst_16 : f32 to vector<256x128xf32>
    %27 = arith.maximumf %25, %26 : vector<256x128xf32>
    %28 = arith.truncf %27 : vector<256x128xf32> to vector<256x128xbf16>
    %c2 = arith.constant 2 : index
    %c0_17 = arith.constant 0 : index
    %c0_18 = arith.constant 0 : index
    %29 = vector.load %arg2[%c2, %c0_17, %c0_18] : memref<3x128x128xbf16, #tpu.memory_space<vmem>>, vector<1x128x128xbf16>
    %30 = vector.shape_cast %29 : vector<1x128x128xbf16> to vector<128x128xbf16>
    %cst_19 = arith.constant dense<0.000000e+00> : vector<256x128xf32>
    %31 = tpu.matmul %28, %30, %cst_19 {dimension_numbers = #tpu.dot_dimension_numbers<[1], [0], [0], [1], [0, 0, 1, 1], [], []>} : vector<256x128xbf16>, vector<128x128xbf16>, vector<256x128xf32> -> vector<256x128xf32>
    %c2_20 = arith.constant 2 : index
    %c0_21 = arith.constant 0 : index
    %c0_22 = arith.constant 0 : index
    %32 = vector.load %arg3[%c2_20, %c0_21, %c0_22] : memref<3x1x128xf32, #tpu.memory_space<vmem>>, vector<1x1x128xf32>
    %33 = vector.shape_cast %32 : vector<1x1x128xf32> to vector<1x128xf32>
    %34 = vector.broadcast %33 : vector<1x128xf32> to vector<256x128xf32>
    %35 = arith.addf %31, %34 : vector<256x128xf32>
    %cst_23 = arith.constant 0.000000e+00 : f32
    %36 = vector.broadcast %cst_23 : f32 to vector<256x128xf32>
    %37 = arith.maximumf %35, %36 : vector<256x128xf32>
    %38 = arith.addf %37, %7 : vector<256x128xf32>
    %39 = arith.truncf %38 : vector<256x128xf32> to vector<256x128xbf16>
    %c0_24 = arith.constant 0 : index
    %c0_25 = arith.constant 0 : index
    %40 = vector.load %arg4[%c0_24, %c0_25] : memref<128x128xbf16, #tpu.memory_space<vmem>>, vector<128x128xbf16>
    %cst_26 = arith.constant dense<0.000000e+00> : vector<256x128xf32>
    %41 = tpu.matmul %39, %40, %cst_26 {dimension_numbers = #tpu.dot_dimension_numbers<[1], [0], [0], [1], [0, 0, 1, 1], [], []>} : vector<256x128xbf16>, vector<128x128xbf16>, vector<256x128xf32> -> vector<256x128xf32>
    %c0_27 = arith.constant 0 : index
    %c0_28 = arith.constant 0 : index
    %42 = vector.load %arg5[%c0_27, %c0_28] : memref<1x128xf32, #tpu.memory_space<vmem>>, vector<1x128xf32>
    %43 = vector.broadcast %42 : vector<1x128xf32> to vector<256x128xf32>
    %44 = arith.addf %41, %43 : vector<256x128xf32>
    %45 = arith.truncf %44 : vector<256x128xf32> to vector<256x128xbf16>
    %c0_29 = arith.constant 0 : index
    %c0_30 = arith.constant 0 : index
    %46 = vector.load %arg6[%c0_29, %c0_30] : memref<256x128xbf16, #tpu.memory_space<vmem>>, vector<256x128xbf16>
    tpu.vector_store %arg6[%c0_29, %c0_30], %45 {strides = array<i32>} : memref<256x128xbf16, #tpu.memory_space<vmem>>, vector<256x128xbf16>,
    return
  }
  func.func @transform_0(%arg0: i32) -> (i32, i32) {
    %c0_i32 = arith.constant 0 : i32
    %c0_i32_0 = arith.constant 0 : i32
    return %arg0, %c0_i32 : i32, i32
  }
  func.func @transform_1(%arg0: i32) -> (i32, i32, i32) {
    %c0_i32 = arith.constant 0 : i32
    %c0_i32_0 = arith.constant 0 : i32
    %c0_i32_1 = arith.constant 0 : i32
    %c0_i32_2 = arith.constant 0 : i32
    return %c0_i32, %c0_i32_0, %c0_i32_1 : i32, i32, i32
  }
  func.func @transform_2(%arg0: i32) -> (i32, i32, i32) {
    %c0_i32 = arith.constant 0 : i32
    %c0_i32_0 = arith.constant 0 : i32
    %c0_i32_1 = arith.constant 0 : i32
    %c0_i32_2 = arith.constant 0 : i32
    return %c0_i32, %c0_i32_0, %c0_i32_1 : i32, i32, i32
  }
  func.func @transform_3(%arg0: i32) -> (i32, i32) {
    %c0_i32 = arith.constant 0 : i32
    %c0_i32_0 = arith.constant 0 : i32
    %c0_i32_1 = arith.constant 0 : i32
    return %c0_i32, %c0_i32_0 : i32, i32
  }
  func.func @transform_4(%arg0: i32) -> (i32, i32) {
    %c0_i32 = arith.constant 0 : i32
    %c0_i32_0 = arith.constant 0 : i32
    %c0_i32_1 = arith.constant 0 : i32
    return %c0_i32, %c0_i32_0 : i32, i32
  }
  func.func @transform_5(%arg0: i32) -> (i32, i32) {
    %c0_i32 = arith.constant 0 : i32
    %c0_i32_0 = arith.constant 0 : i32
    return %arg0, %c0_i32 : i32, i32
  }
}

</mosaic_0001>

<llo_original>
// kernel: tpu_custom_call.1
$region0: #{tpu_custom_call.1}
  #allocation0 [shape = 'u32[]', space=smem, size = 0x4, offset = 0x4, fixed_abs, tag = 'smem constant byte address 0x4 - core index']
  #allocation1 [shape = 'u32[144,128]{1,0:T(1,128)}', space=vmem, size = 0x12000, scoped, tag = 'internal scratch']
  %s0 = inlined_call_operand.hbm [shape: bf16[512,128], index: 0, kind: input, shape index: {}]
  %s1 = inlined_call_operand.hbm [shape: bf16[3,128,128], index: 1, kind: input, shape index: {}]
  %s2 = inlined_call_operand.vmem [shape: f32[3,1,128], index: 2, kind: input, shape index: {}]
  %s3 = inlined_call_operand.hbm [shape: bf16[128,128], index: 3, kind: input, shape index: {}]
  %s4 = inlined_call_operand.vmem [shape: f32[1,128], index: 4, kind: input, shape index: {}]
  %s5 = inlined_call_operand.hbm [shape: bf16[512,128], index: 5, kind: output, shape index: {}]
  %s6 = sld [smem:[#allocation0]]
  $region65: #{tpu_custom_call.1} parent=0
    _
  %s8 = ssub.s32 1, %s6
  %s9 = scalar_select 0, %s8, %s6
  $region1: #{tpu_custom_call.1} parent=0
    #allocation2 [shape = 'u8[131072]{0}', space=vmem, size = 0x20000, scoped, tag = 'input window, operand 0']
    #allocation3 [shape = 's32[2]{0}', space=sflag, size = 0x8, scoped, tag = 'scoped memory for tpu_custom_call.1']
    #allocation4 [shape = 's32[2]{0}', space=sflag, size = 0x8, scoped, tag = 'scoped memory for tpu_custom_call.1']
    #allocation5 [shape = 'u8[98304]{0}', space=vmem, size = 0x18000, scoped, tag = 'input window, operand 1, single buffered']
    #allocation6 [shape = 's32[1]{0}', space=sflag, size = 0x4, scoped, tag = 'scoped memory for tpu_custom_call.1']
    #allocation7 [shape = 'u8[32768]{0}', space=vmem, size = 0x8000, scoped, tag = 'input window, operand 3, single buffered']
    #allocation8 [shape = 'u8[131072]{0}', space=vmem, size = 0x20000, scoped, tag = 'output window, operand 0']
    %10 = vsyncpa [#allocation3], 0
    %s11 = scalar_lea.sflag [#allocation3], 1
    %12 = vsyncpa %s11, 0
    %13 = vsyncpa [#allocation6], 0
    %14 = vsyncpa [#allocation4], 0
    %s15 = scalar_lea.sflag [#allocation4], 1
    %16 = vsyncpa %s15, 0
    loop: start=0, step=1, limit=4
    $region2: #{tpu_custom_call.1} parent=1 // loop_pre_header
      _
    $region3: #{tpu_custom_call.1} parent=1 // loop_header
      %s18 = sphi 0, %s22
      %p19 = scmp.ge.s32.totalorder %s18, 4
      %s28 = sphi 0, %s30
      %s31 = sphi 0, %s28
      %s32 = sphi 0, %s31
      %s48 = sphi 0, %s32
      %s52 = sphi 0, %s52
      %s54 = sphi 0, %s52
      %s55 = sphi 0, %s54
      %s69 = sphi 0, %s55
      %s73 = sphi 0, %s73
      %s75 = sphi 0, %s73
      %s76 = sphi 0, %s75
      %s90 = sphi 0, %s76
      %s94 = sphi 0, %s94
      %s96 = sphi 0, %s94
      %s97 = sphi 0, %s96
      %s111 = sphi 0, %s97
      %s115 = sphi 0, %s115
      %s117 = sphi 0, %s115
      %s118 = sphi 0, %s117
      %s132 = sphi 0, %s118
      %s138 = sphi 0, %s140
      %s141 = sphi 0, %s138
      %s142 = sphi 0, %s141
      %s158 = sphi 0, %s142
    $region4: #{tpu_custom_call.1} parent=1 // loop_header_branch
      %21 = sbr.rel (%p19) target = $region8
    $region5: #{tpu_custom_call.1} parent=1 // loop_body
      %s23 = ssub.s32 %s18, 1
      %s24 = ssub.s32 %s18, 2
      %s25 = sadd.s32 %s18, 1
      %s26 = ssub.s32 %s18, %s25
      %p27 = scmp.eq.s32.totalorder %s26, 0
      %s29 = sadd.s32 %s28, 1
      %s30 = scalar_select %p27, %s28, %s29
      %p33 = pneg %p27
      %p34 = scmp.eq.s32.totalorder %s18, 1
      %p35 = por %p33, %p34
      %p36 = scmp.ne.s32.totalorder %s28, %s31
      %p37 = scmp.eq.s32.totalorder %s18, 0
      %p38 = por %p36, %p37
      %p39 = scmp.ne.s32.totalorder %s28, %s31
      %p40 = scmp.eq.s32.totalorder %s23, 1
      %p41 = por %p39, %p40
      %p42 = scmp.ne.s32.totalorder %s31, %s32
      %p43 = scmp.eq.s32.totalorder %s23, 0
      %p44 = por %p42, %p43
      %p45 = scmp.ne.s32.totalorder %s31, %s32
      %p46 = scmp.eq.s32.totalorder %s24, 1
      %p47 = por %p45, %p46
      %p49 = scmp.ne.s32.totalorder %s32, %s48
      %p50 = scmp.eq.s32.totalorder %s24, 0
      %p51 = por %p49, %p50
      %s53 = sadd.s32 %s52, 1
      %p56 = scmp.eq.s32.totalorder %s18, 1
      %p57 = scmp.ne.s32.totalorder %s52, %s54
      %p58 = scmp.eq.s32.totalorder %s18, 0
      %p59 = por %p57, %p58
      %p60 = scmp.ne.s32.totalorder %s52, %s54
      %p61 = scmp.eq.s32.totalorder %s23, 1
      %p62 = por %p60, %p61
      %p63 = scmp.ne.s32.totalorder %s54, %s55
      %p64 = scmp.eq.s32.totalorder %s23, 0
      %p65 = por %p63, %p64
      %p66 = scmp.ne.s32.totalorder %s54, %s55
      %p67 = scmp.eq.s32.totalorder %s24, 1
      %p68 = por %p66, %p67
      %p70 = scmp.ne.s32.totalorder %s55, %s69
      %p71 = scmp.eq.s32.totalorder %s24, 0
      %p72 = por %p70, %p71
      %s74 = sadd.s32 %s73, 1
      %p77 = scmp.eq.s32.totalorder %s18, 1
      %p78 = scmp.ne.s32.totalorder %s73, %s75
      %p79 = scmp.eq.s32.totalorder %s18, 0
      %p80 = por %p78, %p79
      %p81 = scmp.ne.s32.totalorder %s73, %s75
      %p82 = scmp.eq.s32.totalorder %s23, 1
      %p83 = por %p81, %p82
      %p84 = scmp.ne.s32.totalorder %s75, %s76
      %p85 = scmp.eq.s32.totalorder %s23, 0
      %p86 = por %p84, %p85
      %p87 = scmp.ne.s32.totalorder %s75, %s76
      %p88 = scmp.eq.s32.totalorder %s24, 1
      %p89 = por %p87, %p88
      %p91 = scmp.ne.s32.totalorder %s76, %s90
      %p92 = scmp.eq.s32.totalorder %s24, 0
      %p93 = por %p91, %p92
      %s95 = sadd.s32 %s94, 1
      %p98 = scmp.eq.s32.totalorder %s18, 1
      %p99 = scmp.ne.s32.totalorder %s94, %s96
      %p100 = scmp.eq.s32.totalorder %s18, 0
      %p101 = por %p99, %p100
      %p102 = scmp.ne.s32.totalorder %s94, %s96
      %p103 = scmp.eq.s32.totalorder %s23, 1
      %p104 = por %p102, %p103
      %p105 = scmp.ne.s32.totalorder %s96, %s97
      %p106 = scmp.eq.s32.totalorder %s23, 0
      %p107 = por %p105, %p106
      %p108 = scmp.ne.s32.totalorder %s96, %s97
      %p109 = scmp.eq.s32.totalorder %s24, 1
      %p110 = por %p108, %p109
      %p112 = scmp.ne.s32.totalorder %s97, %s111
      %p113 = scmp.eq.s32.totalorder %s24, 0
      %p114 = por %p112, %p113
      %s116 = sadd.s32 %s115, 1
      %p119 = scmp.eq.s32.totalorder %s18, 1
      %p120 = scmp.ne.s32.totalorder %s115, %s117
      %p121 = scmp.eq.s32.totalorder %s18, 0
      %p122 = por %p120, %p121
      %p123 = scmp.ne.s32.totalorder %s115, %s117
      %p124 = scmp.eq.s32.totalorder %s23, 1
      %p125 = por %p123, %p124
      %p126 = scmp.ne.s32.totalorder %s117, %s118
      %p127 = scmp.eq.s32.totalorder %s23, 0
      %p128 = por %p126, %p127
      %p129 = scmp.ne.s32.totalorder %s117, %s118
      %p130 = scmp.eq.s32.totalorder %s24, 1
      %p131 = por %p129, %p130
      %p133 = scmp.ne.s32.totalorder %s118, %s132
      %p134 = scmp.eq.s32.totalorder %s24, 0
      %p135 = por %p133, %p134
      %s136 = ssub.s32 %s18, %s25
      %p137 = scmp.eq.s32.totalorder %s136, 0
      %s139 = sadd.s32 %s138, 1
      %s140 = scalar_select %p137, %s138, %s139
      %p143 = pneg %p137
      %p144 = scmp.eq.s32.totalorder %s18, 1
      %p145 = por %p143, %p144
      %p146 = scmp.ne.s32.totalorder %s138, %s141
      %p147 = scmp.eq.s32.totalorder %s18, 0
      %p148 = por %p146, %p147
      %p149 = scmp.ne.s32.totalorder %s138, %s141
      %p150 = scmp.eq.s32.totalorder %s23, 1
      %p151 = por %p149, %p150
      %p152 = scmp.ne.s32.totalorder %s141, %s142
      %p153 = scmp.eq.s32.totalorder %s23, 0
      %p154 = por %p152, %p153
      %p155 = scmp.ne.s32.totalorder %s141, %s142
      %p156 = scmp.eq.s32.totalorder %s24, 1
      %p157 = por %p155, %p156
      %p159 = scmp.ne.s32.totalorder %s142, %s158
      %p160 = scmp.eq.s32.totalorder %s24, 0
      %p161 = por %p159, %p160
      %p162 = scmp.le.s32.totalorder 1, %s18
      %p163 = scmp.lt.s32.totalorder %s18, 3
      %p164 = pnand %p162, %p163
      %p165 = pneg %p164
      // Predicated region
      $region9: #{tpu_custom_call.1} parent=5 // pred_check
        _
      $region10: #{tpu_custom_call.1} parent=5 // pred_check_branch
        %167 = sbr.rel (%p164) target = $region12
      $region11: #{tpu_custom_call.1} parent=5 // pred_region
        %s168 = ssub.s32 %s18, 1
        // Predicated region
        $region13: #{tpu_custom_call.1} parent=11 // pred_check
          %p169 = pneg %p65
        $region14: #{tpu_custom_call.1} parent=11 // pred_check_branch
          %171 = sbr.rel (%p169) target = $region16
        $region15: #{tpu_custom_call.1} parent=11 // pred_region
          %s173 = ssub.s32 3072, 3072
          %174 = vsyncadd [#allocation6], %s173
          %s175 = sshll.u32 [#allocation5], 4
          %s176 = int_to_ptr.vmem [resolvable:$true] %s175
          %181 = dma.hbm_to_vmem [thread:$0]  %s1, 3072, %s176, [#allocation6], 64, 64, 4
        $region16: #{tpu_custom_call.1} parent=11 // pred_fallthru
          _
        // Predicated region
        $region17: #{tpu_custom_call.1} parent=11 // pred_check
          %p182 = pneg %p86
        $region18: #{tpu_custom_call.1} parent=11 // pred_check_branch
          %184 = sbr.rel (%p182) target = $region20
        $region19: #{tpu_custom_call.1} parent=11 // pred_region
          _
        $region20: #{tpu_custom_call.1} parent=11 // pred_fallthru
          _
        // Predicated region
        $region21: #{tpu_custom_call.1} parent=11 // pred_check
          %p185 = pneg %p107
        $region22: #{tpu_custom_call.1} parent=11 // pred_check_branch
          %187 = sbr.rel (%p185) target = $region24
        $region23: #{tpu_custom_call.1} parent=11 // pred_region
          %s189 = ssub.s32 1024, 1024
          %190 = vsyncadd [#allocation6], %s189
          %s191 = sshll.u32 [#allocation7], 4
          %s192 = int_to_ptr.vmem [resolvable:$true] %s191
          %197 = dma.hbm_to_vmem [thread:$0]  %s3, 1024, %s192, [#allocation6], 64, 64, 4
        $region24: #{tpu_custom_call.1} parent=11 // pred_fallthru
          _
        // Predicated region
        $region25: #{tpu_custom_call.1} parent=11 // pred_check
          %p198 = pneg %p128
        $region26: #{tpu_custom_call.1} parent=11 // pred_check_branch
          %200 = sbr.rel (%p198) target = $region28
        $region27: #{tpu_custom_call.1} parent=11 // pred_region
          _
        $region28: #{tpu_custom_call.1} parent=11 // pred_fallthru
          _
      $region12: #{tpu_custom_call.1} parent=5 // pred_fallthru
        _
      %p201 = scmp.lt.s32.totalorder %s18, 2
      // Predicated region
      $region29: #{tpu_custom_call.1} parent=5 // pred_check
        %p202 = pneg %p201
      $region30: #{tpu_custom_call.1} parent=5 // pred_check_branch
        %204 = sbr.rel (%p202) target = $region32
      $region31: #{tpu_custom_call.1} parent=5 // pred_region
        // Predicated region
        $region33: #{tpu_custom_call.1} parent=31 // pred_check
          %p205 = pneg %p38
        $region34: #{tpu_custom_call.1} parent=31 // pred_check_branch
          %207 = sbr.rel (%p205) target = $region36
        $region35: #{tpu_custom_call.1} parent=31 // pred_region
          %s208 = sand.u32 %s28, 1
          %s209 = scalar_lea.sflag [#allocation3], %s208
          %s210 = sand.u32 %s28, 1
          %s211 = smul.addr %s210, 128
          %s212 = scalar_lea.vmem [#allocation2], %s211
          %s213 = smul.u32 32, %s18
          %s215 = ssub.s32 2048, 2048
          %216 = vsyncadd %s209, %s215
          %s217 = smul.addr %s213, 64
          %s218 = scalar_lea.hbm %s0, %s217
          %s219 = sshll.u32 %s212, 4
          %s220 = int_to_ptr.vmem [resolvable:$true] %s219
          %225 = dma.hbm_to_vmem [thread:$0]  %s218, 2048, %s220, %s209, 64, 64, 4
        $region36: #{tpu_custom_call.1} parent=31 // pred_fallthru
          _
      $region32: #{tpu_custom_call.1} parent=5 // pred_fallthru
        _
      %p226 = scmp.le.s32.totalorder 1, %s18
      %p227 = scmp.lt.s32.totalorder %s18, 3
      %p228 = pnand %p226, %p227
      %p229 = pneg %p228
      // Predicated region
      $region37: #{tpu_custom_call.1} parent=5 // pred_check
        _
      $region38: #{tpu_custom_call.1} parent=5 // pred_check_branch
        %231 = sbr.rel (%p228) target = $region40
      $region39: #{tpu_custom_call.1} parent=5 // pred_region
        %s232 = ssub.s32 %s18, 1
        %s233 = sand.u32 %s31, 1
        %s234 = scalar_lea.sflag [#allocation3], %s233
        %s235 = sand.u32 %s31, 1
        %s236 = smul.addr %s235, 128
        %s237 = scalar_lea.vmem [#allocation2], %s236
        // Predicated region
        $region41: #{tpu_custom_call.1} parent=39 // pred_check
          %p238 = pneg %p44
        $region42: #{tpu_custom_call.1} parent=39 // pred_check_branch
          %240 = sbr.rel (%p238) target = $region44
        $region43: #{tpu_custom_call.1} parent=39 // pred_region
          %241 = dma.done %s234, 2048
        $region44: #{tpu_custom_call.1} parent=39 // pred_fallthru
          _
        // Predicated region
        $region45: #{tpu_custom_call.1} parent=39 // pred_check
          %p242 = pneg %p65
        $region46: #{tpu_custom_call.1} parent=39 // pred_check_branch
          %244 = sbr.rel (%p242) target = $region48
        $region47: #{tpu_custom_call.1} parent=39 // pred_region
          %245 = dma.done [#allocation6], 3072
        $region48: #{tpu_custom_call.1} parent=39 // pred_fallthru
          _
        // Predicated region
        $region49: #{tpu_custom_call.1} parent=39 // pred_check
          %p246 = pneg %p107
        $region50: #{tpu_custom_call.1} parent=39 // pred_check_branch
          %248 = sbr.rel (%p246) target = $region52
        $region51: #{tpu_custom_call.1} parent=39 // pred_region
          %249 = dma.done [#allocation6], 1024
        $region52: #{tpu_custom_call.1} parent=39 // pred_fallthru
          _
        %s250 = sand.u32 %s31, 1
        %s251 = scalar_lea.sflag [#allocation3], %s250
        %s252 = sand.u32 %s31, 1
        %s253 = smul.addr %s252, 128
        %s254 = scalar_lea.vmem [#allocation2], %s253
        %p255 = pneg %p44
        %p256 = pneg %p41
        %p257 = pneg %p65
        %p258 = pneg %p62
        %p259 = pneg %p86
        %p260 = pneg %p83
        %p261 = pneg %p107
        %p262 = pneg %p104
        %p263 = pneg %p128
        %p264 = pneg %p125
        %p265 = pneg %p154
        %p266 = pneg %p151
        %s267 = sand.u32 %s141, 1
        %s268 = scalar_lea.sflag [#allocation4], %s267
        %s269 = sand.u32 %s141, 1
        %s270 = smul.addr %s269, 128
        %s271 = scalar_lea.vmem [#allocation8], %s270
        %s272 = smul.u32 32, %s23
        %s273 = smul.u32 32, %s23
        %v275 = vld [vmem:[%s237] sm:$0xf]
        %v276 = vld [vmem:[%s237 + $0x4] sm:$0xf]
        %v277 = vld [vmem:[%s237 + $0x8] sm:$0xf]
        %v278 = vld [vmem:[%s237 + $0xc] sm:$0xf]
        %v279 = vld [vmem:[%s237 + $0x10] sm:$0xf]
        %v280 = vld [vmem:[%s237 + $0x14] sm:$0xf]
        %v281 = vld [vmem:[%s237 + $0x18] sm:$0xf]
        %v282 = vld [vmem:[%s237 + $0x1c] sm:$0xf]
        %v283 = vld [vmem:[%s237 + $0x20] sm:$0xf]
        %v284 = vld [vmem:[%s237 + $0x24] sm:$0xf]
        %v285 = vld [vmem:[%s237 + $0x28] sm:$0xf]
        %v286 = vld [vmem:[%s237 + $0x2c] sm:$0xf]
        %v287 = vld [vmem:[%s237 + $0x30] sm:$0xf]
        %v288 = vld [vmem:[%s237 + $0x34] sm:$0xf]
        %v289 = vld [vmem:[%s237 + $0x38] sm:$0xf]
        %v290 = vld [vmem:[%s237 + $0x3c] sm:$0xf]
        %v291 = vld [vmem:[%s237 + $0x40] sm:$0xf]
        %v292 = vld [vmem:[%s237 + $0x44] sm:$0xf]
        %v293 = vld [vmem:[%s237 + $0x48] sm:$0xf]
        %v294 = vld [vmem:[%s237 + $0x4c] sm:$0xf]
        %v295 = vld [vmem:[%s237 + $0x50] sm:$0xf]
        %v296 = vld [vmem:[%s237 + $0x54] sm:$0xf]
        %v297 = vld [vmem:[%s237 + $0x58] sm:$0xf]
        %v298 = vld [vmem:[%s237 + $0x5c] sm:$0xf]
        %v299 = vld [vmem:[%s237 + $0x60] sm:$0xf]
        %v300 = vld [vmem:[%s237 + $0x64] sm:$0xf]
        %v301 = vld [vmem:[%s237 + $0x68] sm:$0xf]
        %v302 = vld [vmem:[%s237 + $0x6c] sm:$0xf]
        %v303 = vld [vmem:[%s237 + $0x70] sm:$0xf]
        %v304 = vld [vmem:[%s237 + $0x74] sm:$0xf]
        %v305 = vld [vmem:[%s237 + $0x78] sm:$0xf]
        %v306 = vld [vmem:[%s237 + $0x7c] sm:$0xf]
        %v307 = vunpack.c.l.bf16 %v275
        %v308 = vunpack.c.l.bf16 %v276
        %v309 = vunpack.c.l.bf16 %v277
        %v310 = vunpack.c.l.bf16 %v278
        %v311 = vunpack.c.l.bf16 %v279
        %v312 = vunpack.c.l.bf16 %v280
        %v313 = vunpack.c.l.bf16 %v281
        %v314 = vunpack.c.l.bf16 %v282
        %v315 = vunpack.c.l.bf16 %v283
        %v316 = vunpack.c.l.bf16 %v284
        %v317 = vunpack.c.l.bf16 %v285
        %v318 = vunpack.c.l.bf16 %v286
        %v319 = vunpack.c.l.bf16 %v287
        %v320 = vunpack.c.l.bf16 %v288
        %v321 = vunpack.c.l.bf16 %v289
        %v322 = vunpack.c.l.bf16 %v290
        %v323 = vunpack.c.l.bf16 %v291
        %v324 = vunpack.c.l.bf16 %v292
        %v325 = vunpack.c.l.bf16 %v293
        %v326 = vunpack.c.l.bf16 %v294
        %v327 = vunpack.c.l.bf16 %v295
        %v328 = vunpack.c.l.bf16 %v296
        %v329 = vunpack.c.l.bf16 %v297
        %v330 = vunpack.c.l.bf16 %v298
        %v331 = vunpack.c.l.bf16 %v299
        %v332 = vunpack.c.l.bf16 %v300
        %v333 = vunpack.c.l.bf16 %v301
        %v334 = vunpack.c.l.bf16 %v302
        %v335 = vunpack.c.l.bf16 %v303
        %v336 = vunpack.c.l.bf16 %v304
        %v337 = vunpack.c.l.bf16 %v305
        %v338 = vunpack.c.l.bf16 %v306
        %339 = vadd.xlane.f32.xlu0 %v307
        %v340 = vpop.xlane.xlu0 %339
        %341 = vadd.xlane.f32.xlu0 %v308
        %v342 = vpop.xlane.xlu0 %341
        %343 = vadd.xlane.f32.xlu0 %v309
        %v344 = vpop.xlane.xlu0 %343
        %345 = vadd.xlane.f32.xlu0 %v310
        %v346 = vpop.xlane.xlu0 %345
        %347 = vadd.xlane.f32.xlu0 %v311
        %v348 = vpop.xlane.xlu0 %347
        %349 = vadd.xlane.f32.xlu0 %v312
        %v350 = vpop.xlane.xlu0 %349
        %351 = vadd.xlane.f32.xlu0 %v313
        %v352 = vpop.xlane.xlu0 %351
        %353 = vadd.xlane.f32.xlu0 %v314
        %v354 = vpop.xlane.xlu0 %353
        %355 = vadd.xlane.f32.xlu0 %v315
        %v356 = vpop.xlane.xlu0 %355
        %357 = vadd.xlane.f32.xlu0 %v316
        %v358 = vpop.xlane.xlu0 %357
        %359 = vadd.xlane.f32.xlu0 %v317
        %v360 = vpop.xlane.xlu0 %359
        %361 = vadd.xlane.f32.xlu0 %v318
        %v362 = vpop.xlane.xlu0 %361
        %363 = vadd.xlane.f32.xlu0 %v319
        %v364 = vpop.xlane.xlu0 %363
        %365 = vadd.xlane.f32.xlu0 %v320
        %v366 = vpop.xlane.xlu0 %365
        %367 = vadd.xlane.f32.xlu0 %v321
        %v368 = vpop.xlane.xlu0 %367
        %369 = vadd.xlane.f32.xlu0 %v322
        %v370 = vpop.xlane.xlu0 %369
        %371 = vadd.xlane.f32.xlu0 %v323
        %v372 = vpop.xlane.xlu0 %371
        %373 = vadd.xlane.f32.xlu0 %v324
        %v374 = vpop.xlane.xlu0 %373
        %375 = vadd.xlane.f32.xlu0 %v325
        %v376 = vpop.xlane.xlu0 %375
        %377 = vadd.xlane.f32.xlu0 %v326
        %v378 = vpop.xlane.xlu0 %377
        %379 = vadd.xlane.f32.xlu0 %v327
        %v380 = vpop.xlane.xlu0 %379
        %381 = vadd.xlane.f32.xlu0 %v328
        %v382 = vpop.xlane.xlu0 %381
        %383 = vadd.xlane.f32.xlu0 %v329
        %v384 = vpop.xlane.xlu0 %383
        %385 = vadd.xlane.f32.xlu0 %v330
        %v386 = vpop.xlane.xlu0 %385
        %387 = vadd.xlane.f32.xlu0 %v331
        %v388 = vpop.xlane.xlu0 %387
        %389 = vadd.xlane.f32.xlu0 %v332
        %v390 = vpop.xlane.xlu0 %389
        %391 = vadd.xlane.f32.xlu0 %v333
        %v392 = vpop.xlane.xlu0 %391
        %393 = vadd.xlane.f32.xlu0 %v334
        %v394 = vpop.xlane.xlu0 %393
        %395 = vadd.xlane.f32.xlu0 %v335
        %v396 = vpop.xlane.xlu0 %395
        %397 = vadd.xlane.f32.xlu0 %v336
        %v398 = vpop.xlane.xlu0 %397
        %399 = vadd.xlane.f32.xlu0 %v337
        %v400 = vpop.xlane.xlu0 %399
        %401 = vadd.xlane.f32.xlu0 %v338
        %v402 = vpop.xlane.xlu0 %401
        %v403 = vmul.f32 %v307, %v340
        %v404 = vmul.f32 %v308, %v342
        %v405 = vmul.f32 %v309, %v344
        %v406 = vmul.f32 %v310, %v346
        %v407 = vmul.f32 %v311, %v348
        %v408 = vmul.f32 %v312, %v350
        %v409 = vmul.f32 %v313, %v352
        %v410 = vmul.f32 %v314, %v354
        %v411 = vmul.f32 %v315, %v356
        %v412 = vmul.f32 %v316, %v358
        %v413 = vmul.f32 %v317, %v360
        %v414 = vmul.f32 %v318, %v362
        %v415 = vmul.f32 %v319, %v364
        %v416 = vmul.f32 %v320, %v366
        %v417 = vmul.f32 %v321, %v368
        %v418 = vmul.f32 %v322, %v370
        %v419 = vmul.f32 %v323, %v372
        %v420 = vmul.f32 %v324, %v374
        %v421 = vmul.f32 %v325, %v376
        %v422 = vmul.f32 %v326, %v378
        %v423 = vmul.f32 %v327, %v380
        %v424 = vmul.f32 %v328, %v382
        %v425 = vmul.f32 %v329, %v384
        %v426 = vmul.f32 %v330, %v386
        %v427 = vmul.f32 %v331, %v388
        %v428 = vmul.f32 %v332, %v390
        %v429 = vmul.f32 %v333, %v392
        %v430 = vmul.f32 %v334, %v394
        %v431 = vmul.f32 %v335, %v396
        %v432 = vmul.f32 %v336, %v398
        %v433 = vmul.f32 %v337, %v400
        %v434 = vmul.f32 %v338, %v402
        %v435 = vmax.f32 %v403, 0.0
        %v436 = vmax.f32 %v404, 0.0
        %v437 = vmax.f32 %v405, 0.0
        %v438 = vmax.f32 %v406, 0.0
        %v439 = vmax.f32 %v407, 0.0
        %v440 = vmax.f32 %v408, 0.0
        %v441 = vmax.f32 %v409, 0.0
        %v442 = vmax.f32 %v410, 0.0
        %v443 = vmax.f32 %v411, 0.0
        %v444 = vmax.f32 %v412, 0.0
        %v445 = vmax.f32 %v413, 0.0
        %v446 = vmax.f32 %v414, 0.0
        %v447 = vmax.f32 %v415, 0.0
        %v448 = vmax.f32 %v416, 0.0
        %v449 = vmax.f32 %v417, 0.0
        %v450 = vmax.f32 %v418, 0.0
        %v451 = vmax.f32 %v419, 0.0
        %v452 = vmax.f32 %v420, 0.0
        %v453 = vmax.f32 %v421, 0.0
        %v454 = vmax.f32 %v422, 0.0
        %v455 = vmax.f32 %v423, 0.0
        %v456 = vmax.f32 %v424, 0.0
        %v457 = vmax.f32 %v425, 0.0
        %v458 = vmax.f32 %v426, 0.0
        %v459 = vmax.f32 %v427, 0.0
        %v460 = vmax.f32 %v428, 0.0
        %v461 = vmax.f32 %v429, 0.0
        %v462 = vmax.f32 %v430, 0.0
        %v463 = vmax.f32 %v431, 0.0
        %v464 = vmax.f32 %v432, 0.0
        %v465 = vmax.f32 %v433, 0.0
        %v466 = vmax.f32 %v434, 0.0
        %v467 = vld [vmem:[#allocation5] sm:$0xf]
        %v468 = vld [vmem:[#allocation5 + $0x4] sm:$0xf]
        %v469 = vld [vmem:[#allocation5 + $0x8] sm:$0xf]
        %v470 = vld [vmem:[#allocation5 + $0xc] sm:$0xf]
        %v471 = vld [vmem:[#allocation5 + $0x10] sm:$0xf]
        %v472 = vld [vmem:[#allocation5 + $0x14] sm:$0xf]
        %v473 = vld [vmem:[#allocation5 + $0x18] sm:$0xf]
        %v474 = vld [vmem:[#allocation5 + $0x1c] sm:$0xf]
        %v475 = vld [vmem:[#allocation5 + $0x20] sm:$0xf]
        %v476 = vld [vmem:[#allocation5 + $0x24] sm:$0xf]
        %v477 = vld [vmem:[#allocation5 + $0x28] sm:$0xf]
        %v478 = vld [vmem:[#allocation5 + $0x2c] sm:$0xf]
        %v479 = vld [vmem:[#allocation5 + $0x30] sm:$0xf]
        %v480 = vld [vmem:[#allocation5 + $0x34] sm:$0xf]
        %v481 = vld [vmem:[#allocation5 + $0x38] sm:$0xf]
        %v482 = vld [vmem:[#allocation5 + $0x3c] sm:$0xf]
        %v483 = vld [vmem:[%s2] sm:$0x1]
        %v485 = vlaneseq
        %v486 = vshrl.u32 %v485, 7
        %v487 = vsub.s32 0, %v486
        %v488 = vrot.slane %v483, %v487
        %v522 = vunpack.c.l.b16 %v275
        %v523 = vunpack.c.l.b16 %v276
        %v524 = vunpack.c.l.b16 %v277
        %v525 = vunpack.c.l.b16 %v278
        %v526 = vunpack.c.l.b16 %v279
        %v527 = vunpack.c.l.b16 %v280
        %v528 = vunpack.c.l.b16 %v281
        %v529 = vunpack.c.l.b16 %v282
        %v530 = vunpack.c.l.b16 %v283
        %v531 = vunpack.c.l.b16 %v284
        %v532 = vunpack.c.l.b16 %v285
        %v533 = vunpack.c.l.b16 %v286
        %v534 = vunpack.c.l.b16 %v287
        %v535 = vunpack.c.l.b16 %v288
        %v536 = vunpack.c.l.b16 %v289
        %v537 = vunpack.c.l.b16 %v290
        %v538 = vunpack.c.l.b16 %v291
        %v539 = vunpack.c.l.b16 %v292
        %v540 = vunpack.c.l.b16 %v293
        %v541 = vunpack.c.l.b16 %v294
        %v542 = vunpack.c.l.b16 %v295
        %v543 = vunpack.c.l.b16 %v296
        %v544 = vunpack.c.l.b16 %v297
        %v545 = vunpack.c.l.b16 %v298
        %v546 = vunpack.c.l.b16 %v299
        %v547 = vunpack.c.l.b16 %v300
        %v548 = vunpack.c.l.b16 %v301
        %v549 = vunpack.c.l.b16 %v302
        %v550 = vunpack.c.l.b16 %v303
        %v551 = vunpack.c.l.b16 %v304
        %v552 = vunpack.c.l.b16 %v305
        %v553 = vunpack.c.l.b16 %v306
        %v554 = vpack.c.b16 %v523, %v522
        %v555 = vpack.c.b16 %v525, %v524
        %v556 = vpack.c.b16 %v527, %v526
        %v557 = vpack.c.b16 %v529, %v528
        %v558 = vpack.c.b16 %v531, %v530
        %v559 = vpack.c.b16 %v533, %v532
        %v560 = vpack.c.b16 %v535, %v534
        %v561 = vpack.c.b16 %v537, %v536
        %v562 = vpack.c.b16 %v539, %v538
        %v563 = vpack.c.b16 %v541, %v540
        %v564 = vpack.c.b16 %v543, %v542
        %v565 = vpack.c.b16 %v545, %v544
        %v566 = vpack.c.b16 %v547, %v546
        %v567 = vpack.c.b16 %v549, %v548
        %v568 = vpack.c.b16 %v551, %v550
        %v569 = vpack.c.b16 %v553, %v552
        %v602 = vunpack.c.l.b16 %v467
        %v603 = vunpack.c.l.b16 %v468
        %v604 = vunpack.c.l.b16 %v469
        %v605 = vunpack.c.l.b16 %v470
        %v606 = vunpack.c.l.b16 %v471
        %v607 = vunpack.c.l.b16 %v472
        %v608 = vunpack.c.l.b16 %v473
        %v609 = vunpack.c.l.b16 %v474
        %v610 = vunpack.c.l.b16 %v475
        %v611 = vunpack.c.l.b16 %v476
        %v612 = vunpack.c.l.b16 %v477
        %v613 = vunpack.c.l.b16 %v478
        %v614 = vunpack.c.l.b16 %v479
        %v615 = vunpack.c.l.b16 %v480
        %v616 = vunpack.c.l.b16 %v481
        %v617 = vunpack.c.l.b16 %v482
        %v618 = vpack.c.b16 %v603, %v602
        %v619 = vpack.c.b16 %v605, %v604
        %v620 = vpack.c.b16 %v607, %v606
        %v621 = vpack.c.b16 %v609, %v608
        %v622 = vpack.c.b16 %v611, %v610
        %v623 = vpack.c.b16 %v613, %v612
        %v624 = vpack.c.b16 %v615, %v614
        %v625 = vpack.c.b16 %v617, %v616
        %634 = vmatprep.subr.bf16.mxu0 0
        %635 = vmatpush1.bf16.msra.mxu0 %v618
        %636 = vmatprep.subr.bf16.mxu0 0
        %637 = vmatpush1.bf16.msra.mxu0 %v619
        %638 = vmatprep.subr.bf16.mxu0 0
        %639 = vmatpush1.bf16.msra.mxu0 %v620
        %640 = vmatprep.subr.bf16.mxu0 0
        %641 = vmatpush1.bf16.msra.mxu0 %v621
        %642 = vmatprep.subr.bf16.mxu0 0
        %643 = vmatpush1.bf16.msra.mxu0 %v622
        %644 = vmatprep.subr.bf16.mxu0 0
        %645 = vmatpush1.bf16.msra.mxu0 %v623
        %646 = vmatprep.subr.bf16.mxu0 0
        %647 = vmatpush1.bf16.msra.mxu0 %v624
        %648 = vmatprep.subr.bf16.mxu0 0
        %649 = vmatpush1.bf16.msra.mxu0 %v625
        %650 = vmatprep.subr.bf16.mxu0 0
        %651 = vmatpush1.bf16.msra.mxu0 0
        %652 = vmatprep.subr.bf16.mxu0 0
        %653 = vmatpush1.bf16.msra.mxu0 0
        %654 = vmatprep.subr.bf16.mxu0 0
        %655 = vmatpush1.bf16.msra.mxu0 0
        %656 = vmatprep.subr.bf16.mxu0 0
        %657 = vmatpush1.bf16.msra.mxu0 0
        %658 = vmatprep.subr.bf16.mxu0 0
        %659 = vmatpush1.bf16.msra.mxu0 0
        %660 = vmatprep.subr.bf16.mxu0 0
        %661 = vmatpush1.bf16.msra.mxu0 0
        %662 = vmatprep.subr.bf16.mxu0 0
        %663 = vmatpush1.bf16.msra.mxu0 0
        %664 = vmatprep.subr.bf16.mxu0 0
        %665 = vmatpush1.bf16.msra.mxu0 0
        %666 = vmatprep.mubr.bf16.mxu0 0
        %667 = vmatmul.mubr.bf16.gmra.mrb[0].mxu0 %v554
        %v668 = vpop.f32.mrb[0].mxu0
        %v669 = vadd.f32 %v488, %v668
        %v670 = vpop.f32.mrb[0].mxu0
        %v671 = vpop.f32.mrb[0].mxu0
        %v672 = vadd.f32 %v488, %v671
        %v673 = vpop.f32.mrb[0].mxu0
        %674 = vmatprep.mubr.bf16.mxu0 0
        %675 = vmatmul.mubr.bf16.gmra.mrb[0].mxu0 %v555
        %v676 = vpop.f32.mrb[0].mxu0
        %v677 = vadd.f32 %v488, %v676
        %v678 = vpop.f32.mrb[0].mxu0
        %v679 = vpop.f32.mrb[0].mxu0
        %v680 = vadd.f32 %v488, %v679
        %v681 = vpop.f32.mrb[0].mxu0
        %682 = vmatprep.mubr.bf16.mxu0 0
        %683 = vmatmul.mubr.bf16.gmra.mrb[0].mxu0 %v556
        %v684 = vpop.f32.mrb[0].mxu0
        %v685 = vadd.f32 %v488, %v684
        %v686 = vpop.f32.mrb[0].mxu0
        %v687 = vpop.f32.mrb[0].mxu0
        %v688 = vadd.f32 %v488, %v687
        %v689 = vpop.f32.mrb[0].mxu0
        %690 = vmatprep.mubr.bf16.mxu0 0
        %691 = vmatmul.mubr.bf16.gmra.mrb[0].mxu0 %v557
        %v692 = vpop.f32.mrb[0].mxu0
        %v693 = vadd.f32 %v488, %v692
        %v694 = vpop.f32.mrb[0].mxu0
        %v695 = vpop.f32.mrb[0].mxu0
        %v696 = vadd.f32 %v488, %v695
        %v697 = vpop.f32.mrb[0].mxu0
        %698 = vmatprep.mubr.bf16.mxu0 0
        %699 = vmatmul.mubr.bf16.gmra.mrb[0].mxu0 %v558
        %v700 = vpop.f32.mrb[0].mxu0
        %v701 = vadd.f32 %v488, %v700
        %v702 = vpop.f32.mrb[0].mxu0
        %v703 = vpop.f32.mrb[0].mxu0
        %v704 = vadd.f32 %v488, %v703
        %v705 = vpop.f32.mrb[0].mxu0
        %706 = vmatprep.mubr.bf16.mxu0 0
        %707 = vmatmul.mubr.bf16.gmra.mrb[0].mxu0 %v559
        %v708 = vpop.f32.mrb[0].mxu0
        %v709 = vadd.f32 %v488, %v708
        %v710 = vpop.f32.mrb[0].mxu0
        %v711 = vpop.f32.mrb[0].mxu0
        %v712 = vadd.f32 %v488, %v711
        %v713 = vpop.f32.mrb[0].mxu0
        %714 = vmatprep.mubr.bf16.mxu0 0
        %715 = vmatmul.mubr.bf16.gmra.mrb[0].mxu0 %v560
        %v716 = vpop.f32.mrb[0].mxu0
        %v717 = vadd.f32 %v488, %v716
        %v718 = vpop.f32.mrb[0].mxu0
        %v719 = vpop.f32.mrb[0].mxu0
        %v720 = vadd.f32 %v488, %v719
        %v721 = vpop.f32.mrb[0].mxu0
        %722 = vmatprep.mubr.bf16.mxu0 0
        %723 = vmatmul.mubr.bf16.gmra.mrb[0].mxu0 %v561
        %v724 = vpop.f32.mrb[0].mxu0
        %v725 = vadd.f32 %v488, %v724
        %v726 = vpop.f32.mrb[0].mxu0
        %v727 = vpop.f32.mrb[0].mxu0
        %v728 = vadd.f32 %v488, %v727
        %v729 = vpop.f32.mrb[0].mxu0
        %730 = vmatprep.mubr.bf16.mxu0 0
        %731 = vmatmul.mubr.bf16.gmra.mrb[0].mxu0 %v562
        %v732 = vpop.f32.mrb[0].mxu0
        %v733 = vadd.f32 %v488, %v732
        %v734 = vpop.f32.mrb[0].mxu0
        %v735 = vpop.f32.mrb[0].mxu0
        %v736 = vadd.f32 %v488, %v735
        %v737 = vpop.f32.mrb[0].mxu0
        %738 = vmatprep.mubr.bf16.mxu0 0
        %739 = vmatmul.mubr.bf16.gmra.mrb[0].mxu0 %v563
        %v740 = vpop.f32.mrb[0].mxu0
        %v741 = vadd.f32 %v488, %v740
        %v742 = vpop.f32.mrb[0].mxu0
        %v743 = vpop.f32.mrb[0].mxu0
        %v744 = vadd.f32 %v488, %v743
        %v745 = vpop.f32.mrb[0].mxu0
        %746 = vmatprep.mubr.bf16.mxu0 0
        %747 = vmatmul.mubr.bf16.gmra.mrb[0].mxu0 %v564
        %v748 = vpop.f32.mrb[0].mxu0
        %v749 = vadd.f32 %v488, %v748
        %v750 = vpop.f32.mrb[0].mxu0
        %v751 = vpop.f32.mrb[0].mxu0
        %v752 = vadd.f32 %v488, %v751
        %v753 = vpop.f32.mrb[0].mxu0
        %754 = vmatprep.mubr.bf16.mxu0 0
        %755 = vmatmul.mubr.bf16.gmra.mrb[0].mxu0 %v565
        %v756 = vpop.f32.mrb[0].mxu0
        %v757 = vadd.f32 %v488, %v756
        %v758 = vpop.f32.mrb[0].mxu0
        %v759 = vpop.f32.mrb[0].mxu0
        %v760 = vadd.f32 %v488, %v759
        %v761 = vpop.f32.mrb[0].mxu0
        %762 = vmatprep.mubr.bf16.mxu0 0
        %763 = vmatmul.mubr.bf16.gmra.mrb[0].mxu0 %v566
        %v764 = vpop.f32.mrb[0].mxu0
        %v765 = vadd.f32 %v488, %v764
        %v766 = vpop.f32.mrb[0].mxu0
        %v767 = vpop.f32.mrb[0].mxu0
        %v768 = vadd.f32 %v488, %v767
        %v769 = vpop.f32.mrb[0].mxu0
        %770 = vmatprep.mubr.bf16.mxu0 0
        %771 = vmatmul.mubr.bf16.gmra.mrb[0].mxu0 %v567
        %v772 = vpop.f32.mrb[0].mxu0
        %v773 = vadd.f32 %v488, %v772
        %v774 = vpop.f32.mrb[0].mxu0
        %v775 = vpop.f32.mrb[0].mxu0
        %v776 = vadd.f32 %v488, %v775
        %v777 = vpop.f32.mrb[0].mxu0
        %778 = vmatprep.mubr.bf16.mxu0 0
        %779 = vmatmul.mubr.bf16.gmra.mrb[0].mxu0 %v568
        %v780 = vpop.f32.mrb[0].mxu0
        %v781 = vadd.f32 %v488, %v780
        %v782 = vpop.f32.mrb[0].mxu0
        %v783 = vpop.f32.mrb[0].mxu0
        %v784 = vadd.f32 %v488, %v783
        %v785 = vpop.f32.mrb[0].mxu0
        %786 = vmatprep.mubr.bf16.mxu0 0
        %787 = vmatmul.mubr.bf16.gmra.mrb[0].mxu0 %v569
        %v788 = vpop.f32.mrb[0].mxu0
        %v789 = vadd.f32 %v488, %v788
        %v790 = vpop.f32.mrb[0].mxu0
        %v791 = vpop.f32.mrb[0].mxu0
        %v792 = vadd.f32 %v488, %v791
        %v793 = vpop.f32.mrb[0].mxu0
        %794 = vdwg.mxu0
        %v795 = vmax.f32 %v669, 0.0
        %v796 = vmax.f32 %v672, 0.0
        %v797 = vmax.f32 %v677, 0.0
        %v798 = vmax.f32 %v680, 0.0
        %v799 = vmax.f32 %v685, 0.0
        %v800 = vmax.f32 %v688, 0.0
        %v801 = vmax.f32 %v693, 0.0
        %v802 = vmax.f32 %v696, 0.0
        %v803 = vmax.f32 %v701, 0.0
        %v804 = vmax.f32 %v704, 0.0
        %v805 = vmax.f32 %v709, 0.0
        %v806 = vmax.f32 %v712, 0.0
        %v807 = vmax.f32 %v717, 0.0
        %v808 = vmax.f32 %v720, 0.0
        %v809 = vmax.f32 %v725, 0.0
        %v810 = vmax.f32 %v728, 0.0
        %v811 = vmax.f32 %v733, 0.0
        %v812 = vmax.f32 %v736, 0.0
        %v813 = vmax.f32 %v741, 0.0
        %v814 = vmax.f32 %v744, 0.0
        %v815 = vmax.f32 %v749, 0.0
        %v816 = vmax.f32 %v752, 0.0
        %v817 = vmax.f32 %v757, 0.0
        %v818 = vmax.f32 %v760, 0.0
        %v819 = vmax.f32 %v765, 0.0
        %v820 = vmax.f32 %v768, 0.0
        %v821 = vmax.f32 %v773, 0.0
        %v822 = vmax.f32 %v776, 0.0
        %v823 = vmax.f32 %v781, 0.0
        %v824 = vmax.f32 %v784, 0.0
        %v825 = vmax.f32 %v789, 0.0
        %v826 = vmax.f32 %v792, 0.0
        %v827 = vpack.c.bf16 %v796, %v795
        %v828 = vpack.c.bf16 %v798, %v797
        %v829 = vpack.c.bf16 %v800, %v799
        %v830 = vpack.c.bf16 %v802, %v801
        %v831 = vpack.c.bf16 %v804, %v803
        %v832 = vpack.c.bf16 %v806, %v805
        %v833 = vpack.c.bf16 %v808, %v807
        %v834 = vpack.c.bf16 %v810, %v809
        %v835 = vpack.c.bf16 %v812, %v811
        %v836 = vpack.c.bf16 %v814, %v813
        %v837 = vpack.c.bf16 %v816, %v815
        %v838 = vpack.c.bf16 %v818, %v817
        %v839 = vpack.c.bf16 %v820, %v819
        %v840 = vpack.c.bf16 %v822, %v821
        %v841 = vpack.c.bf16 %v824, %v823
        %v842 = vpack.c.bf16 %v826, %v825
        %s843 = scalar_lea.vmem [#allocation5], 64
        %v844 = vld [vmem:[%s843] sm:$0xf]
        %v845 = vld [vmem:[%s843 + $0x4] sm:$0xf]
        %v846 = vld [vmem:[%s843 + $0x8] sm:$0xf]
        %v847 = vld [vmem:[%s843 + $0xc] sm:$0xf]
        %v848 = vld [vmem:[%s843 + $0x10] sm:$0xf]
        %v849 = vld [vmem:[%s843 + $0x14] sm:$0xf]
        %v850 = vld [vmem:[%s843 + $0x18] sm:$0xf]
        %v851 = vld [vmem:[%s843 + $0x1c] sm:$0xf]
        %v852 = vld [vmem:[%s843 + $0x20] sm:$0xf]
        %v853 = vld [vmem:[%s843 + $0x24] sm:$0xf]
        %v854 = vld [vmem:[%s843 + $0x28] sm:$0xf]
        %v855 = vld [vmem:[%s843 + $0x2c] sm:$0xf]
        %v856 = vld [vmem:[%s843 + $0x30] sm:$0xf]
        %v857 = vld [vmem:[%s843 + $0x34] sm:$0xf]
        %v858 = vld [vmem:[%s843 + $0x38] sm:$0xf]
        %v859 = vld [vmem:[%s843 + $0x3c] sm:$0xf]
        %s860 = scalar_lea.vmem %s2, 1
        %v861 = vld [vmem:[%s860] sm:$0x1]
        %v863 = vlaneseq
        %v864 = vshrl.u32 %v863, 7
        %v865 = vsub.s32 0, %v864
        %v866 = vrot.slane %v861, %v865
        %v884 = vunpack.c.l.b16 %v844
        %v885 = vunpack.c.l.b16 %v845
        %v886 = vunpack.c.l.b16 %v846
        %v887 = vunpack.c.l.b16 %v847
        %v888 = vunpack.c.l.b16 %v848
        %v889 = vunpack.c.l.b16 %v849
        %v890 = vunpack.c.l.b16 %v850
        %v891 = vunpack.c.l.b16 %v851
        %v892 = vunpack.c.l.b16 %v852
        %v893 = vunpack.c.l.b16 %v853
        %v894 = vunpack.c.l.b16 %v854
        %v895 = vunpack.c.l.b16 %v855
        %v896 = vunpack.c.l.b16 %v856
        %v897 = vunpack.c.l.b16 %v857
        %v898 = vunpack.c.l.b16 %v858
        %v899 = vunpack.c.l.b16 %v859
        %v900 = vpack.c.b16 %v885, %v884
        %v901 = vpack.c.b16 %v887, %v886
        %v902 = vpack.c.b16 %v889, %v888
        %v903 = vpack.c.b16 %v891, %v890
        %v904 = vpack.c.b16 %v893, %v892
        %v905 = vpack.c.b16 %v895, %v894
        %v906 = vpack.c.b16 %v897, %v896
        %v907 = vpack.c.b16 %v899, %v898
        %916 = vmatprep.subr.bf16.mxu0 0
        %917 = vmatpush1.bf16.msra.mxu0 %v900
        %918 = vmatprep.subr.bf16.mxu0 0
        %919 = vmatpush1.bf16.msra.mxu0 %v901
        %920 = vmatprep.subr.bf16.mxu0 0
        %921 = vmatpush1.bf16.msra.mxu0 %v902
        %922 = vmatprep.subr.bf16.mxu0 0
        %923 = vmatpush1.bf16.msra.mxu0 %v903
        %924 = vmatprep.subr.bf16.mxu0 0
        %925 = vmatpush1.bf16.msra.mxu0 %v904
        %926 = vmatprep.subr.bf16.mxu0 0
        %927 = vmatpush1.bf16.msra.mxu0 %v905
        %928 = vmatprep.subr.bf16.mxu0 0
        %929 = vmatpush1.bf16.msra.mxu0 %v906
        %930 = vmatprep.subr.bf16.mxu0 0
        %931 = vmatpush1.bf16.msra.mxu0 %v907
        %932 = vmatprep.subr.bf16.mxu0 0
        %933 = vmatpush1.bf16.msra.mxu0 0
        %934 = vmatprep.subr.bf16.mxu0 0
        %935 = vmatpush1.bf16.msra.mxu0 0
        %936 = vmatprep.subr.bf16.mxu0 0
        %937 = vmatpush1.bf16.msra.mxu0 0
        %938 = vmatprep.subr.bf16.mxu0 0
        %939 = vmatpush1.bf16.msra.mxu0 0
        %940 = vmatprep.subr.bf16.mxu0 0
        %941 = vmatpush1.bf16.msra.mxu0 0
        %942 = vmatprep.subr.bf16.mxu0 0
        %943 = vmatpush1.bf16.msra.mxu0 0
        %944 = vmatprep.subr.bf16.mxu0 0
        %945 = vmatpush1.bf16.msra.mxu0 0
        %946 = vmatprep.subr.bf16.mxu0 0
        %947 = vmatpush1.bf16.msra.mxu0 0
        %948 = vmatprep.mubr.bf16.mxu0 0
        %949 = vmatmul.mubr.bf16.gmra.mrb[0].mxu0 %v827
        %v950 = vpop.f32.mrb[0].mxu0
        %v951 = vadd.f32 %v866, %v950
        %v952 = vpop.f32.mrb[0].mxu0
        %v953 = vpop.f32.mrb[0].mxu0
        %v954 = vadd.f32 %v866, %v953
        %v955 = vpop.f32.mrb[0].mxu0
        %956 = vmatprep.mubr.bf16.mxu0 0
        %957 = vmatmul.mubr.bf16.gmra.mrb[0].mxu0 %v828
        %v958 = vpop.f32.mrb[0].mxu0
        %v959 = vadd.f32 %v866, %v958
        %v960 = vpop.f32.mrb[0].mxu0
        %v961 = vpop.f32.mrb[0].mxu0
        %v962 = vadd.f32 %v866, %v961
        %v963 = vpop.f32.mrb[0].mxu0
        %964 = vmatprep.mubr.bf16.mxu0 0
        %965 = vmatmul.mubr.bf16.gmra.mrb[0].mxu0 %v829
        %v966 = vpop.f32.mrb[0].mxu0
        %v967 = vadd.f32 %v866, %v966
        %v968 = vpop.f32.mrb[0].mxu0
        %v969 = vpop.f32.mrb[0].mxu0
        %v970 = vadd.f32 %v866, %v969
        %v971 = vpop.f32.mrb[0].mxu0
        %972 = vmatprep.mubr.bf16.mxu0 0
        %973 = vmatmul.mubr.bf16.gmra.mrb[0].mxu0 %v830
        %v974 = vpop.f32.mrb[0].mxu0
        %v975 = vadd.f32 %v866, %v974
        %v976 = vpop.f32.mrb[0].mxu0
        %v977 = vpop.f32.mrb[0].mxu0
        %v978 = vadd.f32 %v866, %v977
        %v979 = vpop.f32.mrb[0].mxu0
        %980 = vmatprep.mubr.bf16.mxu0 0
        %981 = vmatmul.mubr.bf16.gmra.mrb[0].mxu0 %v831
        %v982 = vpop.f32.mrb[0].mxu0
        %v983 = vadd.f32 %v866, %v982
        %v984 = vpop.f32.mrb[0].mxu0
        %v985 = vpop.f32.mrb[0].mxu0
        %v986 = vadd.f32 %v866, %v985
        %v987 = vpop.f32.mrb[0].mxu0
        %988 = vmatprep.mubr.bf16.mxu0 0
        %989 = vmatmul.mubr.bf16.gmra.mrb[0].mxu0 %v832
        %v990 = vpop.f32.mrb[0].mxu0
        %v991 = vadd.f32 %v866, %v990
        %v992 = vpop.f32.mrb[0].mxu0
        %v993 = vpop.f32.mrb[0].mxu0
        %v994 = vadd.f32 %v866, %v993
        %v995 = vpop.f32.mrb[0].mxu0
        %996 = vmatprep.mubr.bf16.mxu0 0
        %997 = vmatmul.mubr.bf16.gmra.mrb[0].mxu0 %v833
        %v998 = vpop.f32.mrb[0].mxu0
        %v999 = vadd.f32 %v866, %v998
        %v1000 = vpop.f32.mrb[0].mxu0
        %v1001 = vpop.f32.mrb[0].mxu0
        %v1002 = vadd.f32 %v866, %v1001
        %v1003 = vpop.f32.mrb[0].mxu0
        %1004 = vmatprep.mubr.bf16.mxu0 0
        %1005 = vmatmul.mubr.bf16.gmra.mrb[0].mxu0 %v834
        %v1006 = vpop.f32.mrb[0].mxu0
        %v1007 = vadd.f32 %v866, %v1006
        %v1008 = vpop.f32.mrb[0].mxu0
        %v1009 = vpop.f32.mrb[0].mxu0
        %v1010 = vadd.f32 %v866, %v1009
        %v1011 = vpop.f32.mrb[0].mxu0
        %1012 = vmatprep.mubr.bf16.mxu0 0
        %1013 = vmatmul.mubr.bf16.gmra.mrb[0].mxu0 %v835
        %v1014 = vpop.f32.mrb[0].mxu0
        %v1015 = vadd.f32 %v866, %v1014
        %v1016 = vpop.f32.mrb[0].mxu0
        %v1017 = vpop.f32.mrb[0].mxu0
        %v1018 = vadd.f32 %v866, %v1017
        %v1019 = vpop.f32.mrb[0].mxu0
        %1020 = vmatprep.mubr.bf16.mxu0 0
        %1021 = vmatmul.mubr.bf16.gmra.mrb[0].mxu0 %v836
        %v1022 = vpop.f32.mrb[0].mxu0
        %v1023 = vadd.f32 %v866, %v1022
        %v1024 = vpop.f32.mrb[0].mxu0
        %v1025 = vpop.f32.mrb[0].mxu0
        %v1026 = vadd.f32 %v866, %v1025
        %v1027 = vpop.f32.mrb[0].mxu0
        %1028 = vmatprep.mubr.bf16.mxu0 0
        %1029 = vmatmul.mubr.bf16.gmra.mrb[0].mxu0 %v837
        %v1030 = vpop.f32.mrb[0].mxu0
        %v1031 = vadd.f32 %v866, %v1030
        %v1032 = vpop.f32.mrb[0].mxu0
        %v1033 = vpop.f32.mrb[0].mxu0
        %v1034 = vadd.f32 %v866, %v1033
        %v1035 = vpop.f32.mrb[0].mxu0
        %1036 = vmatprep.mubr.bf16.mxu0 0
        %1037 = vmatmul.mubr.bf16.gmra.mrb[0].mxu0 %v838
        %v1038 = vpop.f32.mrb[0].mxu0
        %v1039 = vadd.f32 %v866, %v1038
        %v1040 = vpop.f32.mrb[0].mxu0
        %v1041 = vpop.f32.mrb[0].mxu0
        %v1042 = vadd.f32 %v866, %v1041
        %v1043 = vpop.f32.mrb[0].mxu0
        %1044 = vmatprep.mubr.bf16.mxu0 0
        %1045 = vmatmul.mubr.bf16.gmra.mrb[0].mxu0 %v839
        %v1046 = vpop.f32.mrb[0].mxu0
        %v1047 = vadd.f32 %v866, %v1046
        %v1048 = vpop.f32.mrb[0].mxu0
        %v1049 = vpop.f32.mrb[0].mxu0
        %v1050 = vadd.f32 %v866, %v1049
        %v1051 = vpop.f32.mrb[0].mxu0
        %1052 = vmatprep.mubr.bf16.mxu0 0
        %1053 = vmatmul.mubr.bf16.gmra.mrb[0].mxu0 %v840
        %v1054 = vpop.f32.mrb[0].mxu0
        %v1055 = vadd.f32 %v866, %v1054
        %v1056 = vpop.f32.mrb[0].mxu0
        %v1057 = vpop.f32.mrb[0].mxu0
        %v1058 = vadd.f32 %v866, %v1057
        %v1059 = vpop.f32.mrb[0].mxu0
        %1060 = vmatprep.mubr.bf16.mxu0 0
        %1061 = vmatmul.mubr.bf16.gmra.mrb[0].mxu0 %v841
        %v1062 = vpop.f32.mrb[0].mxu0
        %v1063 = vadd.f32 %v866, %v1062
        %v1064 = vpop.f32.mrb[0].mxu0
        %v1065 = vpop.f32.mrb[0].mxu0
        %v1066 = vadd.f32 %v866, %v1065
        %v1067 = vpop.f32.mrb[0].mxu0
        %1068 = vmatprep.mubr.bf16.mxu0 0
        %1069 = vmatmul.mubr.bf16.gmra.mrb[0].mxu0 %v842
        %v1070 = vpop.f32.mrb[0].mxu0
        %v1071 = vadd.f32 %v866, %v1070
        %v1072 = vpop.f32.mrb[0].mxu0
        %v1073 = vpop.f32.mrb[0].mxu0
        %v1074 = vadd.f32 %v866, %v1073
        %v1075 = vpop.f32.mrb[0].mxu0
        %1076 = vdwg.mxu0
        %v1077 = vmax.f32 %v951, 0.0
        %v1078 = vmax.f32 %v954, 0.0
        %v1079 = vmax.f32 %v959, 0.0
        %v1080 = vmax.f32 %v962, 0.0
        %v1081 = vmax.f32 %v967, 0.0
        %v1082 = vmax.f32 %v970, 0.0
        %v1083 = vmax.f32 %v975, 0.0
        %v1084 = vmax.f32 %v978, 0.0
        %v1085 = vmax.f32 %v983, 0.0
        %v1086 = vmax.f32 %v986, 0.0
        %v1087 = vmax.f32 %v991, 0.0
        %v1088 = vmax.f32 %v994, 0.0
        %v1089 = vmax.f32 %v999, 0.0
        %v1090 = vmax.f32 %v1002, 0.0
        %v1091 = vmax.f32 %v1007, 0.0
        %v1092 = vmax.f32 %v1010, 0.0
        %v1093 = vmax.f32 %v1015, 0.0
        %v1094 = vmax.f32 %v1018, 0.0
        %v1095 = vmax.f32 %v1023, 0.0
        %v1096 = vmax.f32 %v1026, 0.0
        %v1097 = vmax.f32 %v1031, 0.0
        %v1098 = vmax.f32 %v1034, 0.0
        %v1099 = vmax.f32 %v1039, 0.0
        %v1100 = vmax.f32 %v1042, 0.0
        %v1101 = vmax.f32 %v1047, 0.0
        %v1102 = vmax.f32 %v1050, 0.0
        %v1103 = vmax.f32 %v1055, 0.0
        %v1104 = vmax.f32 %v1058, 0.0
        %v1105 = vmax.f32 %v1063, 0.0
        %v1106 = vmax.f32 %v1066, 0.0
        %v1107 = vmax.f32 %v1071, 0.0
        %v1108 = vmax.f32 %v1074, 0.0
        %v1109 = vpack.c.bf16 %v1078, %v1077
        %v1110 = vpack.c.bf16 %v1080, %v1079
        %v1111 = vpack.c.bf16 %v1082, %v1081
        %v1112 = vpack.c.bf16 %v1084, %v1083
        %v1113 = vpack.c.bf16 %v1086, %v1085
        %v1114 = vpack.c.bf16 %v1088, %v1087
        %v1115 = vpack.c.bf16 %v1090, %v1089
        %v1116 = vpack.c.bf16 %v1092, %v1091
        %v1117 = vpack.c.bf16 %v1094, %v1093
        %v1118 = vpack.c.bf16 %v1096, %v1095
        %v1119 = vpack.c.bf16 %v1098, %v1097
        %v1120 = vpack.c.bf16 %v1100, %v1099
        %v1121 = vpack.c.bf16 %v1102, %v1101
        %v1122 = vpack.c.bf16 %v1104, %v1103
        %v1123 = vpack.c.bf16 %v1106, %v1105
        %v1124 = vpack.c.bf16 %v1108, %v1107
        %s1125 = scalar_lea.vmem [#allocation5], 128
        %v1126 = vld [vmem:[%s1125] sm:$0xf]
        %v1127 = vld [vmem:[%s1125 + $0x4] sm:$0xf]
        %v1128 = vld [vmem:[%s1125 + $0x8] sm:$0xf]
        %v1129 = vld [vmem:[%s1125 + $0xc] sm:$0xf]
        %v1130 = vld [vmem:[%s1125 + $0x10] sm:$0xf]
        %v1131 = vld [vmem:[%s1125 + $0x14] sm:$0xf]
        %v1132 = vld [vmem:[%s1125 + $0x18] sm:$0xf]
        %v1133 = vld [vmem:[%s1125 + $0x1c] sm:$0xf]
        %v1134 = vld [vmem:[%s1125 + $0x20] sm:$0xf]
        %v1135 = vld [vmem:[%s1125 + $0x24] sm:$0xf]
        %v1136 = vld [vmem:[%s1125 + $0x28] sm:$0xf]
        %v1137 = vld [vmem:[%s1125 + $0x2c] sm:$0xf]
        %v1138 = vld [vmem:[%s1125 + $0x30] sm:$0xf]
        %v1139 = vld [vmem:[%s1125 + $0x34] sm:$0xf]
        %v1140 = vld [vmem:[%s1125 + $0x38] sm:$0xf]
        %v1141 = vld [vmem:[%s1125 + $0x3c] sm:$0xf]
        %s1142 = scalar_lea.vmem %s2, 2
        %v1143 = vld [vmem:[%s1142] sm:$0x1]
        %v1145 = vlaneseq
        %v1146 = vshrl.u32 %v1145, 7
        %v1147 = vsub.s32 0, %v1146
        %v1148 = vrot.slane %v1143, %v1147
        %v1166 = vunpack.c.l.b16 %v1126
        %v1167 = vunpack.c.l.b16 %v1127
        %v1168 = vunpack.c.l.b16 %v1128
        %v1169 = vunpack.c.l.b16 %v1129
        %v1170 = vunpack.c.l.b16 %v1130
        %v1171 = vunpack.c.l.b16 %v1131
        %v1172 = vunpack.c.l.b16 %v1132
        %v1173 = vunpack.c.l.b16 %v1133
        %v1174 = vunpack.c.l.b16 %v1134
        %v1175 = vunpack.c.l.b16 %v1135
        %v1176 = vunpack.c.l.b16 %v1136
        %v1177 = vunpack.c.l.b16 %v1137
        %v1178 = vunpack.c.l.b16 %v1138
        %v1179 = vunpack.c.l.b16 %v1139
        %v1180 = vunpack.c.l.b16 %v1140
        %v1181 = vunpack.c.l.b16 %v1141
        %v1182 = vpack.c.b16 %v1167, %v1166
        %v1183 = vpack.c.b16 %v1169, %v1168
        %v1184 = vpack.c.b16 %v1171, %v1170
        %v1185 = vpack.c.b16 %v1173, %v1172
        %v1186 = vpack.c.b16 %v1175, %v1174
        %v1187 = vpack.c.b16 %v1177, %v1176
        %v1188 = vpack.c.b16 %v1179, %v1178
        %v1189 = vpack.c.b16 %v1181, %v1180
        %1198 = vmatprep.subr.bf16.mxu0 0
        %1199 = vmatpush1.bf16.msra.mxu0 %v1182
        %1200 = vmatprep.subr.bf16.mxu0 0
        %1201 = vmatpush1.bf16.msra.mxu0 %v1183
        %1202 = vmatprep.subr.bf16.mxu0 0
        %1203 = vmatpush1.bf16.msra.mxu0 %v1184
        %1204 = vmatprep.subr.bf16.mxu0 0
        %1205 = vmatpush1.bf16.msra.mxu0 %v1185
        %1206 = vmatprep.subr.bf16.mxu0 0
        %1207 = vmatpush1.bf16.msra.mxu0 %v1186
        %1208 = vmatprep.subr.bf16.mxu0 0
        %1209 = vmatpush1.bf16.msra.mxu0 %v1187
        %1210 = vmatprep.subr.bf16.mxu0 0
        %1211 = vmatpush1.bf16.msra.mxu0 %v1188
        %1212 = vmatprep.subr.bf16.mxu0 0
        %1213 = vmatpush1.bf16.msra.mxu0 %v1189
        %1214 = vmatprep.subr.bf16.mxu0 0
        %1215 = vmatpush1.bf16.msra.mxu0 0
        %1216 = vmatprep.subr.bf16.mxu0 0
        %1217 = vmatpush1.bf16.msra.mxu0 0
        %1218 = vmatprep.subr.bf16.mxu0 0
        %1219 = vmatpush1.bf16.msra.mxu0 0
        %1220 = vmatprep.subr.bf16.mxu0 0
        %1221 = vmatpush1.bf16.msra.mxu0 0
        %1222 = vmatprep.subr.bf16.mxu0 0
        %1223 = vmatpush1.bf16.msra.mxu0 0
        %1224 = vmatprep.subr.bf16.mxu0 0
        %1225 = vmatpush1.bf16.msra.mxu0 0
        %1226 = vmatprep.subr.bf16.mxu0 0
        %1227 = vmatpush1.bf16.msra.mxu0 0
        %1228 = vmatprep.subr.bf16.mxu0 0
        %1229 = vmatpush1.bf16.msra.mxu0 0
        %1230 = vmatprep.mubr.bf16.mxu0 0
        %1231 = vmatmul.mubr.bf16.gmra.mrb[0].mxu0 %v1109
        %v1232 = vpop.f32.mrb[0].mxu0
        %v1233 = vadd.f32 %v1148, %v1232
        %v1234 = vpop.f32.mrb[0].mxu0
        %v1235 = vpop.f32.mrb[0].mxu0
        %v1236 = vadd.f32 %v1148, %v1235
        %v1237 = vpop.f32.mrb[0].mxu0
        %1238 = vmatprep.mubr.bf16.mxu0 0
        %1239 = vmatmul.mubr.bf16.gmra.mrb[0].mxu0 %v1110
        %v1240 = vpop.f32.mrb[0].mxu0
        %v1241 = vadd.f32 %v1148, %v1240
        %v1242 = vpop.f32.mrb[0].mxu0
        %v1243 = vpop.f32.mrb[0].mxu0
        %v1244 = vadd.f32 %v1148, %v1243
        %v1245 = vpop.f32.mrb[0].mxu0
        %1246 = vmatprep.mubr.bf16.mxu0 0
        %1247 = vmatmul.mubr.bf16.gmra.mrb[0].mxu0 %v1111
        %v1248 = vpop.f32.mrb[0].mxu0
        %v1249 = vadd.f32 %v1148, %v1248
        %v1250 = vpop.f32.mrb[0].mxu0
        %v1251 = vpop.f32.mrb[0].mxu0
        %v1252 = vadd.f32 %v1148, %v1251
        %v1253 = vpop.f32.mrb[0].mxu0
        %1254 = vmatprep.mubr.bf16.mxu0 0
        %1255 = vmatmul.mubr.bf16.gmra.mrb[0].mxu0 %v1112
        %v1256 = vpop.f32.mrb[0].mxu0
        %v1257 = vadd.f32 %v1148, %v1256
        %v1258 = vpop.f32.mrb[0].mxu0
        %v1259 = vpop.f32.mrb[0].mxu0
        %v1260 = vadd.f32 %v1148, %v1259
        %v1261 = vpop.f32.mrb[0].mxu0
        %1262 = vmatprep.mubr.bf16.mxu0 0
        %1263 = vmatmul.mubr.bf16.gmra.mrb[0].mxu0 %v1113
        %v1264 = vpop.f32.mrb[0].mxu0
        %v1265 = vadd.f32 %v1148, %v1264
        %v1266 = vpop.f32.mrb[0].mxu0
        %v1267 = vpop.f32.mrb[0].mxu0
        %v1268 = vadd.f32 %v1148, %v1267
        %v1269 = vpop.f32.mrb[0].mxu0
        %1270 = vmatprep.mubr.bf16.mxu0 0
        %1271 = vmatmul.mubr.bf16.gmra.mrb[0].mxu0 %v1114
        %v1272 = vpop.f32.mrb[0].mxu0
        %v1273 = vadd.f32 %v1148, %v1272
        %v1274 = vpop.f32.mrb[0].mxu0
        %v1275 = vpop.f32.mrb[0].mxu0
        %v1276 = vadd.f32 %v1148, %v1275
        %v1277 = vpop.f32.mrb[0].mxu0
        %1278 = vmatprep.mubr.bf16.mxu0 0
        %1279 = vmatmul.mubr.bf16.gmra.mrb[0].mxu0 %v1115
        %v1280 = vpop.f32.mrb[0].mxu0
        %v1281 = vadd.f32 %v1148, %v1280
        %v1282 = vpop.f32.mrb[0].mxu0
        %v1283 = vpop.f32.mrb[0].mxu0
        %v1284 = vadd.f32 %v1148, %v1283
        %v1285 = vpop.f32.mrb[0].mxu0
        %1286 = vmatprep.mubr.bf16.mxu0 0
        %1287 = vmatmul.mubr.bf16.gmra.mrb[0].mxu0 %v1116
        %v1288 = vpop.f32.mrb[0].mxu0
        %v1289 = vadd.f32 %v1148, %v1288
        %v1290 = vpop.f32.mrb[0].mxu0
        %v1291 = vpop.f32.mrb[0].mxu0
        %v1292 = vadd.f32 %v1148, %v1291
        %v1293 = vpop.f32.mrb[0].mxu0
        %1294 = vmatprep.mubr.bf16.mxu0 0
        %1295 = vmatmul.mubr.bf16.gmra.mrb[0].mxu0 %v1117
        %v1296 = vpop.f32.mrb[0].mxu0
        %v1297 = vadd.f32 %v1148, %v1296
        %v1298 = vpop.f32.mrb[0].mxu0
        %v1299 = vpop.f32.mrb[0].mxu0
        %v1300 = vadd.f32 %v1148, %v1299
        %v1301 = vpop.f32.mrb[0].mxu0
        %1302 = vmatprep.mubr.bf16.mxu0 0
        %1303 = vmatmul.mubr.bf16.gmra.mrb[0].mxu0 %v1118
        %v1304 = vpop.f32.mrb[0].mxu0
        %v1305 = vadd.f32 %v1148, %v1304
        %v1306 = vpop.f32.mrb[0].mxu0
        %v1307 = vpop.f32.mrb[0].mxu0
        %v1308 = vadd.f32 %v1148, %v1307
        %v1309 = vpop.f32.mrb[0].mxu0
        %1310 = vmatprep.mubr.bf16.mxu0 0
        %1311 = vmatmul.mubr.bf16.gmra.mrb[0].mxu0 %v1119
        %v1312 = vpop.f32.mrb[0].mxu0
        %v1313 = vadd.f32 %v1148, %v1312
        %v1314 = vpop.f32.mrb[0].mxu0
        %v1315 = vpop.f32.mrb[0].mxu0
        %v1316 = vadd.f32 %v1148, %v1315
        %v1317 = vpop.f32.mrb[0].mxu0
        %1318 = vmatprep.mubr.bf16.mxu0 0
        %1319 = vmatmul.mubr.bf16.gmra.mrb[0].mxu0 %v1120
        %v1320 = vpop.f32.mrb[0].mxu0
        %v1321 = vadd.f32 %v1148, %v1320
        %v1322 = vpop.f32.mrb[0].mxu0
        %v1323 = vpop.f32.mrb[0].mxu0
        %v1324 = vadd.f32 %v1148, %v1323
        %v1325 = vpop.f32.mrb[0].mxu0
        %1326 = vmatprep.mubr.bf16.mxu0 0
        %1327 = vmatmul.mubr.bf16.gmra.mrb[0].mxu0 %v1121
        %v1328 = vpop.f32.mrb[0].mxu0
        %v1329 = vadd.f32 %v1148, %v1328
        %v1330 = vpop.f32.mrb[0].mxu0
        %v1331 = vpop.f32.mrb[0].mxu0
        %v1332 = vadd.f32 %v1148, %v1331
        %v1333 = vpop.f32.mrb[0].mxu0
        %1334 = vmatprep.mubr.bf16.mxu0 0
        %1335 = vmatmul.mubr.bf16.gmra.mrb[0].mxu0 %v1122
        %v1336 = vpop.f32.mrb[0].mxu0
        %v1337 = vadd.f32 %v1148, %v1336
        %v1338 = vpop.f32.mrb[0].mxu0
        %v1339 = vpop.f32.mrb[0].mxu0
        %v1340 = vadd.f32 %v1148, %v1339
        %v1341 = vpop.f32.mrb[0].mxu0
        %1342 = vmatprep.mubr.bf16.mxu0 0
        %1343 = vmatmul.mubr.bf16.gmra.mrb[0].mxu0 %v1123
        %v1344 = vpop.f32.mrb[0].mxu0
        %v1345 = vadd.f32 %v1148, %v1344
        %v1346 = vpop.f32.mrb[0].mxu0
        %v1347 = vpop.f32.mrb[0].mxu0
        %v1348 = vadd.f32 %v1148, %v1347
        %v1349 = vpop.f32.mrb[0].mxu0
        %1350 = vmatprep.mubr.bf16.mxu0 0
        %1351 = vmatmul.mubr.bf16.gmra.mrb[0].mxu0 %v1124
        %v1352 = vpop.f32.mrb[0].mxu0
        %v1353 = vadd.f32 %v1148, %v1352
        %v1354 = vpop.f32.mrb[0].mxu0
        %v1355 = vpop.f32.mrb[0].mxu0
        %v1356 = vadd.f32 %v1148, %v1355
        %v1357 = vpop.f32.mrb[0].mxu0
        %1358 = vdwg.mxu0
        %v1359 = vmax.f32 %v1233, 0.0
        %v1360 = vmax.f32 %v1236, 0.0
        %v1361 = vmax.f32 %v1241, 0.0
        %v1362 = vmax.f32 %v1244, 0.0
        %v1363 = vmax.f32 %v1249, 0.0
        %v1364 = vmax.f32 %v1252, 0.0
        %v1365 = vmax.f32 %v1257, 0.0
        %v1366 = vmax.f32 %v1260, 0.0
        %v1367 = vmax.f32 %v1265, 0.0
        %v1368 = vmax.f32 %v1268, 0.0
        %v1369 = vmax.f32 %v1273, 0.0
        %v1370 = vmax.f32 %v1276, 0.0
        %v1371 = vmax.f32 %v1281, 0.0
        %v1372 = vmax.f32 %v1284, 0.0
        %v1373 = vmax.f32 %v1289, 0.0
        %v1374 = vmax.f32 %v1292, 0.0
        %v1375 = vmax.f32 %v1297, 0.0
        %v1376 = vmax.f32 %v1300, 0.0
        %v1377 = vmax.f32 %v1305, 0.0
        %v1378 = vmax.f32 %v1308, 0.0
        %v1379 = vmax.f32 %v1313, 0.0
        %v1380 = vmax.f32 %v1316, 0.0
        %v1381 = vmax.f32 %v1321, 0.0
        %v1382 = vmax.f32 %v1324, 0.0
        %v1383 = vmax.f32 %v1329, 0.0
        %v1384 = vmax.f32 %v1332, 0.0
        %v1385 = vmax.f32 %v1337, 0.0
        %v1386 = vmax.f32 %v1340, 0.0
        %v1387 = vmax.f32 %v1345, 0.0
        %v1388 = vmax.f32 %v1348, 0.0
        %v1389 = vmax.f32 %v1353, 0.0
        %v1390 = vmax.f32 %v1356, 0.0
        %v1391 = vadd.f32 %v1359, %v435
        %v1392 = vadd.f32 %v1360, %v436
        %v1393 = vadd.f32 %v1361, %v437
        %v1394 = vadd.f32 %v1362, %v438
        %v1395 = vadd.f32 %v1363, %v439
        %v1396 = vadd.f32 %v1364, %v440
        %v1397 = vadd.f32 %v1365, %v441
        %v1398 = vadd.f32 %v1366, %v442
        %v1399 = vadd.f32 %v1367, %v443
        %v1400 = vadd.f32 %v1368, %v444
        %v1401 = vadd.f32 %v1369, %v445
        %v1402 = vadd.f32 %v1370, %v446
        %v1403 = vadd.f32 %v1371, %v447
        %v1404 = vadd.f32 %v1372, %v448
        %v1405 = vadd.f32 %v1373, %v449
        %v1406 = vadd.f32 %v1374, %v450
        %v1407 = vadd.f32 %v1375, %v451
        %v1408 = vadd.f32 %v1376, %v452
        %v1409 = vadd.f32 %v1377, %v453
        %v1410 = vadd.f32 %v1378, %v454
        %v1411 = vadd.f32 %v1379, %v455
        %v1412 = vadd.f32 %v1380, %v456
        %v1413 = vadd.f32 %v1381, %v457
        %v1414 = vadd.f32 %v1382, %v458
        %v1415 = vadd.f32 %v1383, %v459
        %v1416 = vadd.f32 %v1384, %v460
        %v1417 = vadd.f32 %v1385, %v461
        %v1418 = vadd.f32 %v1386, %v462
        %v1419 = vadd.f32 %v1387, %v463
        %v1420 = vadd.f32 %v1388, %v464
        %v1421 = vadd.f32 %v1389, %v465
        %v1422 = vadd.f32 %v1390, %v466
        %v1423 = vpack.c.bf16 %v1392, %v1391
        %v1424 = vpack.c.bf16 %v1394, %v1393
        %v1425 = vpack.c.bf16 %v1396, %v1395
        %v1426 = vpack.c.bf16 %v1398, %v1397
        %v1427 = vpack.c.bf16 %v1400, %v1399
        %v1428 = vpack.c.bf16 %v1402, %v1401
        %v1429 = vpack.c.bf16 %v1404, %v1403
        %v1430 = vpack.c.bf16 %v1406, %v1405
        %v1431 = vpack.c.bf16 %v1408, %v1407
        %v1432 = vpack.c.bf16 %v1410, %v1409
        %v1433 = vpack.c.bf16 %v1412, %v1411
        %v1434 = vpack.c.bf16 %v1414, %v1413
        %v1435 = vpack.c.bf16 %v1416, %v1415
        %v1436 = vpack.c.bf16 %v1418, %v1417
        %v1437 = vpack.c.bf16 %v1420, %v1419
        %v1438 = vpack.c.bf16 %v1422, %v1421
        %v1439 = vld [vmem:[#allocation7] sm:$0xf]
        %v1440 = vld [vmem:[#allocation7 + $0x4] sm:$0xf]
        %v1441 = vld [vmem:[#allocation7 + $0x8] sm:$0xf]
        %v1442 = vld [vmem:[#allocation7 + $0xc] sm:$0xf]
        %v1443 = vld [vmem:[#allocation7 + $0x10] sm:$0xf]
        %v1444 = vld [vmem:[#allocation7 + $0x14] sm:$0xf]
        %v1445 = vld [vmem:[#allocation7 + $0x18] sm:$0xf]
        %v1446 = vld [vmem:[#allocation7 + $0x1c] sm:$0xf]
        %v1447 = vld [vmem:[#allocation7 + $0x20] sm:$0xf]
        %v1448 = vld [vmem:[#allocation7 + $0x24] sm:$0xf]
        %v1449 = vld [vmem:[#allocation7 + $0x28] sm:$0xf]
        %v1450 = vld [vmem:[#allocation7 + $0x2c] sm:$0xf]
        %v1451 = vld [vmem:[#allocation7 + $0x30] sm:$0xf]
        %v1452 = vld [vmem:[#allocation7 + $0x34] sm:$0xf]
        %v1453 = vld [vmem:[#allocation7 + $0x38] sm:$0xf]
        %v1454 = vld [vmem:[#allocation7 + $0x3c] sm:$0xf]
        %v1455 = vld [vmem:[%s4] sm:$0x1]
        %v1457 = vlaneseq
        %v1458 = vshrl.u32 %v1457, 7
        %v1459 = vsub.s32 0, %v1458
        %v1460 = vrot.slane %v1455, %v1459
        %v1478 = vunpack.c.l.b16 %v1439
        %v1479 = vunpack.c.l.b16 %v1440
        %v1480 = vunpack.c.l.b16 %v1441
        %v1481 = vunpack.c.l.b16 %v1442
        %v1482 = vunpack.c.l.b16 %v1443
        %v1483 = vunpack.c.l.b16 %v1444
        %v1484 = vunpack.c.l.b16 %v1445
        %v1485 = vunpack.c.l.b16 %v1446
        %v1486 = vunpack.c.l.b16 %v1447
        %v1487 = vunpack.c.l.b16 %v1448
        %v1488 = vunpack.c.l.b16 %v1449
        %v1489 = vunpack.c.l.b16 %v1450
        %v1490 = vunpack.c.l.b16 %v1451
        %v1491 = vunpack.c.l.b16 %v1452
        %v1492 = vunpack.c.l.b16 %v1453
        %v1493 = vunpack.c.l.b16 %v1454
        %v1494 = vpack.c.b16 %v1479, %v1478
        %v1495 = vpack.c.b16 %v1481, %v1480
        %v1496 = vpack.c.b16 %v1483, %v1482
        %v1497 = vpack.c.b16 %v1485, %v1484
        %v1498 = vpack.c.b16 %v1487, %v1486
        %v1499 = vpack.c.b16 %v1489, %v1488
        %v1500 = vpack.c.b16 %v1491, %v1490
        %v1501 = vpack.c.b16 %v1493, %v1492
        %1510 = vmatprep.subr.bf16.mxu0 0
        %1511 = vmatpush1.bf16.msra.mxu0 %v1494
        %1512 = vmatprep.subr.bf16.mxu0 0
        %1513 = vmatpush1.bf16.msra.mxu0 %v1495
        %1514 = vmatprep.subr.bf16.mxu0 0
        %1515 = vmatpush1.bf16.msra.mxu0 %v1496
        %1516 = vmatprep.subr.bf16.mxu0 0
        %1517 = vmatpush1.bf16.msra.mxu0 %v1497
        %1518 = vmatprep.subr.bf16.mxu0 0
        %1519 = vmatpush1.bf16.msra.mxu0 %v1498
        %1520 = vmatprep.subr.bf16.mxu0 0
        %1521 = vmatpush1.bf16.msra.mxu0 %v1499
        %1522 = vmatprep.subr.bf16.mxu0 0
        %1523 = vmatpush1.bf16.msra.mxu0 %v1500
        %1524 = vmatprep.subr.bf16.mxu0 0
        %1525 = vmatpush1.bf16.msra.mxu0 %v1501
        %1526 = vmatprep.subr.bf16.mxu0 0
        %1527 = vmatpush1.bf16.msra.mxu0 0
        %1528 = vmatprep.subr.bf16.mxu0 0
        %1529 = vmatpush1.bf16.msra.mxu0 0
        %1530 = vmatprep.subr.bf16.mxu0 0
        %1531 = vmatpush1.bf16.msra.mxu0 0
        %1532 = vmatprep.subr.bf16.mxu0 0
        %1533 = vmatpush1.bf16.msra.mxu0 0
        %1534 = vmatprep.subr.bf16.mxu0 0
        %1535 = vmatpush1.bf16.msra.mxu0 0
        %1536 = vmatprep.subr.bf16.mxu0 0
        %1537 = vmatpush1.bf16.msra.mxu0 0
        %1538 = vmatprep.subr.bf16.mxu0 0
        %1539 = vmatpush1.bf16.msra.mxu0 0
        %1540 = vmatprep.subr.bf16.mxu0 0
        %1541 = vmatpush1.bf16.msra.mxu0 0
        %1542 = vmatprep.mubr.bf16.mxu0 0
        %1543 = vmatmul.mubr.bf16.gmra.mrb[0].mxu0 %v1423
        %v1544 = vpop.f32.mrb[0].mxu0
        %v1545 = vadd.f32 %v1460, %v1544
        %v1546 = vpop.f32.mrb[0].mxu0
        %v1547 = vpop.f32.mrb[0].mxu0
        %v1548 = vadd.f32 %v1460, %v1547
        %v1549 = vpop.f32.mrb[0].mxu0
        %1550 = vmatprep.mubr.bf16.mxu0 0
        %1551 = vmatmul.mubr.bf16.gmra.mrb[0].mxu0 %v1424
        %v1552 = vpop.f32.mrb[0].mxu0
        %v1553 = vadd.f32 %v1460, %v1552
        %v1554 = vpop.f32.mrb[0].mxu0
        %v1555 = vpop.f32.mrb[0].mxu0
        %v1556 = vadd.f32 %v1460, %v1555
        %v1557 = vpop.f32.mrb[0].mxu0
        %1558 = vmatprep.mubr.bf16.mxu0 0
        %1559 = vmatmul.mubr.bf16.gmra.mrb[0].mxu0 %v1425
        %v1560 = vpop.f32.mrb[0].mxu0
        %v1561 = vadd.f32 %v1460, %v1560
        %v1562 = vpop.f32.mrb[0].mxu0
        %v1563 = vpop.f32.mrb[0].mxu0
        %v1564 = vadd.f32 %v1460, %v1563
        %v1565 = vpop.f32.mrb[0].mxu0
        %1566 = vmatprep.mubr.bf16.mxu0 0
        %1567 = vmatmul.mubr.bf16.gmra.mrb[0].mxu0 %v1426
        %v1568 = vpop.f32.mrb[0].mxu0
        %v1569 = vadd.f32 %v1460, %v1568
        %v1570 = vpop.f32.mrb[0].mxu0
        %v1571 = vpop.f32.mrb[0].mxu0
        %v1572 = vadd.f32 %v1460, %v1571
        %v1573 = vpop.f32.mrb[0].mxu0
        %1574 = vmatprep.mubr.bf16.mxu0 0
        %1575 = vmatmul.mubr.bf16.gmra.mrb[0].mxu0 %v1427
        %v1576 = vpop.f32.mrb[0].mxu0
        %v1577 = vadd.f32 %v1460, %v1576
        %v1578 = vpop.f32.mrb[0].mxu0
        %v1579 = vpop.f32.mrb[0].mxu0
        %v1580 = vadd.f32 %v1460, %v1579
        %v1581 = vpop.f32.mrb[0].mxu0
        %1582 = vmatprep.mubr.bf16.mxu0 0
        %1583 = vmatmul.mubr.bf16.gmra.mrb[0].mxu0 %v1428
        %v1584 = vpop.f32.mrb[0].mxu0
        %v1585 = vadd.f32 %v1460, %v1584
        %v1586 = vpop.f32.mrb[0].mxu0
        %v1587 = vpop.f32.mrb[0].mxu0
        %v1588 = vadd.f32 %v1460, %v1587
        %v1589 = vpop.f32.mrb[0].mxu0
        %1590 = vmatprep.mubr.bf16.mxu0 0
        %1591 = vmatmul.mubr.bf16.gmra.mrb[0].mxu0 %v1429
        %v1592 = vpop.f32.mrb[0].mxu0
        %v1593 = vadd.f32 %v1460, %v1592
        %v1594 = vpop.f32.mrb[0].mxu0
        %v1595 = vpop.f32.mrb[0].mxu0
        %v1596 = vadd.f32 %v1460, %v1595
        %v1597 = vpop.f32.mrb[0].mxu0
        %1598 = vmatprep.mubr.bf16.mxu0 0
        %1599 = vmatmul.mubr.bf16.gmra.mrb[0].mxu0 %v1430
        %v1600 = vpop.f32.mrb[0].mxu0
        %v1601 = vadd.f32 %v1460, %v1600
        %v1602 = vpop.f32.mrb[0].mxu0
        %v1603 = vpop.f32.mrb[0].mxu0
        %v1604 = vadd.f32 %v1460, %v1603
        %v1605 = vpop.f32.mrb[0].mxu0
        %1606 = vmatprep.mubr.bf16.mxu0 0
        %1607 = vmatmul.mubr.bf16.gmra.mrb[0].mxu0 %v1431
        %v1608 = vpop.f32.mrb[0].mxu0
        %v1609 = vadd.f32 %v1460, %v1608
        %v1610 = vpop.f32.mrb[0].mxu0
        %v1611 = vpop.f32.mrb[0].mxu0
        %v1612 = vadd.f32 %v1460, %v1611
        %v1613 = vpop.f32.mrb[0].mxu0
        %1614 = vmatprep.mubr.bf16.mxu0 0
        %1615 = vmatmul.mubr.bf16.gmra.mrb[0].mxu0 %v1432
        %v1616 = vpop.f32.mrb[0].mxu0
        %v1617 = vadd.f32 %v1460, %v1616
        %v1618 = vpop.f32.mrb[0].mxu0
        %v1619 = vpop.f32.mrb[0].mxu0
        %v1620 = vadd.f32 %v1460, %v1619
        %v1621 = vpop.f32.mrb[0].mxu0
        %1622 = vmatprep.mubr.bf16.mxu0 0
        %1623 = vmatmul.mubr.bf16.gmra.mrb[0].mxu0 %v1433
        %v1624 = vpop.f32.mrb[0].mxu0
        %v1625 = vadd.f32 %v1460, %v1624
        %v1626 = vpop.f32.mrb[0].mxu0
        %v1627 = vpop.f32.mrb[0].mxu0
        %v1628 = vadd.f32 %v1460, %v1627
        %v1629 = vpop.f32.mrb[0].mxu0
        %1630 = vmatprep.mubr.bf16.mxu0 0
        %1631 = vmatmul.mubr.bf16.gmra.mrb[0].mxu0 %v1434
        %v1632 = vpop.f32.mrb[0].mxu0
        %v1633 = vadd.f32 %v1460, %v1632
        %v1634 = vpop.f32.mrb[0].mxu0
        %v1635 = vpop.f32.mrb[0].mxu0
        %v1636 = vadd.f32 %v1460, %v1635
        %v1637 = vpop.f32.mrb[0].mxu0
        %1638 = vmatprep.mubr.bf16.mxu0 0
        %1639 = vmatmul.mubr.bf16.gmra.mrb[0].mxu0 %v1435
        %v1640 = vpop.f32.mrb[0].mxu0
        %v1641 = vadd.f32 %v1460, %v1640
        %v1642 = vpop.f32.mrb[0].mxu0
        %v1643 = vpop.f32.mrb[0].mxu0
        %v1644 = vadd.f32 %v1460, %v1643
        %v1645 = vpop.f32.mrb[0].mxu0
        %1646 = vmatprep.mubr.bf16.mxu0 0
        %1647 = vmatmul.mubr.bf16.gmra.mrb[0].mxu0 %v1436
        %v1648 = vpop.f32.mrb[0].mxu0
        %v1649 = vadd.f32 %v1460, %v1648
        %v1650 = vpop.f32.mrb[0].mxu0
        %v1651 = vpop.f32.mrb[0].mxu0
        %v1652 = vadd.f32 %v1460, %v1651
        %v1653 = vpop.f32.mrb[0].mxu0
        %1654 = vmatprep.mubr.bf16.mxu0 0
        %1655 = vmatmul.mubr.bf16.gmra.mrb[0].mxu0 %v1437
        %v1656 = vpop.f32.mrb[0].mxu0
        %v1657 = vadd.f32 %v1460, %v1656
        %v1658 = vpop.f32.mrb[0].mxu0
        %v1659 = vpop.f32.mrb[0].mxu0
        %v1660 = vadd.f32 %v1460, %v1659
        %v1661 = vpop.f32.mrb[0].mxu0
        %1662 = vmatprep.mubr.bf16.mxu0 0
        %1663 = vmatmul.mubr.bf16.gmra.mrb[0].mxu0 %v1438
        %v1664 = vpop.f32.mrb[0].mxu0
        %v1665 = vadd.f32 %v1460, %v1664
        %v1666 = vpop.f32.mrb[0].mxu0
        %v1667 = vpop.f32.mrb[0].mxu0
        %v1668 = vadd.f32 %v1460, %v1667
        %v1669 = vpop.f32.mrb[0].mxu0
        %1670 = vdwg.mxu0
        %v1671 = vpack.c.bf16 %v1548, %v1545
        %v1672 = vpack.c.bf16 %v1556, %v1553
        %v1673 = vpack.c.bf16 %v1564, %v1561
        %v1674 = vpack.c.bf16 %v1572, %v1569
        %v1675 = vpack.c.bf16 %v1580, %v1577
        %v1676 = vpack.c.bf16 %v1588, %v1585
        %v1677 = vpack.c.bf16 %v1596, %v1593
        %v1678 = vpack.c.bf16 %v1604, %v1601
        %v1679 = vpack.c.bf16 %v1612, %v1609
        %v1680 = vpack.c.bf16 %v1620, %v1617
        %v1681 = vpack.c.bf16 %v1628, %v1625
        %v1682 = vpack.c.bf16 %v1636, %v1633
        %v1683 = vpack.c.bf16 %v1644, %v1641
        %v1684 = vpack.c.bf16 %v1652, %v1649
        %v1685 = vpack.c.bf16 %v1660, %v1657
        %v1686 = vpack.c.bf16 %v1668, %v1665
        %v1703 = vunpack.c.l.b16 %v1671
        %v1704 = vunpack.c.h.b16 %v1671
        %v1705 = vunpack.c.l.b16 %v1672
        %v1706 = vunpack.c.h.b16 %v1672
        %v1707 = vunpack.c.l.b16 %v1673
        %v1708 = vunpack.c.h.b16 %v1673
        %v1709 = vunpack.c.l.b16 %v1674
        %v1710 = vunpack.c.h.b16 %v1674
        %v1711 = vunpack.c.l.b16 %v1675
        %v1712 = vunpack.c.h.b16 %v1675
        %v1713 = vunpack.c.l.b16 %v1676
        %v1714 = vunpack.c.h.b16 %v1676
        %v1715 = vunpack.c.l.b16 %v1677
        %v1716 = vunpack.c.h.b16 %v1677
        %v1717 = vunpack.c.l.b16 %v1678
        %v1718 = vunpack.c.h.b16 %v1678
        %v1719 = vunpack.c.l.b16 %v1679
        %v1720 = vunpack.c.h.b16 %v1679
        %v1721 = vunpack.c.l.b16 %v1680
        %v1722 = vunpack.c.h.b16 %v1680
        %v1723 = vunpack.c.l.b16 %v1681
        %v1724 = vunpack.c.h.b16 %v1681
        %v1725 = vunpack.c.l.b16 %v1682
        %v1726 = vunpack.c.h.b16 %v1682
        %v1727 = vunpack.c.l.b16 %v1683
        %v1728 = vunpack.c.h.b16 %v1683
        %v1729 = vunpack.c.l.b16 %v1684
        %v1730 = vunpack.c.h.b16 %v1684
        %v1731 = vunpack.c.l.b16 %v1685
        %v1732 = vunpack.c.h.b16 %v1685
        %v1733 = vunpack.c.l.b16 %v1686
        %v1734 = vunpack.c.h.b16 %v1686
        %v1735 = vpack.c.b16 %v1703, %v1703
        %v1736 = vpack.c.b16 %v1704, %v1704
        %v1737 = vpack.c.b16 %v1705, %v1705
        %v1738 = vpack.c.b16 %v1706, %v1706
        %v1739 = vpack.c.b16 %v1707, %v1707
        %v1740 = vpack.c.b16 %v1708, %v1708
        %v1741 = vpack.c.b16 %v1709, %v1709
        %v1742 = vpack.c.b16 %v1710, %v1710
        %v1743 = vpack.c.b16 %v1711, %v1711
        %v1744 = vpack.c.b16 %v1712, %v1712
        %v1745 = vpack.c.b16 %v1713, %v1713
        %v1746 = vpack.c.b16 %v1714, %v1714
        %v1747 = vpack.c.b16 %v1715, %v1715
        %v1748 = vpack.c.b16 %v1716, %v1716
        %v1749 = vpack.c.b16 %v1717, %v1717
        %v1750 = vpack.c.b16 %v1718, %v1718
        %v1751 = vpack.c.b16 %v1719, %v1719
        %v1752 = vpack.c.b16 %v1720, %v1720
        %v1753 = vpack.c.b16 %v1721, %v1721
        %v1754 = vpack.c.b16 %v1722, %v1722
        %v1755 = vpack.c.b16 %v1723, %v1723
        %v1756 = vpack.c.b16 %v1724, %v1724
        %v1757 = vpack.c.b16 %v1725, %v1725
        %v1758 = vpack.c.b16 %v1726, %v1726
        %v1759 = vpack.c.b16 %v1727, %v1727
        %v1760 = vpack.c.b16 %v1728, %v1728
        %v1761 = vpack.c.b16 %v1729, %v1729
        %v1762 = vpack.c.b16 %v1730, %v1730
        %v1763 = vpack.c.b16 %v1731, %v1731
        %v1764 = vpack.c.b16 %v1732, %v1732
        %v1765 = vpack.c.b16 %v1733, %v1733
        %v1766 = vpack.c.b16 %v1734, %v1734
        %1799 = vst [vmem:[%s271] sm:$0xf] %v1735
        %1800 = vst [vmem:[%s271 + $0x4] sm:$0xf] %v1736
        %1801 = vst [vmem:[%s271 + $0x8] sm:$0xf] %v1737
        %1802 = vst [vmem:[%s271 + $0xc] sm:$0xf] %v1738
        %1803 = vst [vmem:[%s271 + $0x10] sm:$0xf] %v1739
        %1804 = vst [vmem:[%s271 + $0x14] sm:$0xf] %v1740
        %1805 = vst [vmem:[%s271 + $0x18] sm:$0xf] %v1741
        %1806 = vst [vmem:[%s271 + $0x1c] sm:$0xf] %v1742
        %1807 = vst [vmem:[%s271 + $0x20] sm:$0xf] %v1743
        %1808 = vst [vmem:[%s271 + $0x24] sm:$0xf] %v1744
        %1809 = vst [vmem:[%s271 + $0x28] sm:$0xf] %v1745
        %1810 = vst [vmem:[%s271 + $0x2c] sm:$0xf] %v1746
        %1811 = vst [vmem:[%s271 + $0x30] sm:$0xf] %v1747
        %1812 = vst [vmem:[%s271 + $0x34] sm:$0xf] %v1748
        %1813 = vst [vmem:[%s271 + $0x38] sm:$0xf] %v1749
        %1814 = vst [vmem:[%s271 + $0x3c] sm:$0xf] %v1750
        %1815 = vst [vmem:[%s271 + $0x40] sm:$0xf] %v1751
        %1816 = vst [vmem:[%s271 + $0x44] sm:$0xf] %v1752
        %1817 = vst [vmem:[%s271 + $0x48] sm:$0xf] %v1753
        %1818 = vst [vmem:[%s271 + $0x4c] sm:$0xf] %v1754
        %1819 = vst [vmem:[%s271 + $0x50] sm:$0xf] %v1755
        %1820 = vst [vmem:[%s271 + $0x54] sm:$0xf] %v1756
        %1821 = vst [vmem:[%s271 + $0x58] sm:$0xf] %v1757
        %1822 = vst [vmem:[%s271 + $0x5c] sm:$0xf] %v1758
        %1823 = vst [vmem:[%s271 + $0x60] sm:$0xf] %v1759
        %1824 = vst [vmem:[%s271 + $0x64] sm:$0xf] %v1760
        %1825 = vst [vmem:[%s271 + $0x68] sm:$0xf] %v1761
        %1826 = vst [vmem:[%s271 + $0x6c] sm:$0xf] %v1762
        %1827 = vst [vmem:[%s271 + $0x70] sm:$0xf] %v1763
        %1828 = vst [vmem:[%s271 + $0x74] sm:$0xf] %v1764
        %1829 = vst [vmem:[%s271 + $0x78] sm:$0xf] %v1765
        %1830 = vst [vmem:[%s271 + $0x7c] sm:$0xf] %v1766
        %s1831 = sand.u32 %s141, 1
        %s1832 = scalar_lea.sflag [#allocation4], %s1831
        %s1833 = sand.u32 %s141, 1
        %s1834 = smul.addr %s1833, 128
        %s1835 = scalar_lea.vmem [#allocation8], %s1834
        // Predicated region
        $region53: #{tpu_custom_call.1} parent=39 // pred_check
          %p1836 = pneg %p151
        $region54: #{tpu_custom_call.1} parent=39 // pred_check_branch
          %1838 = sbr.rel (%p1836) target = $region56
        $region55: #{tpu_custom_call.1} parent=39 // pred_region
          %s1839 = smul.u32 32, %s23
          %s1841 = ssub.s32 2048, 2048
          %1842 = vsyncadd %s1832, %s1841
          %s1843 = smul.addr %s1839, 64
          %s1844 = scalar_lea.hbm %s5, %s1843
          %s1845 = sshll.u32 %s1835, 4
          %s1846 = int_to_ptr.vmem [resolvable:$true] %s1845
          %1851 = dma.vmem_to_hbm [thread:$0]  %s1846, 2048, %s1844, %s1832, 64, 64, 4
        $region56: #{tpu_custom_call.1} parent=39 // pred_fallthru
          _
      $region40: #{tpu_custom_call.1} parent=5 // pred_fallthru
        _
      %p1852 = scmp.le.s32.totalorder 2, %s18
      // Predicated region
      $region57: #{tpu_custom_call.1} parent=5 // pred_check
        %p1853 = pneg %p1852
      $region58: #{tpu_custom_call.1} parent=5 // pred_check_branch
        %1855 = sbr.rel (%p1853) target = $region60
      $region59: #{tpu_custom_call.1} parent=5 // pred_region
        %s1856 = ssub.s32 %s18, 2
        // Predicated region
        $region61: #{tpu_custom_call.1} parent=59 // pred_check
          %p1857 = pneg %p157
        $region62: #{tpu_custom_call.1} parent=59 // pred_check_branch
          %1859 = sbr.rel (%p1857) target = $region64
        $region63: #{tpu_custom_call.1} parent=59 // pred_region
          %s1860 = sand.u32 %s142, 1
          %s1861 = scalar_lea.sflag [#allocation4], %s1860
          %s1862 = sand.u32 %s142, 1
          %s1863 = smul.addr %s1862, 128
          %s1864 = scalar_lea.vmem [#allocation8], %s1863
          %1865 = dma.done %s1861, 2048
        $region64: #{tpu_custom_call.1} parent=59 // pred_fallthru
          _
      $region60: #{tpu_custom_call.1} parent=5 // pred_fallthru
        _
    $region6: #{tpu_custom_call.1} parent=1 // loop_footer
      %s22 = sadd.s32 1, %s18
    $region7: #{tpu_custom_call.1} parent=1 // loop_footer_branch
      %17 = sbr.rel target = $region3
    $region8: #{tpu_custom_call.1} parent=1 // loop_exit
      _
    %1866 = vsyncpa [#allocation3], 1
    %s1867 = scalar_lea.sflag [#allocation3], 1
    %1868 = vsyncpa %s1867, 1
    %1869 = vsyncpa [#allocation6], 1
    %1870 = vsyncpa [#allocation4], 1
    %s1871 = scalar_lea.sflag [#allocation4], 1
    %1872 = vsyncpa %s1871, 1

// kernel: tpu_custom_call.1
$region0: #{tpu_custom_call.1}
  #allocation0 [shape = 'u32[]', space=smem, size = 0x4, offset = 0x4, fixed_abs, tag = 'smem constant byte address 0x4 - core index']
  #allocation1 [shape = 'u32[144,128]{1,0:T(1,128)}', space=vmem, size = 0x12000, scoped, tag = 'internal scratch']
  %s0 = inlined_call_operand.hbm [shape: bf16[512,128], index: 0, kind: input, shape index: {}]
  %s1 = inlined_call_operand.hbm [shape: bf16[3,128,128], index: 1, kind: input, shape index: {}]
  %s2 = inlined_call_operand.vmem [shape: f32[3,1,128], index: 2, kind: input, shape index: {}]
  %s3 = inlined_call_operand.hbm [shape: bf16[128,128], index: 3, kind: input, shape index: {}]
  %s4 = inlined_call_operand.vmem [shape: f32[1,128], index: 4, kind: input, shape index: {}]
  %s5 = inlined_call_operand.hbm [shape: bf16[512,128], index: 5, kind: output, shape index: {}]
  %s6 = sld [smem:[#allocation0]]
  $region65: #{tpu_custom_call.1} parent=0
    _
  %s8 = ssub.s32 1, %s6
  %s9 = scalar_select 0, %s8, %s6
  $region1: #{tpu_custom_call.1} parent=0
    #allocation2 [shape = 'u8[131072]{0}', space=vmem, size = 0x20000, scoped, tag = 'input window, operand 0']
    #allocation3 [shape = 's32[2]{0}', space=sflag, size = 0x8, scoped, tag = 'scoped memory for tpu_custom_call.1']
    #allocation4 [shape = 's32[2]{0}', space=sflag, size = 0x8, scoped, tag = 'scoped memory for tpu_custom_call.1']
    #allocation5 [shape = 'u8[98304]{0}', space=vmem, size = 0x18000, scoped, tag = 'input window, operand 1, single buffered']
    #allocation6 [shape = 's32[1]{0}', space=sflag, size = 0x4, scoped, tag = 'scoped memory for tpu_custom_call.1']
    #allocation7 [shape = 'u8[32768]{0}', space=vmem, size = 0x8000, scoped, tag = 'input window, operand 3, single buffered']
    #allocation8 [shape = 'u8[131072]{0}', space=vmem, size = 0x20000, scoped, tag = 'output window, operand 0']
    %10 = vsyncpa [#allocation3], 0
    %s11 = scalar_lea.sflag [#allocation3], 1
    %12 = vsyncpa %s11, 0
    %13 = vsyncpa [#allocation6], 0
    %14 = vsyncpa [#allocation4], 0
    %s15 = scalar_lea.sflag [#allocation4], 1
    %16 = vsyncpa %s15, 0
    loop: start=0, step=1, limit=4
    $region2: #{tpu_custom_call.1} parent=1 // loop_pre_header
      _
    $region3: #{tpu_custom_call.1} parent=1 // loop_header
      %s18 = sphi 0, %s22
      %p19 = scmp.ge.s32.totalorder %s18, 4
      %s28 = sphi 0, %s30
      %s31 = sphi 0, %s28
      %s32 = sphi 0, %s31
      %s48 = sphi 0, %s32
      %s52 = sphi 0, %s52
      %s54 = sphi 0, %s52
      %s55 = sphi 0, %s54
      %s69 = sphi 0, %s55
      %s73 = sphi 0, %s73
      %s75 = sphi 0, %s73
      %s76 = sphi 0, %s75
      %s90 = sphi 0, %s76
      %s94 = sphi 0, %s94
      %s96 = sphi 0, %s94
      %s97 = sphi 0, %s96
      %s111 = sphi 0, %s97
      %s115 = sphi 0, %s115
      %s117 = sphi 0, %s115
      %s118 = sphi 0, %s117
      %s132 = sphi 0, %s118
      %s138 = sphi 0, %s140
      %s141 = sphi 0, %s138
      %s142 = sphi 0, %s141
      %s158 = sphi 0, %s142
    $region4: #{tpu_custom_call.1} parent=1 // loop_header_branch
      %21 = sbr.rel (%p19) target = $region8
    $region5: #{tpu_custom_call.1} parent=1 // loop_body
      %s23 = ssub.s32 %s18, 1
      %s24 = ssub.s32 %s18, 2
      %s25 = sadd.s32 %s18, 1
      %s26 = ssub.s32 %s18, %s25
      %p27 = scmp.eq.s32.totalorder %s26, 0
      %s29 = sadd.s32 %s28, 1
      %s30 = scalar_select %p27, %s28, %s29
      %p33 = pneg %p27
      %p34 = scmp.eq.s32.totalorder %s18, 1
      %p35 = por %p33, %p34
      %p36 = scmp.ne.s32.totalorder %s28, %s31
      %p37 = scmp.eq.s32.totalorder %s18, 0
      %p38 = por %p36, %p37
      %p39 = scmp.ne.s32.totalorder %s28, %s31
      %p40 = scmp.eq.s32.totalorder %s23, 1
      %p41 = por %p39, %p40
      %p42 = scmp.ne.s32.totalorder %s31, %s32
      %p43 = scmp.eq.s32.totalorder %s23, 0
      %p44 = por %p42, %p43
      %p45 = scmp.ne.s32.totalorder %s31, %s32
      %p46 = scmp.eq.s32.totalorder %s24, 1
      %p47 = por %p45, %p46
      %p49 = scmp.ne.s32.totalorder %s32, %s48
      %p50 = scmp.eq.s32.totalorder %s24, 0
      %p51 = por %p49, %p50
      %s53 = sadd.s32 %s52, 1
      %p56 = scmp.eq.s32.totalorder %s18, 1
      %p57 = scmp.ne.s32.totalorder %s52, %s54
      %p58 = scmp.eq.s32.totalorder %s18, 0
      %p59 = por %p57, %p58
      %p60 = scmp.ne.s32.totalorder %s52, %s54
      %p61 = scmp.eq.s32.totalorder %s23, 1
      %p62 = por %p60, %p61
      %p63 = scmp.ne.s32.totalorder %s54, %s55
      %p64 = scmp.eq.s32.totalorder %s23, 0
      %p65 = por %p63, %p64
      %p66 = scmp.ne.s32.totalorder %s54, %s55
      %p67 = scmp.eq.s32.totalorder %s24, 1
      %p68 = por %p66, %p67
      %p70 = scmp.ne.s32.totalorder %s55, %s69
      %p71 = scmp.eq.s32.totalorder %s24, 0
      %p72 = por %p70, %p71
      %s74 = sadd.s32 %s73, 1
      %p77 = scmp.eq.s32.totalorder %s18, 1
      %p78 = scmp.ne.s32.totalorder %s73, %s75
      %p79 = scmp.eq.s32.totalorder %s18, 0
      %p80 = por %p78, %p79
      %p81 = scmp.ne.s32.totalorder %s73, %s75
      %p82 = scmp.eq.s32.totalorder %s23, 1
      %p83 = por %p81, %p82
      %p84 = scmp.ne.s32.totalorder %s75, %s76
      %p85 = scmp.eq.s32.totalorder %s23, 0
      %p86 = por %p84, %p85
      %p87 = scmp.ne.s32.totalorder %s75, %s76
      %p88 = scmp.eq.s32.totalorder %s24, 1
      %p89 = por %p87, %p88
      %p91 = scmp.ne.s32.totalorder %s76, %s90
      %p92 = scmp.eq.s32.totalorder %s24, 0
      %p93 = por %p91, %p92
      %s95 = sadd.s32 %s94, 1
      %p98 = scmp.eq.s32.totalorder %s18, 1
      %p99 = scmp.ne.s32.totalorder %s94, %s96
      %p100 = scmp.eq.s32.totalorder %s18, 0
      %p101 = por %p99, %p100
      %p102 = scmp.ne.s32.totalorder %s94, %s96
      %p103 = scmp.eq.s32.totalorder %s23, 1
      %p104 = por %p102, %p103
      %p105 = scmp.ne.s32.totalorder %s96, %s97
      %p106 = scmp.eq.s32.totalorder %s23, 0
      %p107 = por %p105, %p106
      %p108 = scmp.ne.s32.totalorder %s96, %s97
      %p109 = scmp.eq.s32.totalorder %s24, 1
      %p110 = por %p108, %p109
      %p112 = scmp.ne.s32.totalorder %s97, %s111
      %p113 = scmp.eq.s32.totalorder %s24, 0
      %p114 = por %p112, %p113
      %s116 = sadd.s32 %s115, 1
      %p119 = scmp.eq.s32.totalorder %s18, 1
      %p120 = scmp.ne.s32.totalorder %s115, %s117
      %p121 = scmp.eq.s32.totalorder %s18, 0
      %p122 = por %p120, %p121
      %p123 = scmp.ne.s32.totalorder %s115, %s117
      %p124 = scmp.eq.s32.totalorder %s23, 1
      %p125 = por %p123, %p124
      %p126 = scmp.ne.s32.totalorder %s117, %s118
      %p127 = scmp.eq.s32.totalorder %s23, 0
      %p128 = por %p126, %p127
      %p129 = scmp.ne.s32.totalorder %s117, %s118
      %p130 = scmp.eq.s32.totalorder %s24, 1
      %p131 = por %p129, %p130
      %p133 = scmp.ne.s32.totalorder %s118, %s132
      %p134 = scmp.eq.s32.totalorder %s24, 0
      %p135 = por %p133, %p134
      %s136 = ssub.s32 %s18, %s25
      %p137 = scmp.eq.s32.totalorder %s136, 0
      %s139 = sadd.s32 %s138, 1
      %s140 = scalar_select %p137, %s138, %s139
      %p143 = pneg %p137
      %p144 = scmp.eq.s32.totalorder %s18, 1
      %p145 = por %p143, %p144
      %p146 = scmp.ne.s32.totalorder %s138, %s141
      %p147 = scmp.eq.s32.totalorder %s18, 0
      %p148 = por %p146, %p147
      %p149 = scmp.ne.s32.totalorder %s138, %s141
      %p150 = scmp.eq.s32.totalorder %s23, 1
      %p151 = por %p149, %p150
      %p152 = scmp.ne.s32.totalorder %s141, %s142
      %p153 = scmp.eq.s32.totalorder %s23, 0
      %p154 = por %p152, %p153
      %p155 = scmp.ne.s32.totalorder %s141, %s142
      %p156 = scmp.eq.s32.totalorder %s24, 1
      %p157 = por %p155, %p156
      %p159 = scmp.ne.s32.totalorder %s142, %s158
      %p160 = scmp.eq.s32.totalorder %s24, 0
      %p161 = por %p159, %p160
      %p162 = scmp.le.s32.totalorder 1, %s18
      %p163 = scmp.lt.s32.totalorder %s18, 3
      %p164 = pnand %p162, %p163
      %p165 = pneg %p164
      // Predicated region
      $region9: #{tpu_custom_call.1} parent=5 // pred_check
        _
      $region10: #{tpu_custom_call.1} parent=5 // pred_check_branch
        %167 = sbr.rel (%p164) target = $region12
      $region11: #{tpu_custom_call.1} parent=5 // pred_region
        %s168 = ssub.s32 %s18, 1
        // Predicated region
        $region13: #{tpu_custom_call.1} parent=11 // pred_check
          %p169 = pneg %p65
        $region14: #{tpu_custom_call.1} parent=11 // pred_check_branch
          %171 = sbr.rel (%p169) target = $region16
        $region15: #{tpu_custom_call.1} parent=11 // pred_region
          %s173 = ssub.s32 3072, 3072
          %174 = vsyncadd [#allocation6], %s173
          %s175 = sshll.u32 [#allocation5], 4
          %s176 = int_to_ptr.vmem [resolvable:$true] %s175
          %181 = dma.hbm_to_vmem [thread:$0]  %s1, 3072, %s176, [#allocation6], 64, 64, 4
        $region16: #{tpu_custom_call.1} parent=11 // pred_fallthru
          _
        // Predicated region
        $region17: #{tpu_custom_call.1} parent=11 // pred_check
          %p182 = pneg %p86
        $region18: #{tpu_custom_call.1} parent=11 // pred_check_branch
          %184 = sbr.rel (%p182) target = $region20
        $region19: #{tpu_custom_call.1} parent=11 // pred_region
          _
        $region20: #{tpu_custom_call.1} parent=11 // pred_fallthru
          _
        // Predicated region
        $region21: #{tpu_custom_call.1} parent=11 // pred_check
          %p185 = pneg %p107
        $region22: #{tpu_custom_call.1} parent=11 // pred_check_branch
          %187 = sbr.rel (%p185) target = $region24
        $region23: #{tpu_custom_call.1} parent=11 // pred_region
          %s189 = ssub.s32 1024, 1024
          %190 = vsyncadd [#allocation6], %s189
          %s191 = sshll.u32 [#allocation7], 4
          %s192 = int_to_ptr.vmem [resolvable:$true] %s191
          %197 = dma.hbm_to_vmem [thread:$0]  %s3, 1024, %s192, [#allocation6], 64, 64, 4
        $region24: #{tpu_custom_call.1} parent=11 // pred_fallthru
          _
        // Predicated region
        $region25: #{tpu_custom_call.1} parent=11 // pred_check
          %p198 = pneg %p128
        $region26: #{tpu_custom_call.1} parent=11 // pred_check_branch
          %200 = sbr.rel (%p198) target = $region28
        $region27: #{tpu_custom_call.1} parent=11 // pred_region
          _
        $region28: #{tpu_custom_call.1} parent=11 // pred_fallthru
          _
      $region12: #{tpu_custom_call.1} parent=5 // pred_fallthru
        _
      %p201 = scmp.lt.s32.totalorder %s18, 2
      // Predicated region
      $region29: #{tpu_custom_call.1} parent=5 // pred_check
        %p202 = pneg %p201
      $region30: #{tpu_custom_call.1} parent=5 // pred_check_branch
        %204 = sbr.rel (%p202) target = $region32
      $region31: #{tpu_custom_call.1} parent=5 // pred_region
        // Predicated region
        $region33: #{tpu_custom_call.1} parent=31 // pred_check
          %p205 = pneg %p38
        $region34: #{tpu_custom_call.1} parent=31 // pred_check_branch
          %207 = sbr.rel (%p205) target = $region36
        $region35: #{tpu_custom_call.1} parent=31 // pred_region
          %s208 = sand.u32 %s28, 1
          %s209 = scalar_lea.sflag [#allocation3], %s208
          %s210 = sand.u32 %s28, 1
          %s211 = smul.addr %s210, 128
          %s212 = scalar_lea.vmem [#allocation2], %s211
          %s213 = smul.u32 32, %s18
          %s215 = ssub.s32 2048, 2048
          %216 = vsyncadd %s209, %s215
          %s217 = smul.addr %s213, 64
          %s218 = scalar_lea.hbm %s0, %s217
          %s219 = sshll.u32 %s212, 4
          %s220 = int_to_ptr.vmem [resolvable:$true] %s219
          %225 = dma.hbm_to_vmem [thread:$0]  %s218, 2048, %s220, %s209, 64, 64, 4
        $region36: #{tpu_custom_call.1} parent=31 // pred_fallthru
          _
      $region32: #{tpu_custom_call.1} parent=5 // pred_fallthru
        _
      %p226 = scmp.le.s32.totalorder 1, %s18
      %p227 = scmp.lt.s32.totalorder %s18, 3
      %p228 = pnand %p226, %p227
      %p229 = pneg %p228
      // Predicated region
      $region37: #{tpu_custom_call.1} parent=5 // pred_check
        _
      $region38: #{tpu_custom_call.1} parent=5 // pred_check_branch
        %231 = sbr.rel (%p228) target = $region40
      $region39: #{tpu_custom_call.1} parent=5 // pred_region
        %s232 = ssub.s32 %s18, 1
        %s233 = sand.u32 %s31, 1
        %s234 = scalar_lea.sflag [#allocation3], %s233
        %s235 = sand.u32 %s31, 1
        %s236 = smul.addr %s235, 128
        %s237 = scalar_lea.vmem [#allocation2], %s236
        // Predicated region
        $region41: #{tpu_custom_call.1} parent=39 // pred_check
          %p238 = pneg %p44
        $region42: #{tpu_custom_call.1} parent=39 // pred_check_branch
          %240 = sbr.rel (%p238) target = $region44
        $region43: #{tpu_custom_call.1} parent=39 // pred_region
          %241 = dma.done %s234, 2048
        $region44: #{tpu_custom_call.1} parent=39 // pred_fallthru
          _
        // Predicated region
        $region45: #{tpu_custom_call.1} parent=39 // pred_check
          %p242 = pneg %p65
        $region46: #{tpu_custom_call.1} parent=39 // pred_check_branch
          %244 = sbr.rel (%p242) target = $region48
        $region47: #{tpu_custom_call.1} parent=39 // pred_region
          %245 = dma.done [#allocation6], 3072
        $region48: #{tpu_custom_call.1} parent=39 // pred_fallthru
          _
        // Predicated region
        $region49: #{tpu_custom_call.1} parent=39 // pred_check
          %p246 = pneg %p107
        $region50: #{tpu_custom_call.1} parent=39 // pred_check_branch
          %248 = sbr.rel (%p246) target = $region52
        $region51: #{tpu_custom_call.1} parent=39 // pred_region
          %249 = dma.done [#allocation6], 1024
        $region52: #{tpu_custom_call.1} parent=39 // pred_fallthru
          _
        %s250 = sand.u32 %s31, 1
        %s251 = scalar_lea.sflag [#allocation3], %s250
        %s252 = sand.u32 %s31, 1
        %s253 = smul.addr %s252, 128
        %s254 = scalar_lea.vmem [#allocation2], %s253
        %p255 = pneg %p44
        %p256 = pneg %p41
        %p257 = pneg %p65
        %p258 = pneg %p62
        %p259 = pneg %p86
        %p260 = pneg %p83
        %p261 = pneg %p107
        %p262 = pneg %p104
        %p263 = pneg %p128
        %p264 = pneg %p125
        %p265 = pneg %p154
        %p266 = pneg %p151
        %s267 = sand.u32 %s141, 1
        %s268 = scalar_lea.sflag [#allocation4], %s267
        %s269 = sand.u32 %s141, 1
        %s270 = smul.addr %s269, 128
        %s271 = scalar_lea.vmem [#allocation8], %s270
        %s272 = smul.u32 32, %s23
        %s273 = smul.u32 32, %s23
        %v275 = vld [vmem:[%s237] sm:$0xf]
        %v276 = vld [vmem:[%s237 + $0x4] sm:$0xf]
        %v277 = vld [vmem:[%s237 + $0x8] sm:$0xf]
        %v278 = vld [vmem:[%s237 + $0xc] sm:$0xf]
        %v279 = vld [vmem:[%s237 + $0x10] sm:$0xf]
        %v280 = vld [vmem:[%s237 + $0x14] sm:$0xf]
        %v281 = vld [vmem:[%s237 + $0x18] sm:$0xf]
        %v282 = vld [vmem:[%s237 + $0x1c] sm:$0xf]
        %v283 = vld [vmem:[%s237 + $0x20] sm:$0xf]
        %v284 = vld [vmem:[%s237 + $0x24] sm:$0xf]
        %v285 = vld [vmem:[%s237 + $0x28] sm:$0xf]
        %v286 = vld [vmem:[%s237 + $0x2c] sm:$0xf]
        %v287 = vld [vmem:[%s237 + $0x30] sm:$0xf]
        %v288 = vld [vmem:[%s237 + $0x34] sm:$0xf]
        %v289 = vld [vmem:[%s237 + $0x38] sm:$0xf]
        %v290 = vld [vmem:[%s237 + $0x3c] sm:$0xf]
        %v291 = vld [vmem:[%s237 + $0x40] sm:$0xf]
        %v292 = vld [vmem:[%s237 + $0x44] sm:$0xf]
        %v293 = vld [vmem:[%s237 + $0x48] sm:$0xf]
        %v294 = vld [vmem:[%s237 + $0x4c] sm:$0xf]
        %v295 = vld [vmem:[%s237 + $0x50] sm:$0xf]
        %v296 = vld [vmem:[%s237 + $0x54] sm:$0xf]
        %v297 = vld [vmem:[%s237 + $0x58] sm:$0xf]
        %v298 = vld [vmem:[%s237 + $0x5c] sm:$0xf]
        %v299 = vld [vmem:[%s237 + $0x60] sm:$0xf]
        %v300 = vld [vmem:[%s237 + $0x64] sm:$0xf]
        %v301 = vld [vmem:[%s237 + $0x68] sm:$0xf]
        %v302 = vld [vmem:[%s237 + $0x6c] sm:$0xf]
        %v303 = vld [vmem:[%s237 + $0x70] sm:$0xf]
        %v304 = vld [vmem:[%s237 + $0x74] sm:$0xf]
        %v305 = vld [vmem:[%s237 + $0x78] sm:$0xf]
        %v306 = vld [vmem:[%s237 + $0x7c] sm:$0xf]
        %v307 = vunpack.c.l.bf16 %v275
        %v308 = vunpack.c.l.bf16 %v276
        %v309 = vunpack.c.l.bf16 %v277
        %v310 = vunpack.c.l.bf16 %v278
        %v311 = vunpack.c.l.bf16 %v279
        %v312 = vunpack.c.l.bf16 %v280
        %v313 = vunpack.c.l.bf16 %v281
        %v314 = vunpack.c.l.bf16 %v282
        %v315 = vunpack.c.l.bf16 %v283
        %v316 = vunpack.c.l.bf16 %v284
        %v317 = vunpack.c.l.bf16 %v285
        %v318 = vunpack.c.l.bf16 %v286
        %v319 = vunpack.c.l.bf16 %v287
        %v320 = vunpack.c.l.bf16 %v288
        %v321 = vunpack.c.l.bf16 %v289
        %v322 = vunpack.c.l.bf16 %v290
        %v323 = vunpack.c.l.bf16 %v291
        %v324 = vunpack.c.l.bf16 %v292
        %v325 = vunpack.c.l.bf16 %v293
        %v326 = vunpack.c.l.bf16 %v294
        %v327 = vunpack.c.l.bf16 %v295
        %v328 = vunpack.c.l.bf16 %v296
        %v329 = vunpack.c.l.bf16 %v297
        %v330 = vunpack.c.l.bf16 %v298
        %v331 = vunpack.c.l.bf16 %v299
        %v332 = vunpack.c.l.bf16 %v300
        %v333 = vunpack.c.l.bf16 %v301
        %v334 = vunpack.c.l.bf16 %v302
        %v335 = vunpack.c.l.bf16 %v303
        %v336 = vunpack.c.l.bf16 %v304
        %v337 = vunpack.c.l.bf16 %v305
        %v338 = vunpack.c.l.bf16 %v306
        %339 = vadd.xlane.f32.xlu0 %v307
        %v340 = vpop.xlane.xlu0 %339
        %341 = vadd.xlane.f32.xlu0 %v308
        %v342 = vpop.xlane.xlu0 %341
        %343 = vadd.xlane.f32.xlu0 %v309
        %v344 = vpop.xlane.xlu0 %343
        %345 = vadd.xlane.f32.xlu0 %v310
        %v346 = vpop.xlane.xlu0 %345
        %347 = vadd.xlane.f32.xlu0 %v311
        %v348 = vpop.xlane.xlu0 %347
        %349 = vadd.xlane.f32.xlu0 %v312
        %v350 = vpop.xlane.xlu0 %349
        %351 = vadd.xlane.f32.xlu0 %v313
        %v352 = vpop.xlane.xlu0 %351
        %353 = vadd.xlane.f32.xlu0 %v314
        %v354 = vpop.xlane.xlu0 %353
        %355 = vadd.xlane.f32.xlu0 %v315
        %v356 = vpop.xlane.xlu0 %355
        %357 = vadd.xlane.f32.xlu0 %v316
        %v358 = vpop.xlane.xlu0 %357
        %359 = vadd.xlane.f32.xlu0 %v317
        %v360 = vpop.xlane.xlu0 %359
        %361 = vadd.xlane.f32.xlu0 %v318
        %v362 = vpop.xlane.xlu0 %361
        %363 = vadd.xlane.f32.xlu0 %v319
        %v364 = vpop.xlane.xlu0 %363
        %365 = vadd.xlane.f32.xlu0 %v320
        %v366 = vpop.xlane.xlu0 %365
        %367 = vadd.xlane.f32.xlu0 %v321
        %v368 = vpop.xlane.xlu0 %367
        %369 = vadd.xlane.f32.xlu0 %v322
        %v370 = vpop.xlane.xlu0 %369
        %371 = vadd.xlane.f32.xlu0 %v323
        %v372 = vpop.xlane.xlu0 %371
        %373 = vadd.xlane.f32.xlu0 %v324
        %v374 = vpop.xlane.xlu0 %373
        %375 = vadd.xlane.f32.xlu0 %v325
        %v376 = vpop.xlane.xlu0 %375
        %377 = vadd.xlane.f32.xlu0 %v326
        %v378 = vpop.xlane.xlu0 %377
        %379 = vadd.xlane.f32.xlu0 %v327
        %v380 = vpop.xlane.xlu0 %379
        %381 = vadd.xlane.f32.xlu0 %v328
        %v382 = vpop.xlane.xlu0 %381
        %383 = vadd.xlane.f32.xlu0 %v329
        %v384 = vpop.xlane.xlu0 %383
        %385 = vadd.xlane.f32.xlu0 %v330
        %v386 = vpop.xlane.xlu0 %385
        %387 = vadd.xlane.f32.xlu0 %v331
        %v388 = vpop.xlane.xlu0 %387
        %389 = vadd.xlane.f32.xlu0 %v332
        %v390 = vpop.xlane.xlu0 %389
        %391 = vadd.xlane.f32.xlu0 %v333
        %v392 = vpop.xlane.xlu0 %391
        %393 = vadd.xlane.f32.xlu0 %v334
        %v394 = vpop.xlane.xlu0 %393
        %395 = vadd.xlane.f32.xlu0 %v335
        %v396 = vpop.xlane.xlu0 %395
        %397 = vadd.xlane.f32.xlu0 %v336
        %v398 = vpop.xlane.xlu0 %397
        %399 = vadd.xlane.f32.xlu0 %v337
        %v400 = vpop.xlane.xlu0 %399
        %401 = vadd.xlane.f32.xlu0 %v338
        %v402 = vpop.xlane.xlu0 %401
        %v403 = vmul.f32 %v307, %v340
        %v404 = vmul.f32 %v308, %v342
        %v405 = vmul.f32 %v309, %v344
        %v406 = vmul.f32 %v310, %v346
        %v407 = vmul.f32 %v311, %v348
        %v408 = vmul.f32 %v312, %v350
        %v409 = vmul.f32 %v313, %v352
        %v410 = vmul.f32 %v314, %v354
        %v411 = vmul.f32 %v315, %v356
        %v412 = vmul.f32 %v316, %v358
        %v413 = vmul.f32 %v317, %v360
        %v414 = vmul.f32 %v318, %v362
        %v415 = vmul.f32 %v319, %v364
        %v416 = vmul.f32 %v320, %v366
        %v417 = vmul.f32 %v321, %v368
        %v418 = vmul.f32 %v322, %v370
        %v419 = vmul.f32 %v323, %v372
        %v420 = vmul.f32 %v324, %v374
        %v421 = vmul.f32 %v325, %v376
        %v422 = vmul.f32 %v326, %v378
        %v423 = vmul.f32 %v327, %v380
        %v424 = vmul.f32 %v328, %v382
        %v425 = vmul.f32 %v329, %v384
        %v426 = vmul.f32 %v330, %v386
        %v427 = vmul.f32 %v331, %v388
        %v428 = vmul.f32 %v332, %v390
        %v429 = vmul.f32 %v333, %v392
        %v430 = vmul.f32 %v334, %v394
        %v431 = vmul.f32 %v335, %v396
        %v432 = vmul.f32 %v336, %v398
        %v433 = vmul.f32 %v337, %v400
        %v434 = vmul.f32 %v338, %v402
        %v435 = vmax.f32 %v403, 0.0
        %v436 = vmax.f32 %v404, 0.0
        %v437 = vmax.f32 %v405, 0.0
        %v438 = vmax.f32 %v406, 0.0
        %v439 = vmax.f32 %v407, 0.0
        %v440 = vmax.f32 %v408, 0.0
        %v441 = vmax.f32 %v409, 0.0
        %v442 = vmax.f32 %v410, 0.0
        %v443 = vmax.f32 %v411, 0.0
        %v444 = vmax.f32 %v412, 0.0
        %v445 = vmax.f32 %v413, 0.0
        %v446 = vmax.f32 %v414, 0.0
        %v447 = vmax.f32 %v415, 0.0
        %v448 = vmax.f32 %v416, 0.0
        %v449 = vmax.f32 %v417, 0.0
        %v450 = vmax.f32 %v418, 0.0
        %v451 = vmax.f32 %v419, 0.0
        %v452 = vmax.f32 %v420, 0.0
        %v453 = vmax.f32 %v421, 0.0
        %v454 = vmax.f32 %v422, 0.0
        %v455 = vmax.f32 %v423, 0.0
        %v456 = vmax.f32 %v424, 0.0
        %v457 = vmax.f32 %v425, 0.0
        %v458 = vmax.f32 %v426, 0.0
        %v459 = vmax.f32 %v427, 0.0
        %v460 = vmax.f32 %v428, 0.0
        %v461 = vmax.f32 %v429, 0.0
        %v462 = vmax.f32 %v430, 0.0
        %v463 = vmax.f32 %v431, 0.0
        %v464 = vmax.f32 %v432, 0.0
        %v465 = vmax.f32 %v433, 0.0
        %v466 = vmax.f32 %v434, 0.0
        %v467 = vld [vmem:[#allocation5] sm:$0xf]
        %v468 = vld [vmem:[#allocation5 + $0x4] sm:$0xf]
        %v469 = vld [vmem:[#allocation5 + $0x8] sm:$0xf]
        %v470 = vld [vmem:[#allocation5 + $0xc] sm:$0xf]
        %v471 = vld [vmem:[#allocation5 + $0x10] sm:$0xf]
        %v472 = vld [vmem:[#allocation5 + $0x14] sm:$0xf]
        %v473 = vld [vmem:[#allocation5 + $0x18] sm:$0xf]
        %v474 = vld [vmem:[#allocation5 + $0x1c] sm:$0xf]
        %v475 = vld [vmem:[#allocation5 + $0x20] sm:$0xf]
        %v476 = vld [vmem:[#allocation5 + $0x24] sm:$0xf]
        %v477 = vld [vmem:[#allocation5 + $0x28] sm:$0xf]
        %v478 = vld [vmem:[#allocation5 + $0x2c] sm:$0xf]
        %v479 = vld [vmem:[#allocation5 + $0x30] sm:$0xf]
        %v480 = vld [vmem:[#allocation5 + $0x34] sm:$0xf]
        %v481 = vld [vmem:[#allocation5 + $0x38] sm:$0xf]
        %v482 = vld [vmem:[#allocation5 + $0x3c] sm:$0xf]
        %v483 = vld [vmem:[%s2] sm:$0x1]
        %v485 = vlaneseq
        %v486 = vshrl.u32 %v485, 7
        %v487 = vsub.s32 0, %v486
        %v488 = vrot.slane %v483, %v487
        %v522 = vunpack.c.l.b16 %v275
        %v523 = vunpack.c.l.b16 %v276
        %v524 = vunpack.c.l.b16 %v277
        %v525 = vunpack.c.l.b16 %v278
        %v526 = vunpack.c.l.b16 %v279
        %v527 = vunpack.c.l.b16 %v280
        %v528 = vunpack.c.l.b16 %v281
        %v529 = vunpack.c.l.b16 %v282
        %v530 = vunpack.c.l.b16 %v283
        %v531 = vunpack.c.l.b16 %v284
        %v532 = vunpack.c.l.b16 %v285
        %v533 = vunpack.c.l.b16 %v286
        %v534 = vunpack.c.l.b16 %v287
        %v535 = vunpack.c.l.b16 %v288
        %v536 = vunpack.c.l.b16 %v289
        %v537 = vunpack.c.l.b16 %v290
        %v538 = vunpack.c.l.b16 %v291
        %v539 = vunpack.c.l.b16 %v292
        %v540 = vunpack.c.l.b16 %v293
        %v541 = vunpack.c.l.b16 %v294
        %v542 = vunpack.c.l.b16 %v295
        %v543 = vunpack.c.l.b16 %v296
        %v544 = vunpack.c.l.b16 %v297
        %v545 = vunpack.c.l.b16 %v298
        %v546 = vunpack.c.l.b16 %v299
        %v547 = vunpack.c.l.b16 %v300
        %v548 = vunpack.c.l.b16 %v301
        %v549 = vunpack.c.l.b16 %v302
        %v550 = vunpack.c.l.b16 %v303
        %v551 = vunpack.c.l.b16 %v304
        %v552 = vunpack.c.l.b16 %v305
        %v553 = vunpack.c.l.b16 %v306
        %v554 = vpack.c.b16 %v523, %v522
        %v555 = vpack.c.b16 %v525, %v524
        %v556 = vpack.c.b16 %v527, %v526
        %v557 = vpack.c.b16 %v529, %v528
        %v558 = vpack.c.b16 %v531, %v530
        %v559 = vpack.c.b16 %v533, %v532
        %v560 = vpack.c.b16 %v535, %v534
        %v561 = vpack.c.b16 %v537, %v536
        %v562 = vpack.c.b16 %v539, %v538
        %v563 = vpack.c.b16 %v541, %v540
        %v564 = vpack.c.b16 %v543, %v542
        %v565 = vpack.c.b16 %v545, %v544
        %v566 = vpack.c.b16 %v547, %v546
        %v567 = vpack.c.b16 %v549, %v548
        %v568 = vpack.c.b16 %v551, %v550
        %v569 = vpack.c.b16 %v553, %v552
        %v602 = vunpack.c.l.b16 %v467
        %v603 = vunpack.c.l.b16 %v468
        %v604 = vunpack.c.l.b16 %v469
        %v605 = vunpack.c.l.b16 %v470
        %v606 = vunpack.c.l.b16 %v471
        %v607 = vunpack.c.l.b16 %v472
        %v608 = vunpack.c.l.b16 %v473
        %v609 = vunpack.c.l.b16 %v474
        %v610 = vunpack.c.l.b16 %v475
        %v611 = vunpack.c.l.b16 %v476
        %v612 = vunpack.c.l.b16 %v477
        %v613 = vunpack.c.l.b16 %v478
        %v614 = vunpack.c.l.b16 %v479
        %v615 = vunpack.c.l.b16 %v480
        %v616 = vunpack.c.l.b16 %v481
        %v617 = vunpack.c.l.b16 %v482
        %v618 = vpack.c.b16 %v603, %v602
        %v619 = vpack.c.b16 %v605, %v604
        %v620 = vpack.c.b16 %v607, %v606
        %v621 = vpack.c.b16 %v609, %v608
        %v622 = vpack.c.b16 %v611, %v610
        %v623 = vpack.c.b16 %v613, %v612
        %v624 = vpack.c.b16 %v615, %v614
        %v625 = vpack.c.b16 %v617, %v616
        %634 = vmatprep.subr.bf16.mxu0 0
        %635 = vmatpush1.bf16.msra.mxu0 %v618
        %636 = vmatprep.subr.bf16.mxu0 0
        %637 = vmatpush1.bf16.msra.mxu0 %v619
        %638 = vmatprep.subr.bf16.mxu0 0
        %639 = vmatpush1.bf16.msra.mxu0 %v620
        %640 = vmatprep.subr.bf16.mxu0 0
        %641 = vmatpush1.bf16.msra.mxu0 %v621
        %642 = vmatprep.subr.bf16.mxu0 0
        %643 = vmatpush1.bf16.msra.mxu0 %v622
        %644 = vmatprep.subr.bf16.mxu0 0
        %645 = vmatpush1.bf16.msra.mxu0 %v623
        %646 = vmatprep.subr.bf16.mxu0 0
        %647 = vmatpush1.bf16.msra.mxu0 %v624
        %648 = vmatprep.subr.bf16.mxu0 0
        %649 = vmatpush1.bf16.msra.mxu0 %v625
        %650 = vmatprep.subr.bf16.mxu0 0
        %651 = vmatpush1.bf16.msra.mxu0 0
        %652 = vmatprep.subr.bf16.mxu0 0
        %653 = vmatpush1.bf16.msra.mxu0 0
        %654 = vmatprep.subr.bf16.mxu0 0
        %655 = vmatpush1.bf16.msra.mxu0 0
        %656 = vmatprep.subr.bf16.mxu0 0
        %657 = vmatpush1.bf16.msra.mxu0 0
        %658 = vmatprep.subr.bf16.mxu0 0
        %659 = vmatpush1.bf16.msra.mxu0 0
        %660 = vmatprep.subr.bf16.mxu0 0
        %661 = vmatpush1.bf16.msra.mxu0 0
        %662 = vmatprep.subr.bf16.mxu0 0
        %663 = vmatpush1.bf16.msra.mxu0 0
        %664 = vmatprep.subr.bf16.mxu0 0
        %665 = vmatpush1.bf16.msra.mxu0 0
        %666 = vmatprep.mubr.bf16.mxu0 0
        %667 = vmatmul.mubr.bf16.gmra.mrb[0].mxu0 %v554
        %v668 = vpop.f32.mrb[0].mxu0
        %v669 = vadd.f32 %v488, %v668
        %v670 = vpop.f32.mrb[0].mxu0
        %v671 = vpop.f32.mrb[0].mxu0
        %v672 = vadd.f32 %v488, %v671
        %v673 = vpop.f32.mrb[0].mxu0
        %674 = vmatprep.mubr.bf16.mxu0 0
        %675 = vmatmul.mubr.bf16.gmra.mrb[0].mxu0 %v555
        %v676 = vpop.f32.mrb[0].mxu0
        %v677 = vadd.f32 %v488, %v676
        %v678 = vpop.f32.mrb[0].mxu0
        %v679 = vpop.f32.mrb[0].mxu0
        %v680 = vadd.f32 %v488, %v679
        %v681 = vpop.f32.mrb[0].mxu0
        %682 = vmatprep.mubr.bf16.mxu0 0
        %683 = vmatmul.mubr.bf16.gmra.mrb[0].mxu0 %v556
        %v684 = vpop.f32.mrb[0].mxu0
        %v685 = vadd.f32 %v488, %v684
        %v686 = vpop.f32.mrb[0].mxu0
        %v687 = vpop.f32.mrb[0].mxu0
        %v688 = vadd.f32 %v488, %v687
        %v689 = vpop.f32.mrb[0].mxu0
        %690 = vmatprep.mubr.bf16.mxu0 0
        %691 = vmatmul.mubr.bf16.gmra.mrb[0].mxu0 %v557
        %v692 = vpop.f32.mrb[0].mxu0
        %v693 = vadd.f32 %v488, %v692
        %v694 = vpop.f32.mrb[0].mxu0
        %v695 = vpop.f32.mrb[0].mxu0
        %v696 = vadd.f32 %v488, %v695
        %v697 = vpop.f32.mrb[0].mxu0
        %698 = vmatprep.mubr.bf16.mxu0 0
        %699 = vmatmul.mubr.bf16.gmra.mrb[0].mxu0 %v558
        %v700 = vpop.f32.mrb[0].mxu0
        %v701 = vadd.f32 %v488, %v700
        %v702 = vpop.f32.mrb[0].mxu0
        %v703 = vpop.f32.mrb[0].mxu0
        %v704 = vadd.f32 %v488, %v703
        %v705 = vpop.f32.mrb[0].mxu0
        %706 = vmatprep.mubr.bf16.mxu0 0
        %707 = vmatmul.mubr.bf16.gmra.mrb[0].mxu0 %v559
        %v708 = vpop.f32.mrb[0].mxu0
        %v709 = vadd.f32 %v488, %v708
        %v710 = vpop.f32.mrb[0].mxu0
        %v711 = vpop.f32.mrb[0].mxu0
        %v712 = vadd.f32 %v488, %v711
        %v713 = vpop.f32.mrb[0].mxu0
        %714 = vmatprep.mubr.bf16.mxu0 0
        %715 = vmatmul.mubr.bf16.gmra.mrb[0].mxu0 %v560
        %v716 = vpop.f32.mrb[0].mxu0
        %v717 = vadd.f32 %v488, %v716
        %v718 = vpop.f32.mrb[0].mxu0
        %v719 = vpop.f32.mrb[0].mxu0
        %v720 = vadd.f32 %v488, %v719
        %v721 = vpop.f32.mrb[0].mxu0
        %722 = vmatprep.mubr.bf16.mxu0 0
        %723 = vmatmul.mubr.bf16.gmra.mrb[0].mxu0 %v561
        %v724 = vpop.f32.mrb[0].mxu0
        %v725 = vadd.f32 %v488, %v724
        %v726 = vpop.f32.mrb[0].mxu0
        %v727 = vpop.f32.mrb[0].mxu0
        %v728 = vadd.f32 %v488, %v727
        %v729 = vpop.f32.mrb[0].mxu0
        %730 = vmatprep.mubr.bf16.mxu0 0
        %731 = vmatmul.mubr.bf16.gmra.mrb[0].mxu0 %v562
        %v732 = vpop.f32.mrb[0].mxu0
        %v733 = vadd.f32 %v488, %v732
        %v734 = vpop.f32.mrb[0].mxu0
        %v735 = vpop.f32.mrb[0].mxu0
        %v736 = vadd.f32 %v488, %v735
        %v737 = vpop.f32.mrb[0].mxu0
        %738 = vmatprep.mubr.bf16.mxu0 0
        %739 = vmatmul.mubr.bf16.gmra.mrb[0].mxu0 %v563
        %v740 = vpop.f32.mrb[0].mxu0
        %v741 = vadd.f32 %v488, %v740
        %v742 = vpop.f32.mrb[0].mxu0
        %v743 = vpop.f32.mrb[0].mxu0
        %v744 = vadd.f32 %v488, %v743
        %v745 = vpop.f32.mrb[0].mxu0
        %746 = vmatprep.mubr.bf16.mxu0 0
        %747 = vmatmul.mubr.bf16.gmra.mrb[0].mxu0 %v564
        %v748 = vpop.f32.mrb[0].mxu0
        %v749 = vadd.f32 %v488, %v748
        %v750 = vpop.f32.mrb[0].mxu0
        %v751 = vpop.f32.mrb[0].mxu0
        %v752 = vadd.f32 %v488, %v751
        %v753 = vpop.f32.mrb[0].mxu0
        %754 = vmatprep.mubr.bf16.mxu0 0
        %755 = vmatmul.mubr.bf16.gmra.mrb[0].mxu0 %v565
        %v756 = vpop.f32.mrb[0].mxu0
        %v757 = vadd.f32 %v488, %v756
        %v758 = vpop.f32.mrb[0].mxu0
        %v759 = vpop.f32.mrb[0].mxu0
        %v760 = vadd.f32 %v488, %v759
        %v761 = vpop.f32.mrb[0].mxu0
        %762 = vmatprep.mubr.bf16.mxu0 0
        %763 = vmatmul.mubr.bf16.gmra.mrb[0].mxu0 %v566
        %v764 = vpop.f32.mrb[0].mxu0
        %v765 = vadd.f32 %v488, %v764
        %v766 = vpop.f32.mrb[0].mxu0
        %v767 = vpop.f32.mrb[0].mxu0
        %v768 = vadd.f32 %v488, %v767
        %v769 = vpop.f32.mrb[0].mxu0
        %770 = vmatprep.mubr.bf16.mxu0 0
        %771 = vmatmul.mubr.bf16.gmra.mrb[0].mxu0 %v567
        %v772 = vpop.f32.mrb[0].mxu0
        %v773 = vadd.f32 %v488, %v772
        %v774 = vpop.f32.mrb[0].mxu0
        %v775 = vpop.f32.mrb[0].mxu0
        %v776 = vadd.f32 %v488, %v775
        %v777 = vpop.f32.mrb[0].mxu0
        %778 = vmatprep.mubr.bf16.mxu0 0
        %779 = vmatmul.mubr.bf16.gmra.mrb[0].mxu0 %v568
        %v780 = vpop.f32.mrb[0].mxu0
        %v781 = vadd.f32 %v488, %v780
        %v782 = vpop.f32.mrb[0].mxu0
        %v783 = vpop.f32.mrb[0].mxu0
        %v784 = vadd.f32 %v488, %v783
        %v785 = vpop.f32.mrb[0].mxu0
        %786 = vmatprep.mubr.bf16.mxu0 0
        %787 = vmatmul.mubr.bf16.gmra.mrb[0].mxu0 %v569
        %v788 = vpop.f32.mrb[0].mxu0
        %v789 = vadd.f32 %v488, %v788
        %v790 = vpop.f32.mrb[0].mxu0
        %v791 = vpop.f32.mrb[0].mxu0
        %v792 = vadd.f32 %v488, %v791
        %v793 = vpop.f32.mrb[0].mxu0
        %794 = vdwg.mxu0
        %v795 = vmax.f32 %v669, 0.0
        %v796 = vmax.f32 %v672, 0.0
        %v797 = vmax.f32 %v677, 0.0
        %v798 = vmax.f32 %v680, 0.0
        %v799 = vmax.f32 %v685, 0.0
        %v800 = vmax.f32 %v688, 0.0
        %v801 = vmax.f32 %v693, 0.0
        %v802 = vmax.f32 %v696, 0.0
        %v803 = vmax.f32 %v701, 0.0
        %v804 = vmax.f32 %v704, 0.0
        %v805 = vmax.f32 %v709, 0.0
        %v806 = vmax.f32 %v712, 0.0
        %v807 = vmax.f32 %v717, 0.0
        %v808 = vmax.f32 %v720, 0.0
        %v809 = vmax.f32 %v725, 0.0
        %v810 = vmax.f32 %v728, 0.0
        %v811 = vmax.f32 %v733, 0.0
        %v812 = vmax.f32 %v736, 0.0
        %v813 = vmax.f32 %v741, 0.0
        %v814 = vmax.f32 %v744, 0.0
        %v815 = vmax.f32 %v749, 0.0
        %v816 = vmax.f32 %v752, 0.0
        %v817 = vmax.f32 %v757, 0.0
        %v818 = vmax.f32 %v760, 0.0
        %v819 = vmax.f32 %v765, 0.0
        %v820 = vmax.f32 %v768, 0.0
        %v821 = vmax.f32 %v773, 0.0
        %v822 = vmax.f32 %v776, 0.0
        %v823 = vmax.f32 %v781, 0.0
        %v824 = vmax.f32 %v784, 0.0
        %v825 = vmax.f32 %v789, 0.0
        %v826 = vmax.f32 %v792, 0.0
        %v827 = vpack.c.bf16 %v796, %v795
        %v828 = vpack.c.bf16 %v798, %v797
        %v829 = vpack.c.bf16 %v800, %v799
        %v830 = vpack.c.bf16 %v802, %v801
        %v831 = vpack.c.bf16 %v804, %v803
        %v832 = vpack.c.bf16 %v806, %v805
        %v833 = vpack.c.bf16 %v808, %v807
        %v834 = vpack.c.bf16 %v810, %v809
        %v835 = vpack.c.bf16 %v812, %v811
        %v836 = vpack.c.bf16 %v814, %v813
        %v837 = vpack.c.bf16 %v816, %v815
        %v838 = vpack.c.bf16 %v818, %v817
        %v839 = vpack.c.bf16 %v820, %v819
        %v840 = vpack.c.bf16 %v822, %v821
        %v841 = vpack.c.bf16 %v824, %v823
        %v842 = vpack.c.bf16 %v826, %v825
        %s843 = scalar_lea.vmem [#allocation5], 64
        %v844 = vld [vmem:[%s843] sm:$0xf]
        %v845 = vld [vmem:[%s843 + $0x4] sm:$0xf]
        %v846 = vld [vmem:[%s843 + $0x8] sm:$0xf]
        %v847 = vld [vmem:[%s843 + $0xc] sm:$0xf]
        %v848 = vld [vmem:[%s843 + $0x10] sm:$0xf]
        %v849 = vld [vmem:[%s843 + $0x14] sm:$0xf]
        %v850 = vld [vmem:[%s843 + $0x18] sm:$0xf]
        %v851 = vld [vmem:[%s843 + $0x1c] sm:$0xf]
        %v852 = vld [vmem:[%s843 + $0x20] sm:$0xf]
        %v853 = vld [vmem:[%s843 + $0x24] sm:$0xf]
        %v854 = vld [vmem:[%s843 + $0x28] sm:$0xf]
        %v855 = vld [vmem:[%s843 + $0x2c] sm:$0xf]
        %v856 = vld [vmem:[%s843 + $0x30] sm:$0xf]
        %v857 = vld [vmem:[%s843 + $0x34] sm:$0xf]
        %v858 = vld [vmem:[%s843 + $0x38] sm:$0xf]
        %v859 = vld [vmem:[%s843 + $0x3c] sm:$0xf]
        %s860 = scalar_lea.vmem %s2, 1
        %v861 = vld [vmem:[%s860] sm:$0x1]
        %v863 = vlaneseq
        %v864 = vshrl.u32 %v863, 7
        %v865 = vsub.s32 0, %v864
        %v866 = vrot.slane %v861, %v865
        %v884 = vunpack.c.l.b16 %v844
        %v885 = vunpack.c.l.b16 %v845
        %v886 = vunpack.c.l.b16 %v846
        %v887 = vunpack.c.l.b16 %v847
        %v888 = vunpack.c.l.b16 %v848
        %v889 = vunpack.c.l.b16 %v849
        %v890 = vunpack.c.l.b16 %v850
        %v891 = vunpack.c.l.b16 %v851
        %v892 = vunpack.c.l.b16 %v852
        %v893 = vunpack.c.l.b16 %v853
        %v894 = vunpack.c.l.b16 %v854
        %v895 = vunpack.c.l.b16 %v855
        %v896 = vunpack.c.l.b16 %v856
        %v897 = vunpack.c.l.b16 %v857
        %v898 = vunpack.c.l.b16 %v858
        %v899 = vunpack.c.l.b16 %v859
        %v900 = vpack.c.b16 %v885, %v884
        %v901 = vpack.c.b16 %v887, %v886
        %v902 = vpack.c.b16 %v889, %v888
        %v903 = vpack.c.b16 %v891, %v890
        %v904 = vpack.c.b16 %v893, %v892
        %v905 = vpack.c.b16 %v895, %v894
        %v906 = vpack.c.b16 %v897, %v896
        %v907 = vpack.c.b16 %v899, %v898
        %916 = vmatprep.subr.bf16.mxu0 0
        %917 = vmatpush1.bf16.msra.mxu0 %v900
        %918 = vmatprep.subr.bf16.mxu0 0
        %919 = vmatpush1.bf16.msra.mxu0 %v901
        %920 = vmatprep.subr.bf16.mxu0 0
        %921 = vmatpush1.bf16.msra.mxu0 %v902
        %922 = vmatprep.subr.bf16.mxu0 0
        %923 = vmatpush1.bf16.msra.mxu0 %v903
        %924 = vmatprep.subr.bf16.mxu0 0
        %925 = vmatpush1.bf16.msra.mxu0 %v904
        %926 = vmatprep.subr.bf16.mxu0 0
        %927 = vmatpush1.bf16.msra.mxu0 %v905
        %928 = vmatprep.subr.bf16.mxu0 0
        %929 = vmatpush1.bf16.msra.mxu0 %v906
        %930 = vmatprep.subr.bf16.mxu0 0
        %931 = vmatpush1.bf16.msra.mxu0 %v907
        %932 = vmatprep.subr.bf16.mxu0 0
        %933 = vmatpush1.bf16.msra.mxu0 0
        %934 = vmatprep.subr.bf16.mxu0 0
        %935 = vmatpush1.bf16.msra.mxu0 0
        %936 = vmatprep.subr.bf16.mxu0 0
        %937 = vmatpush1.bf16.msra.mxu0 0
        %938 = vmatprep.subr.bf16.mxu0 0
        %939 = vmatpush1.bf16.msra.mxu0 0
        %940 = vmatprep.subr.bf16.mxu0 0
        %941 = vmatpush1.bf16.msra.mxu0 0
        %942 = vmatprep.subr.bf16.mxu0 0
        %943 = vmatpush1.bf16.msra.mxu0 0
        %944 = vmatprep.subr.bf16.mxu0 0
        %945 = vmatpush1.bf16.msra.mxu0 0
        %946 = vmatprep.subr.bf16.mxu0 0
        %947 = vmatpush1.bf16.msra.mxu0 0
        %948 = vmatprep.mubr.bf16.mxu0 0
        %949 = vmatmul.mubr.bf16.gmra.mrb[0].mxu0 %v827
        %v950 = vpop.f32.mrb[0].mxu0
        %v951 = vadd.f32 %v866, %v950
        %v952 = vpop.f32.mrb[0].mxu0
        %v953 = vpop.f32.mrb[0].mxu0
        %v954 = vadd.f32 %v866, %v953
        %v955 = vpop.f32.mrb[0].mxu0
        %956 = vmatprep.mubr.bf16.mxu0 0
        %957 = vmatmul.mubr.bf16.gmra.mrb[0].mxu0 %v828
        %v958 = vpop.f32.mrb[0].mxu0
        %v959 = vadd.f32 %v866, %v958
        %v960 = vpop.f32.mrb[0].mxu0
        %v961 = vpop.f32.mrb[0].mxu0
        %v962 = vadd.f32 %v866, %v961
        %v963 = vpop.f32.mrb[0].mxu0
        %964 = vmatprep.mubr.bf16.mxu0 0
        %965 = vmatmul.mubr.bf16.gmra.mrb[0].mxu0 %v829
        %v966 = vpop.f32.mrb[0].mxu0
        %v967 = vadd.f32 %v866, %v966
        %v968 = vpop.f32.mrb[0].mxu0
        %v969 = vpop.f32.mrb[0].mxu0
        %v970 = vadd.f32 %v866, %v969
        %v971 = vpop.f32.mrb[0].mxu0
        %972 = vmatprep.mubr.bf16.mxu0 0
        %973 = vmatmul.mubr.bf16.gmra.mrb[0].mxu0 %v830
        %v974 = vpop.f32.mrb[0].mxu0
        %v975 = vadd.f32 %v866, %v974
        %v976 = vpop.f32.mrb[0].mxu0
        %v977 = vpop.f32.mrb[0].mxu0
        %v978 = vadd.f32 %v866, %v977
        %v979 = vpop.f32.mrb[0].mxu0
        %980 = vmatprep.mubr.bf16.mxu0 0
        %981 = vmatmul.mubr.bf16.gmra.mrb[0].mxu0 %v831
        %v982 = vpop.f32.mrb[0].mxu0
        %v983 = vadd.f32 %v866, %v982
        %v984 = vpop.f32.mrb[0].mxu0
        %v985 = vpop.f32.mrb[0].mxu0
        %v986 = vadd.f32 %v866, %v985
        %v987 = vpop.f32.mrb[0].mxu0
        %988 = vmatprep.mubr.bf16.mxu0 0
        %989 = vmatmul.mubr.bf16.gmra.mrb[0].mxu0 %v832
        %v990 = vpop.f32.mrb[0].mxu0
        %v991 = vadd.f32 %v866, %v990
        %v992 = vpop.f32.mrb[0].mxu0
        %v993 = vpop.f32.mrb[0].mxu0
        %v994 = vadd.f32 %v866, %v993
        %v995 = vpop.f32.mrb[0].mxu0
        %996 = vmatprep.mubr.bf16.mxu0 0
        %997 = vmatmul.mubr.bf16.gmra.mrb[0].mxu0 %v833
        %v998 = vpop.f32.mrb[0].mxu0
        %v999 = vadd.f32 %v866, %v998
        %v1000 = vpop.f32.mrb[0].mxu0
        %v1001 = vpop.f32.mrb[0].mxu0
        %v1002 = vadd.f32 %v866, %v1001
        %v1003 = vpop.f32.mrb[0].mxu0
        %1004 = vmatprep.mubr.bf16.mxu0 0
        %1005 = vmatmul.mubr.bf16.gmra.mrb[0].mxu0 %v834
        %v1006 = vpop.f32.mrb[0].mxu0
        %v1007 = vadd.f32 %v866, %v1006
        %v1008 = vpop.f32.mrb[0].mxu0
        %v1009 = vpop.f32.mrb[0].mxu0
        %v1010 = vadd.f32 %v866, %v1009
        %v1011 = vpop.f32.mrb[0].mxu0
        %1012 = vmatprep.mubr.bf16.mxu0 0
        %1013 = vmatmul.mubr.bf16.gmra.mrb[0].mxu0 %v835
        %v1014 = vpop.f32.mrb[0].mxu0
        %v1015 = vadd.f32 %v866, %v1014
        %v1016 = vpop.f32.mrb[0].mxu0
        %v1017 = vpop.f32.mrb[0].mxu0
        %v1018 = vadd.f32 %v866, %v1017
        %v1019 = vpop.f32.mrb[0].mxu0
        %1020 = vmatprep.mubr.bf16.mxu0 0
        %1021 = vmatmul.mubr.bf16.gmra.mrb[0].mxu0 %v836
        %v1022 = vpop.f32.mrb[0].mxu0
        %v1023 = vadd.f32 %v866, %v1022
        %v1024 = vpop.f32.mrb[0].mxu0
        %v1025 = vpop.f32.mrb[0].mxu0
        %v1026 = vadd.f32 %v866, %v1025
        %v1027 = vpop.f32.mrb[0].mxu0
        %1028 = vmatprep.mubr.bf16.mxu0 0
        %1029 = vmatmul.mubr.bf16.gmra.mrb[0].mxu0 %v837
        %v1030 = vpop.f32.mrb[0].mxu0
        %v1031 = vadd.f32 %v866, %v1030
        %v1032 = vpop.f32.mrb[0].mxu0
        %v1033 = vpop.f32.mrb[0].mxu0
        %v1034 = vadd.f32 %v866, %v1033
        %v1035 = vpop.f32.mrb[0].mxu0
        %1036 = vmatprep.mubr.bf16.mxu0 0
        %1037 = vmatmul.mubr.bf16.gmra.mrb[0].mxu0 %v838
        %v1038 = vpop.f32.mrb[0].mxu0
        %v1039 = vadd.f32 %v866, %v1038
        %v1040 = vpop.f32.mrb[0].mxu0
        %v1041 = vpop.f32.mrb[0].mxu0
        %v1042 = vadd.f32 %v866, %v1041
        %v1043 = vpop.f32.mrb[0].mxu0
        %1044 = vmatprep.mubr.bf16.mxu0 0
        %1045 = vmatmul.mubr.bf16.gmra.mrb[0].mxu0 %v839
        %v1046 = vpop.f32.mrb[0].mxu0
        %v1047 = vadd.f32 %v866, %v1046
        %v1048 = vpop.f32.mrb[0].mxu0
        %v1049 = vpop.f32.mrb[0].mxu0
        %v1050 = vadd.f32 %v866, %v1049
        %v1051 = vpop.f32.mrb[0].mxu0
        %1052 = vmatprep.mubr.bf16.mxu0 0
        %1053 = vmatmul.mubr.bf16.gmra.mrb[0].mxu0 %v840
        %v1054 = vpop.f32.mrb[0].mxu0
        %v1055 = vadd.f32 %v866, %v1054
        %v1056 = vpop.f32.mrb[0].mxu0
        %v1057 = vpop.f32.mrb[0].mxu0
        %v1058 = vadd.f32 %v866, %v1057
        %v1059 = vpop.f32.mrb[0].mxu0
        %1060 = vmatprep.mubr.bf16.mxu0 0
        %1061 = vmatmul.mubr.bf16.gmra.mrb[0].mxu0 %v841
        %v1062 = vpop.f32.mrb[0].mxu0
        %v1063 = vadd.f32 %v866, %v1062
        %v1064 = vpop.f32.mrb[0].mxu0
        %v1065 = vpop.f32.mrb[0].mxu0
        %v1066 = vadd.f32 %v866, %v1065
        %v1067 = vpop.f32.mrb[0].mxu0
        %1068 = vmatprep.mubr.bf16.mxu0 0
        %1069 = vmatmul.mubr.bf16.gmra.mrb[0].mxu0 %v842
        %v1070 = vpop.f32.mrb[0].mxu0
        %v1071 = vadd.f32 %v866, %v1070
        %v1072 = vpop.f32.mrb[0].mxu0
        %v1073 = vpop.f32.mrb[0].mxu0
        %v1074 = vadd.f32 %v866, %v1073
        %v1075 = vpop.f32.mrb[0].mxu0
        %1076 = vdwg.mxu0
        %v1077 = vmax.f32 %v951, 0.0
        %v1078 = vmax.f32 %v954, 0.0
        %v1079 = vmax.f32 %v959, 0.0
        %v1080 = vmax.f32 %v962, 0.0
        %v1081 = vmax.f32 %v967, 0.0
        %v1082 = vmax.f32 %v970, 0.0
        %v1083 = vmax.f32 %v975, 0.0
        %v1084 = vmax.f32 %v978, 0.0
        %v1085 = vmax.f32 %v983, 0.0
        %v1086 = vmax.f32 %v986, 0.0
        %v1087 = vmax.f32 %v991, 0.0
        %v1088 = vmax.f32 %v994, 0.0
        %v1089 = vmax.f32 %v999, 0.0
        %v1090 = vmax.f32 %v1002, 0.0
        %v1091 = vmax.f32 %v1007, 0.0
        %v1092 = vmax.f32 %v1010, 0.0
        %v1093 = vmax.f32 %v1015, 0.0
        %v1094 = vmax.f32 %v1018, 0.0
        %v1095 = vmax.f32 %v1023, 0.0
        %v1096 = vmax.f32 %v1026, 0.0
        %v1097 = vmax.f32 %v1031, 0.0
        %v1098 = vmax.f32 %v1034, 0.0
        %v1099 = vmax.f32 %v1039, 0.0
        %v1100 = vmax.f32 %v1042, 0.0
        %v1101 = vmax.f32 %v1047, 0.0
        %v1102 = vmax.f32 %v1050, 0.0
        %v1103 = vmax.f32 %v1055, 0.0
        %v1104 = vmax.f32 %v1058, 0.0
        %v1105 = vmax.f32 %v1063, 0.0
        %v1106 = vmax.f32 %v1066, 0.0
        %v1107 = vmax.f32 %v1071, 0.0
        %v1108 = vmax.f32 %v1074, 0.0
        %v1109 = vpack.c.bf16 %v1078, %v1077
        %v1110 = vpack.c.bf16 %v1080, %v1079
        %v1111 = vpack.c.bf16 %v1082, %v1081
        %v1112 = vpack.c.bf16 %v1084, %v1083
        %v1113 = vpack.c.bf16 %v1086, %v1085
        %v1114 = vpack.c.bf16 %v1088, %v1087
        %v1115 = vpack.c.bf16 %v1090, %v1089
        %v1116 = vpack.c.bf16 %v1092, %v1091
        %v1117 = vpack.c.bf16 %v1094, %v1093
        %v1118 = vpack.c.bf16 %v1096, %v1095
        %v1119 = vpack.c.bf16 %v1098, %v1097
        %v1120 = vpack.c.bf16 %v1100, %v1099
        %v1121 = vpack.c.bf16 %v1102, %v1101
        %v1122 = vpack.c.bf16 %v1104, %v1103
        %v1123 = vpack.c.bf16 %v1106, %v1105
        %v1124 = vpack.c.bf16 %v1108, %v1107
        %s1125 = scalar_lea.vmem [#allocation5], 128
        %v1126 = vld [vmem:[%s1125] sm:$0xf]
        %v1127 = vld [vmem:[%s1125 + $0x4] sm:$0xf]
        %v1128 = vld [vmem:[%s1125 + $0x8] sm:$0xf]
        %v1129 = vld [vmem:[%s1125 + $0xc] sm:$0xf]
        %v1130 = vld [vmem:[%s1125 + $0x10] sm:$0xf]
        %v1131 = vld [vmem:[%s1125 + $0x14] sm:$0xf]
        %v1132 = vld [vmem:[%s1125 + $0x18] sm:$0xf]
        %v1133 = vld [vmem:[%s1125 + $0x1c] sm:$0xf]
        %v1134 = vld [vmem:[%s1125 + $0x20] sm:$0xf]
        %v1135 = vld [vmem:[%s1125 + $0x24] sm:$0xf]
        %v1136 = vld [vmem:[%s1125 + $0x28] sm:$0xf]
        %v1137 = vld [vmem:[%s1125 + $0x2c] sm:$0xf]
        %v1138 = vld [vmem:[%s1125 + $0x30] sm:$0xf]
        %v1139 = vld [vmem:[%s1125 + $0x34] sm:$0xf]
        %v1140 = vld [vmem:[%s1125 + $0x38] sm:$0xf]
        %v1141 = vld [vmem:[%s1125 + $0x3c] sm:$0xf]
        %s1142 = scalar_lea.vmem %s2, 2
        %v1143 = vld [vmem:[%s1142] sm:$0x1]
        %v1145 = vlaneseq
        %v1146 = vshrl.u32 %v1145, 7
        %v1147 = vsub.s32 0, %v1146
        %v1148 = vrot.slane %v1143, %v1147
        %v1166 = vunpack.c.l.b16 %v1126
        %v1167 = vunpack.c.l.b16 %v1127
        %v1168 = vunpack.c.l.b16 %v1128
        %v1169 = vunpack.c.l.b16 %v1129
        %v1170 = vunpack.c.l.b16 %v1130
        %v1171 = vunpack.c.l.b16 %v1131
        %v1172 = vunpack.c.l.b16 %v1132
        %v1173 = vunpack.c.l.b16 %v1133
        %v1174 = vunpack.c.l.b16 %v1134
        %v1175 = vunpack.c.l.b16 %v1135
        %v1176 = vunpack.c.l.b16 %v1136
        %v1177 = vunpack.c.l.b16 %v1137
        %v1178 = vunpack.c.l.b16 %v1138
        %v1179 = vunpack.c.l.b16 %v1139
        %v1180 = vunpack.c.l.b16 %v1140
        %v1181 = vunpack.c.l.b16 %v1141
        %v1182 = vpack.c.b16 %v1167, %v1166
        %v1183 = vpack.c.b16 %v1169, %v1168
        %v1184 = vpack.c.b16 %v1171, %v1170
        %v1185 = vpack.c.b16 %v1173, %v1172
        %v1186 = vpack.c.b16 %v1175, %v1174
        %v1187 = vpack.c.b16 %v1177, %v1176
        %v1188 = vpack.c.b16 %v1179, %v1178
        %v1189 = vpack.c.b16 %v1181, %v1180
        %1198 = vmatprep.subr.bf16.mxu0 0
        %1199 = vmatpush1.bf16.msra.mxu0 %v1182
        %1200 = vmatprep.subr.bf16.mxu0 0
        %1201 = vmatpush1.bf16.msra.mxu0 %v1183
        %1202 = vmatprep.subr.bf16.mxu0 0
        %1203 = vmatpush1.bf16.msra.mxu0 %v1184
        %1204 = vmatprep.subr.bf16.mxu0 0
        %1205 = vmatpush1.bf16.msra.mxu0 %v1185
        %1206 = vmatprep.subr.bf16.mxu0 0
        %1207 = vmatpush1.bf16.msra.mxu0 %v1186
        %1208 = vmatprep.subr.bf16.mxu0 0
        %1209 = vmatpush1.bf16.msra.mxu0 %v1187
        %1210 = vmatprep.subr.bf16.mxu0 0
        %1211 = vmatpush1.bf16.msra.mxu0 %v1188
        %1212 = vmatprep.subr.bf16.mxu0 0
        %1213 = vmatpush1.bf16.msra.mxu0 %v1189
        %1214 = vmatprep.subr.bf16.mxu0 0
        %1215 = vmatpush1.bf16.msra.mxu0 0
        %1216 = vmatprep.subr.bf16.mxu0 0
        %1217 = vmatpush1.bf16.msra.mxu0 0
        %1218 = vmatprep.subr.bf16.mxu0 0
        %1219 = vmatpush1.bf16.msra.mxu0 0
        %1220 = vmatprep.subr.bf16.mxu0 0
        %1221 = vmatpush1.bf16.msra.mxu0 0
        %1222 = vmatprep.subr.bf16.mxu0 0
        %1223 = vmatpush1.bf16.msra.mxu0 0
        %1224 = vmatprep.subr.bf16.mxu0 0
        %1225 = vmatpush1.bf16.msra.mxu0 0
        %1226 = vmatprep.subr.bf16.mxu0 0
        %1227 = vmatpush1.bf16.msra.mxu0 0
        %1228 = vmatprep.subr.bf16.mxu0 0
        %1229 = vmatpush1.bf16.msra.mxu0 0
        %1230 = vmatprep.mubr.bf16.mxu0 0
        %1231 = vmatmul.mubr.bf16.gmra.mrb[0].mxu0 %v1109
        %v1232 = vpop.f32.mrb[0].mxu0
        %v1233 = vadd.f32 %v1148, %v1232
        %v1234 = vpop.f32.mrb[0].mxu0
        %v1235 = vpop.f32.mrb[0].mxu0
        %v1236 = vadd.f32 %v1148, %v1235
        %v1237 = vpop.f32.mrb[0].mxu0
        %1238 = vmatprep.mubr.bf16.mxu0 0
        %1239 = vmatmul.mubr.bf16.gmra.mrb[0].mxu0 %v1110
        %v1240 = vpop.f32.mrb[0].mxu0
        %v1241 = vadd.f32 %v1148, %v1240
        %v1242 = vpop.f32.mrb[0].mxu0
        %v1243 = vpop.f32.mrb[0].mxu0
        %v1244 = vadd.f32 %v1148, %v1243
        %v1245 = vpop.f32.mrb[0].mxu0
        %1246 = vmatprep.mubr.bf16.mxu0 0
        %1247 = vmatmul.mubr.bf16.gmra.mrb[0].mxu0 %v1111
        %v1248 = vpop.f32.mrb[0].mxu0
        %v1249 = vadd.f32 %v1148, %v1248
        %v1250 = vpop.f32.mrb[0].mxu0
        %v1251 = vpop.f32.mrb[0].mxu0
        %v1252 = vadd.f32 %v1148, %v1251
        %v1253 = vpop.f32.mrb[0].mxu0
        %1254 = vmatprep.mubr.bf16.mxu0 0
        %1255 = vmatmul.mubr.bf16.gmra.mrb[0].mxu0 %v1112
        %v1256 = vpop.f32.mrb[0].mxu0
        %v1257 = vadd.f32 %v1148, %v1256
        %v1258 = vpop.f32.mrb[0].mxu0
        %v1259 = vpop.f32.mrb[0].mxu0
        %v1260 = vadd.f32 %v1148, %v1259
        %v1261 = vpop.f32.mrb[0].mxu0
        %1262 = vmatprep.mubr.bf16.mxu0 0
        %1263 = vmatmul.mubr.bf16.gmra.mrb[0].mxu0 %v1113
        %v1264 = vpop.f32.mrb[0].mxu0
        %v1265 = vadd.f32 %v1148, %v1264
        %v1266 = vpop.f32.mrb[0].mxu0
        %v1267 = vpop.f32.mrb[0].mxu0
        %v1268 = vadd.f32 %v1148, %v1267
        %v1269 = vpop.f32.mrb[0].mxu0
        %1270 = vmatprep.mubr.bf16.mxu0 0
        %1271 = vmatmul.mubr.bf16.gmra.mrb[0].mxu0 %v1114
        %v1272 = vpop.f32.mrb[0].mxu0
        %v1273 = vadd.f32 %v1148, %v1272
        %v1274 = vpop.f32.mrb[0].mxu0
        %v1275 = vpop.f32.mrb[0].mxu0
        %v1276 = vadd.f32 %v1148, %v1275
        %v1277 = vpop.f32.mrb[0].mxu0
        %1278 = vmatprep.mubr.bf16.mxu0 0
        %1279 = vmatmul.mubr.bf16.gmra.mrb[0].mxu0 %v1115
        %v1280 = vpop.f32.mrb[0].mxu0
        %v1281 = vadd.f32 %v1148, %v1280
        %v1282 = vpop.f32.mrb[0].mxu0
        %v1283 = vpop.f32.mrb[0].mxu0
        %v1284 = vadd.f32 %v1148, %v1283
        %v1285 = vpop.f32.mrb[0].mxu0
        %1286 = vmatprep.mubr.bf16.mxu0 0
        %1287 = vmatmul.mubr.bf16.gmra.mrb[0].mxu0 %v1116
        %v1288 = vpop.f32.mrb[0].mxu0
        %v1289 = vadd.f32 %v1148, %v1288
        %v1290 = vpop.f32.mrb[0].mxu0
        %v1291 = vpop.f32.mrb[0].mxu0
        %v1292 = vadd.f32 %v1148, %v1291
        %v1293 = vpop.f32.mrb[0].mxu0
        %1294 = vmatprep.mubr.bf16.mxu0 0
        %1295 = vmatmul.mubr.bf16.gmra.mrb[0].mxu0 %v1117
        %v1296 = vpop.f32.mrb[0].mxu0
        %v1297 = vadd.f32 %v1148, %v1296
        %v1298 = vpop.f32.mrb[0].mxu0
        %v1299 = vpop.f32.mrb[0].mxu0
        %v1300 = vadd.f32 %v1148, %v1299
        %v1301 = vpop.f32.mrb[0].mxu0
        %1302 = vmatprep.mubr.bf16.mxu0 0
        %1303 = vmatmul.mubr.bf16.gmra.mrb[0].mxu0 %v1118
        %v1304 = vpop.f32.mrb[0].mxu0
        %v1305 = vadd.f32 %v1148, %v1304
        %v1306 = vpop.f32.mrb[0].mxu0
        %v1307 = vpop.f32.mrb[0].mxu0
        %v1308 = vadd.f32 %v1148, %v1307
        %v1309 = vpop.f32.mrb[0].mxu0
        %1310 = vmatprep.mubr.bf16.mxu0 0
        %1311 = vmatmul.mubr.bf16.gmra.mrb[0].mxu0 %v1119
        %v1312 = vpop.f32.mrb[0].mxu0
        %v1313 = vadd.f32 %v1148, %v1312
        %v1314 = vpop.f32.mrb[0].mxu0
        %v1315 = vpop.f32.mrb[0].mxu0
        %v1316 = vadd.f32 %v1148, %v1315
        %v1317 = vpop.f32.mrb[0].mxu0
        %1318 = vmatprep.mubr.bf16.mxu0 0
        %1319 = vmatmul.mubr.bf16.gmra.mrb[0].mxu0 %v1120
        %v1320 = vpop.f32.mrb[0].mxu0
        %v1321 = vadd.f32 %v1148, %v1320
        %v1322 = vpop.f32.mrb[0].mxu0
        %v1323 = vpop.f32.mrb[0].mxu0
        %v1324 = vadd.f32 %v1148, %v1323
        %v1325 = vpop.f32.mrb[0].mxu0
        %1326 = vmatprep.mubr.bf16.mxu0 0
        %1327 = vmatmul.mubr.bf16.gmra.mrb[0].mxu0 %v1121
        %v1328 = vpop.f32.mrb[0].mxu0
        %v1329 = vadd.f32 %v1148, %v1328
        %v1330 = vpop.f32.mrb[0].mxu0
        %v1331 = vpop.f32.mrb[0].mxu0
        %v1332 = vadd.f32 %v1148, %v1331
        %v1333 = vpop.f32.mrb[0].mxu0
        %1334 = vmatprep.mubr.bf16.mxu0 0
        %1335 = vmatmul.mubr.bf16.gmra.mrb[0].mxu0 %v1122
        %v1336 = vpop.f32.mrb[0].mxu0
        %v1337 = vadd.f32 %v1148, %v1336
        %v1338 = vpop.f32.mrb[0].mxu0
        %v1339 = vpop.f32.mrb[0].mxu0
        %v1340 = vadd.f32 %v1148, %v1339
        %v1341 = vpop.f32.mrb[0].mxu0
        %1342 = vmatprep.mubr.bf16.mxu0 0
        %1343 = vmatmul.mubr.bf16.gmra.mrb[0].mxu0 %v1123
        %v1344 = vpop.f32.mrb[0].mxu0
        %v1345 = vadd.f32 %v1148, %v1344
        %v1346 = vpop.f32.mrb[0].mxu0
        %v1347 = vpop.f32.mrb[0].mxu0
        %v1348 = vadd.f32 %v1148, %v1347
        %v1349 = vpop.f32.mrb[0].mxu0
        %1350 = vmatprep.mubr.bf16.mxu0 0
        %1351 = vmatmul.mubr.bf16.gmra.mrb[0].mxu0 %v1124
        %v1352 = vpop.f32.mrb[0].mxu0
        %v1353 = vadd.f32 %v1148, %v1352
        %v1354 = vpop.f32.mrb[0].mxu0
        %v1355 = vpop.f32.mrb[0].mxu0
        %v1356 = vadd.f32 %v1148, %v1355
        %v1357 = vpop.f32.mrb[0].mxu0
        %1358 = vdwg.mxu0
        %v1359 = vmax.f32 %v1233, 0.0
        %v1360 = vmax.f32 %v1236, 0.0
        %v1361 = vmax.f32 %v1241, 0.0
        %v1362 = vmax.f32 %v1244, 0.0
        %v1363 = vmax.f32 %v1249, 0.0
        %v1364 = vmax.f32 %v1252, 0.0
        %v1365 = vmax.f32 %v1257, 0.0
        %v1366 = vmax.f32 %v1260, 0.0
        %v1367 = vmax.f32 %v1265, 0.0
        %v1368 = vmax.f32 %v1268, 0.0
        %v1369 = vmax.f32 %v1273, 0.0
        %v1370 = vmax.f32 %v1276, 0.0
        %v1371 = vmax.f32 %v1281, 0.0
        %v1372 = vmax.f32 %v1284, 0.0
        %v1373 = vmax.f32 %v1289, 0.0
        %v1374 = vmax.f32 %v1292, 0.0
        %v1375 = vmax.f32 %v1297, 0.0
        %v1376 = vmax.f32 %v1300, 0.0
        %v1377 = vmax.f32 %v1305, 0.0
        %v1378 = vmax.f32 %v1308, 0.0
        %v1379 = vmax.f32 %v1313, 0.0
        %v1380 = vmax.f32 %v1316, 0.0
        %v1381 = vmax.f32 %v1321, 0.0
        %v1382 = vmax.f32 %v1324, 0.0
        %v1383 = vmax.f32 %v1329, 0.0
        %v1384 = vmax.f32 %v1332, 0.0
        %v1385 = vmax.f32 %v1337, 0.0
        %v1386 = vmax.f32 %v1340, 0.0
        %v1387 = vmax.f32 %v1345, 0.0
        %v1388 = vmax.f32 %v1348, 0.0
        %v1389 = vmax.f32 %v1353, 0.0
        %v1390 = vmax.f32 %v1356, 0.0
        %v1391 = vadd.f32 %v1359, %v435
        %v1392 = vadd.f32 %v1360, %v436
        %v1393 = vadd.f32 %v1361, %v437
        %v1394 = vadd.f32 %v1362, %v438
        %v1395 = vadd.f32 %v1363, %v439
        %v1396 = vadd.f32 %v1364, %v440
        %v1397 = vadd.f32 %v1365, %v441
        %v1398 = vadd.f32 %v1366, %v442
        %v1399 = vadd.f32 %v1367, %v443
        %v1400 = vadd.f32 %v1368, %v444
        %v1401 = vadd.f32 %v1369, %v445
        %v1402 = vadd.f32 %v1370, %v446
        %v1403 = vadd.f32 %v1371, %v447
        %v1404 = vadd.f32 %v1372, %v448
        %v1405 = vadd.f32 %v1373, %v449
        %v1406 = vadd.f32 %v1374, %v450
        %v1407 = vadd.f32 %v1375, %v451
        %v1408 = vadd.f32 %v1376, %v452
        %v1409 = vadd.f32 %v1377, %v453
        %v1410 = vadd.f32 %v1378, %v454
        %v1411 = vadd.f32 %v1379, %v455
        %v1412 = vadd.f32 %v1380, %v456
        %v1413 = vadd.f32 %v1381, %v457
        %v1414 = vadd.f32 %v1382, %v458
        %v1415 = vadd.f32 %v1383, %v459
        %v1416 = vadd.f32 %v1384, %v460
        %v1417 = vadd.f32 %v1385, %v461
        %v1418 = vadd.f32 %v1386, %v462
        %v1419 = vadd.f32 %v1387, %v463
        %v1420 = vadd.f32 %v1388, %v464
        %v1421 = vadd.f32 %v1389, %v465
        %v1422 = vadd.f32 %v1390, %v466
        %v1423 = vpack.c.bf16 %v1392, %v1391
        %v1424 = vpack.c.bf16 %v1394, %v1393
        %v1425 = vpack.c.bf16 %v1396, %v1395
        %v1426 = vpack.c.bf16 %v1398, %v1397
        %v1427 = vpack.c.bf16 %v1400, %v1399
        %v1428 = vpack.c.bf16 %v1402, %v1401
        %v1429 = vpack.c.bf16 %v1404, %v1403
        %v1430 = vpack.c.bf16 %v1406, %v1405
        %v1431 = vpack.c.bf16 %v1408, %v1407
        %v1432 = vpack.c.bf16 %v1410, %v1409
        %v1433 = vpack.c.bf16 %v1412, %v1411
        %v1434 = vpack.c.bf16 %v1414, %v1413
        %v1435 = vpack.c.bf16 %v1416, %v1415
        %v1436 = vpack.c.bf16 %v1418, %v1417
        %v1437 = vpack.c.bf16 %v1420, %v1419
        %v1438 = vpack.c.bf16 %v1422, %v1421
        %v1439 = vld [vmem:[#allocation7] sm:$0xf]
        %v1440 = vld [vmem:[#allocation7 + $0x4] sm:$0xf]
        %v1441 = vld [vmem:[#allocation7 + $0x8] sm:$0xf]
        %v1442 = vld [vmem:[#allocation7 + $0xc] sm:$0xf]
        %v1443 = vld [vmem:[#allocation7 + $0x10] sm:$0xf]
        %v1444 = vld [vmem:[#allocation7 + $0x14] sm:$0xf]
        %v1445 = vld [vmem:[#allocation7 + $0x18] sm:$0xf]
        %v1446 = vld [vmem:[#allocation7 + $0x1c] sm:$0xf]
        %v1447 = vld [vmem:[#allocation7 + $0x20] sm:$0xf]
        %v1448 = vld [vmem:[#allocation7 + $0x24] sm:$0xf]
        %v1449 = vld [vmem:[#allocation7 + $0x28] sm:$0xf]
        %v1450 = vld [vmem:[#allocation7 + $0x2c] sm:$0xf]
        %v1451 = vld [vmem:[#allocation7 + $0x30] sm:$0xf]
        %v1452 = vld [vmem:[#allocation7 + $0x34] sm:$0xf]
        %v1453 = vld [vmem:[#allocation7 + $0x38] sm:$0xf]
        %v1454 = vld [vmem:[#allocation7 + $0x3c] sm:$0xf]
        %v1455 = vld [vmem:[%s4] sm:$0x1]
        %v1457 = vlaneseq
        %v1458 = vshrl.u32 %v1457, 7
        %v1459 = vsub.s32 0, %v1458
        %v1460 = vrot.slane %v1455, %v1459
        %v1478 = vunpack.c.l.b16 %v1439
        %v1479 = vunpack.c.l.b16 %v1440
        %v1480 = vunpack.c.l.b16 %v1441
        %v1481 = vunpack.c.l.b16 %v1442
        %v1482 = vunpack.c.l.b16 %v1443
        %v1483 = vunpack.c.l.b16 %v1444
        %v1484 = vunpack.c.l.b16 %v1445
        %v1485 = vunpack.c.l.b16 %v1446
        %v1486 = vunpack.c.l.b16 %v1447
        %v1487 = vunpack.c.l.b16 %v1448
        %v1488 = vunpack.c.l.b16 %v1449
        %v1489 = vunpack.c.l.b16 %v1450
        %v1490 = vunpack.c.l.b16 %v1451
        %v1491 = vunpack.c.l.b16 %v1452
        %v1492 = vunpack.c.l.b16 %v1453
        %v1493 = vunpack.c.l.b16 %v1454
        %v1494 = vpack.c.b16 %v1479, %v1478
        %v1495 = vpack.c.b16 %v1481, %v1480
        %v1496 = vpack.c.b16 %v1483, %v1482
        %v1497 = vpack.c.b16 %v1485, %v1484
        %v1498 = vpack.c.b16 %v1487, %v1486
        %v1499 = vpack.c.b16 %v1489, %v1488
        %v1500 = vpack.c.b16 %v1491, %v1490
        %v1501 = vpack.c.b16 %v1493, %v1492
        %1510 = vmatprep.subr.bf16.mxu0 0
        %1511 = vmatpush1.bf16.msra.mxu0 %v1494
        %1512 = vmatprep.subr.bf16.mxu0 0
        %1513 = vmatpush1.bf16.msra.mxu0 %v1495
        %1514 = vmatprep.subr.bf16.mxu0 0
        %1515 = vmatpush1.bf16.msra.mxu0 %v1496
        %1516 = vmatprep.subr.bf16.mxu0 0
        %1517 = vmatpush1.bf16.msra.mxu0 %v1497
        %1518 = vmatprep.subr.bf16.mxu0 0
        %1519 = vmatpush1.bf16.msra.mxu0 %v1498
        %1520 = vmatprep.subr.bf16.mxu0 0
        %1521 = vmatpush1.bf16.msra.mxu0 %v1499
        %1522 = vmatprep.subr.bf16.mxu0 0
        %1523 = vmatpush1.bf16.msra.mxu0 %v1500
        %1524 = vmatprep.subr.bf16.mxu0 0
        %1525 = vmatpush1.bf16.msra.mxu0 %v1501
        %1526 = vmatprep.subr.bf16.mxu0 0
        %1527 = vmatpush1.bf16.msra.mxu0 0
        %1528 = vmatprep.subr.bf16.mxu0 0
        %1529 = vmatpush1.bf16.msra.mxu0 0
        %1530 = vmatprep.subr.bf16.mxu0 0
        %1531 = vmatpush1.bf16.msra.mxu0 0
        %1532 = vmatprep.subr.bf16.mxu0 0
        %1533 = vmatpush1.bf16.msra.mxu0 0
        %1534 = vmatprep.subr.bf16.mxu0 0
        %1535 = vmatpush1.bf16.msra.mxu0 0
        %1536 = vmatprep.subr.bf16.mxu0 0
        %1537 = vmatpush1.bf16.msra.mxu0 0
        %1538 = vmatprep.subr.bf16.mxu0 0
        %1539 = vmatpush1.bf16.msra.mxu0 0
        %1540 = vmatprep.subr.bf16.mxu0 0
        %1541 = vmatpush1.bf16.msra.mxu0 0
        %1542 = vmatprep.mubr.bf16.mxu0 0
        %1543 = vmatmul.mubr.bf16.gmra.mrb[0].mxu0 %v1423
        %v1544 = vpop.f32.mrb[0].mxu0
        %v1545 = vadd.f32 %v1460, %v1544
        %v1546 = vpop.f32.mrb[0].mxu0
        %v1547 = vpop.f32.mrb[0].mxu0
        %v1548 = vadd.f32 %v1460, %v1547
        %v1549 = vpop.f32.mrb[0].mxu0
        %1550 = vmatprep.mubr.bf16.mxu0 0
        %1551 = vmatmul.mubr.bf16.gmra.mrb[0].mxu0 %v1424
        %v1552 = vpop.f32.mrb[0].mxu0
        %v1553 = vadd.f32 %v1460, %v1552
        %v1554 = vpop.f32.mrb[0].mxu0
        %v1555 = vpop.f32.mrb[0].mxu0
        %v1556 = vadd.f32 %v1460, %v1555
        %v1557 = vpop.f32.mrb[0].mxu0
        %1558 = vmatprep.mubr.bf16.mxu0 0
        %1559 = vmatmul.mubr.bf16.gmra.mrb[0].mxu0 %v1425
        %v1560 = vpop.f32.mrb[0].mxu0
        %v1561 = vadd.f32 %v1460, %v1560
        %v1562 = vpop.f32.mrb[0].mxu0
        %v1563 = vpop.f32.mrb[0].mxu0
        %v1564 = vadd.f32 %v1460, %v1563
        %v1565 = vpop.f32.mrb[0].mxu0
        %1566 = vmatprep.mubr.bf16.mxu0 0
        %1567 = vmatmul.mubr.bf16.gmra.mrb[0].mxu0 %v1426
        %v1568 = vpop.f32.mrb[0].mxu0
        %v1569 = vadd.f32 %v1460, %v1568
        %v1570 = vpop.f32.mrb[0].mxu0
        %v1571 = vpop.f32.mrb[0].mxu0
        %v1572 = vadd.f32 %v1460, %v1571
        %v1573 = vpop.f32.mrb[0].mxu0
        %1574 = vmatprep.mubr.bf16.mxu0 0
        %1575 = vmatmul.mubr.bf16.gmra.mrb[0].mxu0 %v1427
        %v1576 = vpop.f32.mrb[0].mxu0
        %v1577 = vadd.f32 %v1460, %v1576
        %v1578 = vpop.f32.mrb[0].mxu0
        %v1579 = vpop.f32.mrb[0].mxu0
        %v1580 = vadd.f32 %v1460, %v1579
        %v1581 = vpop.f32.mrb[0].mxu0
        %1582 = vmatprep.mubr.bf16.mxu0 0
        %1583 = vmatmul.mubr.bf16.gmra.mrb[0].mxu0 %v1428
        %v1584 = vpop.f32.mrb[0].mxu0
        %v1585 = vadd.f32 %v1460, %v1584
        %v1586 = vpop.f32.mrb[0].mxu0
        %v1587 = vpop.f32.mrb[0].mxu0
        %v1588 = vadd.f32 %v1460, %v1587
        %v1589 = vpop.f32.mrb[0].mxu0
        %1590 = vmatprep.mubr.bf16.mxu0 0
        %1591 = vmatmul.mubr.bf16.gmra.mrb[0].mxu0 %v1429
        %v1592 = vpop.f32.mrb[0].mxu0
        %v1593 = vadd.f32 %v1460, %v1592
        %v1594 = vpop.f32.mrb[0].mxu0
        %v1595 = vpop.f32.mrb[0].mxu0
        %v1596 = vadd.f32 %v1460, %v1595
        %v1597 = vpop.f32.mrb[0].mxu0
        %1598 = vmatprep.mubr.bf16.mxu0 0
        %1599 = vmatmul.mubr.bf16.gmra.mrb[0].mxu0 %v1430
        %v1600 = vpop.f32.mrb[0].mxu0
        %v1601 = vadd.f32 %v1460, %v1600
        %v1602 = vpop.f32.mrb[0].mxu0
        %v1603 = vpop.f32.mrb[0].mxu0
        %v1604 = vadd.f32 %v1460, %v1603
        %v1605 = vpop.f32.mrb[0].mxu0
        %1606 = vmatprep.mubr.bf16.mxu0 0
        %1607 = vmatmul.mubr.bf16.gmra.mrb[0].mxu0 %v1431
        %v1608 = vpop.f32.mrb[0].mxu0
        %v1609 = vadd.f32 %v1460, %v1608
        %v1610 = vpop.f32.mrb[0].mxu0
        %v1611 = vpop.f32.mrb[0].mxu0
        %v1612 = vadd.f32 %v1460, %v1611
        %v1613 = vpop.f32.mrb[0].mxu0
        %1614 = vmatprep.mubr.bf16.mxu0 0
        %1615 = vmatmul.mubr.bf16.gmra.mrb[0].mxu0 %v1432
        %v1616 = vpop.f32.mrb[0].mxu0
        %v1617 = vadd.f32 %v1460, %v1616
        %v1618 = vpop.f32.mrb[0].mxu0
        %v1619 = vpop.f32.mrb[0].mxu0
        %v1620 = vadd.f32 %v1460, %v1619
        %v1621 = vpop.f32.mrb[0].mxu0
        %1622 = vmatprep.mubr.bf16.mxu0 0
        %1623 = vmatmul.mubr.bf16.gmra.mrb[0].mxu0 %v1433
        %v1624 = vpop.f32.mrb[0].mxu0
        %v1625 = vadd.f32 %v1460, %v1624
        %v1626 = vpop.f32.mrb[0].mxu0
        %v1627 = vpop.f32.mrb[0].mxu0
        %v1628 = vadd.f32 %v1460, %v1627
        %v1629 = vpop.f32.mrb[0].mxu0
        %1630 = vmatprep.mubr.bf16.mxu0 0
        %1631 = vmatmul.mubr.bf16.gmra.mrb[0].mxu0 %v1434
        %v1632 = vpop.f32.mrb[0].mxu0
        %v1633 = vadd.f32 %v1460, %v1632
        %v1634 = vpop.f32.mrb[0].mxu0
        %v1635 = vpop.f32.mrb[0].mxu0
        %v1636 = vadd.f32 %v1460, %v1635
        %v1637 = vpop.f32.mrb[0].mxu0
        %1638 = vmatprep.mubr.bf16.mxu0 0
        %1639 = vmatmul.mubr.bf16.gmra.mrb[0].mxu0 %v1435
        %v1640 = vpop.f32.mrb[0].mxu0
        %v1641 = vadd.f32 %v1460, %v1640
        %v1642 = vpop.f32.mrb[0].mxu0
        %v1643 = vpop.f32.mrb[0].mxu0
        %v1644 = vadd.f32 %v1460, %v1643
        %v1645 = vpop.f32.mrb[0].mxu0
        %1646 = vmatprep.mubr.bf16.mxu0 0
        %1647 = vmatmul.mubr.bf16.gmra.mrb[0].mxu0 %v1436
        %v1648 = vpop.f32.mrb[0].mxu0
        %v1649 = vadd.f32 %v1460, %v1648
        %v1650 = vpop.f32.mrb[0].mxu0
        %v1651 = vpop.f32.mrb[0].mxu0
        %v1652 = vadd.f32 %v1460, %v1651
        %v1653 = vpop.f32.mrb[0].mxu0
        %1654 = vmatprep.mubr.bf16.mxu0 0
        %1655 = vmatmul.mubr.bf16.gmra.mrb[0].mxu0 %v1437
        %v1656 = vpop.f32.mrb[0].mxu0
        %v1657 = vadd.f32 %v1460, %v1656
        %v1658 = vpop.f32.mrb[0].mxu0
        %v1659 = vpop.f32.mrb[0].mxu0
        %v1660 = vadd.f32 %v1460, %v1659
        %v1661 = vpop.f32.mrb[0].mxu0
        %1662 = vmatprep.mubr.bf16.mxu0 0
        %1663 = vmatmul.mubr.bf16.gmra.mrb[0].mxu0 %v1438
        %v1664 = vpop.f32.mrb[0].mxu0
        %v1665 = vadd.f32 %v1460, %v1664
        %v1666 = vpop.f32.mrb[0].mxu0
        %v1667 = vpop.f32.mrb[0].mxu0
        %v1668 = vadd.f32 %v1460, %v1667
        %v1669 = vpop.f32.mrb[0].mxu0
        %1670 = vdwg.mxu0
        %v1671 = vpack.c.bf16 %v1548, %v1545
        %v1672 = vpack.c.bf16 %v1556, %v1553
        %v1673 = vpack.c.bf16 %v1564, %v1561
        %v1674 = vpack.c.bf16 %v1572, %v1569
        %v1675 = vpack.c.bf16 %v1580, %v1577
        %v1676 = vpack.c.bf16 %v1588, %v1585
        %v1677 = vpack.c.bf16 %v1596, %v1593
        %v1678 = vpack.c.bf16 %v1604, %v1601
        %v1679 = vpack.c.bf16 %v1612, %v1609
        %v1680 = vpack.c.bf16 %v1620, %v1617
        %v1681 = vpack.c.bf16 %v1628, %v1625
        %v1682 = vpack.c.bf16 %v1636, %v1633
        %v1683 = vpack.c.bf16 %v1644, %v1641
        %v1684 = vpack.c.bf16 %v1652, %v1649
        %v1685 = vpack.c.bf16 %v1660, %v1657
        %v1686 = vpack.c.bf16 %v1668, %v1665
        %v1703 = vunpack.c.l.b16 %v1671
        %v1704 = vunpack.c.h.b16 %v1671
        %v1705 = vunpack.c.l.b16 %v1672
        %v1706 = vunpack.c.h.b16 %v1672
        %v1707 = vunpack.c.l.b16 %v1673
        %v1708 = vunpack.c.h.b16 %v1673
        %v1709 = vunpack.c.l.b16 %v1674
        %v1710 = vunpack.c.h.b16 %v1674
        %v1711 = vunpack.c.l.b16 %v1675
        %v1712 = vunpack.c.h.b16 %v1675
        %v1713 = vunpack.c.l.b16 %v1676
        %v1714 = vunpack.c.h.b16 %v1676
        %v1715 = vunpack.c.l.b16 %v1677
        %v1716 = vunpack.c.h.b16 %v1677
        %v1717 = vunpack.c.l.b16 %v1678
        %v1718 = vunpack.c.h.b16 %v1678
        %v1719 = vunpack.c.l.b16 %v1679
        %v1720 = vunpack.c.h.b16 %v1679
        %v1721 = vunpack.c.l.b16 %v1680
        %v1722 = vunpack.c.h.b16 %v1680
        %v1723 = vunpack.c.l.b16 %v1681
        %v1724 = vunpack.c.h.b16 %v1681
        %v1725 = vunpack.c.l.b16 %v1682
        %v1726 = vunpack.c.h.b16 %v1682
        %v1727 = vunpack.c.l.b16 %v1683
        %v1728 = vunpack.c.h.b16 %v1683
        %v1729 = vunpack.c.l.b16 %v1684
        %v1730 = vunpack.c.h.b16 %v1684
        %v1731 = vunpack.c.l.b16 %v1685
        %v1732 = vunpack.c.h.b16 %v1685
        %v1733 = vunpack.c.l.b16 %v1686
        %v1734 = vunpack.c.h.b16 %v1686
        %v1735 = vpack.c.b16 %v1703, %v1703
        %v1736 = vpack.c.b16 %v1704, %v1704
        %v1737 = vpack.c.b16 %v1705, %v1705
        %v1738 = vpack.c.b16 %v1706, %v1706
        %v1739 = vpack.c.b16 %v1707, %v1707
        %v1740 = vpack.c.b16 %v1708, %v1708
        %v1741 = vpack.c.b16 %v1709, %v1709
        %v1742 = vpack.c.b16 %v1710, %v1710
        %v1743 = vpack.c.b16 %v1711, %v1711
        %v1744 = vpack.c.b16 %v1712, %v1712
        %v1745 = vpack.c.b16 %v1713, %v1713
        %v1746 = vpack.c.b16 %v1714, %v1714
        %v1747 = vpack.c.b16 %v1715, %v1715
        %v1748 = vpack.c.b16 %v1716, %v1716
        %v1749 = vpack.c.b16 %v1717, %v1717
        %v1750 = vpack.c.b16 %v1718, %v1718
        %v1751 = vpack.c.b16 %v1719, %v1719
        %v1752 = vpack.c.b16 %v1720, %v1720
        %v1753 = vpack.c.b16 %v1721, %v1721
        %v1754 = vpack.c.b16 %v1722, %v1722
        %v1755 = vpack.c.b16 %v1723, %v1723
        %v1756 = vpack.c.b16 %v1724, %v1724
        %v1757 = vpack.c.b16 %v1725, %v1725
        %v1758 = vpack.c.b16 %v1726, %v1726
        %v1759 = vpack.c.b16 %v1727, %v1727
        %v1760 = vpack.c.b16 %v1728, %v1728
        %v1761 = vpack.c.b16 %v1729, %v1729
        %v1762 = vpack.c.b16 %v1730, %v1730
        %v1763 = vpack.c.b16 %v1731, %v1731
        %v1764 = vpack.c.b16 %v1732, %v1732
        %v1765 = vpack.c.b16 %v1733, %v1733
        %v1766 = vpack.c.b16 %v1734, %v1734
        %1799 = vst [vmem:[%s271] sm:$0xf] %v1735
        %1800 = vst [vmem:[%s271 + $0x4] sm:$0xf] %v1736
        %1801 = vst [vmem:[%s271 + $0x8] sm:$0xf] %v1737
        %1802 = vst [vmem:[%s271 + $0xc] sm:$0xf] %v1738
        %1803 = vst [vmem:[%s271 + $0x10] sm:$0xf] %v1739
        %1804 = vst [vmem:[%s271 + $0x14] sm:$0xf] %v1740
        %1805 = vst [vmem:[%s271 + $0x18] sm:$0xf] %v1741
        %1806 = vst [vmem:[%s271 + $0x1c] sm:$0xf] %v1742
        %1807 = vst [vmem:[%s271 + $0x20] sm:$0xf] %v1743
        %1808 = vst [vmem:[%s271 + $0x24] sm:$0xf] %v1744
        %1809 = vst [vmem:[%s271 + $0x28] sm:$0xf] %v1745
        %1810 = vst [vmem:[%s271 + $0x2c] sm:$0xf] %v1746
        %1811 = vst [vmem:[%s271 + $0x30] sm:$0xf] %v1747
        %1812 = vst [vmem:[%s271 + $0x34] sm:$0xf] %v1748
        %1813 = vst [vmem:[%s271 + $0x38] sm:$0xf] %v1749
        %1814 = vst [vmem:[%s271 + $0x3c] sm:$0xf] %v1750
        %1815 = vst [vmem:[%s271 + $0x40] sm:$0xf] %v1751
        %1816 = vst [vmem:[%s271 + $0x44] sm:$0xf] %v1752
        %1817 = vst [vmem:[%s271 + $0x48] sm:$0xf] %v1753
        %1818 = vst [vmem:[%s271 + $0x4c] sm:$0xf] %v1754
        %1819 = vst [vmem:[%s271 + $0x50] sm:$0xf] %v1755
        %1820 = vst [vmem:[%s271 + $0x54] sm:$0xf] %v1756
        %1821 = vst [vmem:[%s271 + $0x58] sm:$0xf] %v1757
        %1822 = vst [vmem:[%s271 + $0x5c] sm:$0xf] %v1758
        %1823 = vst [vmem:[%s271 + $0x60] sm:$0xf] %v1759
        %1824 = vst [vmem:[%s271 + $0x64] sm:$0xf] %v1760
        %1825 = vst [vmem:[%s271 + $0x68] sm:$0xf] %v1761
        %1826 = vst [vmem:[%s271 + $0x6c] sm:$0xf] %v1762
        %1827 = vst [vmem:[%s271 + $0x70] sm:$0xf] %v1763
        %1828 = vst [vmem:[%s271 + $0x74] sm:$0xf] %v1764
        %1829 = vst [vmem:[%s271 + $0x78] sm:$0xf] %v1765
        %1830 = vst [vmem:[%s271 + $0x7c] sm:$0xf] %v1766
        %s1831 = sand.u32 %s141, 1
        %s1832 = scalar_lea.sflag [#allocation4], %s1831
        %s1833 = sand.u32 %s141, 1
        %s1834 = smul.addr %s1833, 128
        %s1835 = scalar_lea.vmem [#allocation8], %s1834
        // Predicated region
        $region53: #{tpu_custom_call.1} parent=39 // pred_check
          %p1836 = pneg %p151
        $region54: #{tpu_custom_call.1} parent=39 // pred_check_branch
          %1838 = sbr.rel (%p1836) target = $region56
        $region55: #{tpu_custom_call.1} parent=39 // pred_region
          %s1839 = smul.u32 32, %s23
          %s1841 = ssub.s32 2048, 2048
          %1842 = vsyncadd %s1832, %s1841
          %s1843 = smul.addr %s1839, 64
          %s1844 = scalar_lea.hbm %s5, %s1843
          %s1845 = sshll.u32 %s1835, 4
          %s1846 = int_to_ptr.vmem [resolvable:$true] %s1845
          %1851 = dma.vmem_to_hbm [thread:$0]  %s1846, 2048, %s1844, %s1832, 64, 64, 4
        $region56: #{tpu_custom_call.1} parent=39 // pred_fallthru
          _
      $region40: #{tpu_custom_call.1} parent=5 // pred_fallthru
        _
      %p1852 = scmp.le.s32.totalorder 2, %s18
      // Predicated region
      $region57: #{tpu_custom_call.1} parent=5 // pred_check
        %p1853 = pneg %p1852
      $region58: #{tpu_custom_call.1} parent=5 // pred_check_branch
        %1855 = sbr.rel (%p1853) target = $region60
      $region59: #{tpu_custom_call.1} parent=5 // pred_region
        %s1856 = ssub.s32 %s18, 2
        // Predicated region
        $region61: #{tpu_custom_call.1} parent=59 // pred_check
          %p1857 = pneg %p157
        $region62: #{tpu_custom_call.1} parent=59 // pred_check_branch
          %1859 = sbr.rel (%p1857) target = $region64
        $region63: #{tpu_custom_call.1} parent=59 // pred_region
          %s1860 = sand.u32 %s142, 1
          %s1861 = scalar_lea.sflag [#allocation4], %s1860
          %s1862 = sand.u32 %s142, 1
          %s1863 = smul.addr %s1862, 128
          %s1864 = scalar_lea.vmem [#allocation8], %s1863
          %1865 = dma.done %s1861, 2048
        $region64: #{tpu_custom_call.1} parent=59 // pred_fallthru
          _
      $region60: #{tpu_custom_call.1} parent=5 // pred_fallthru
        _
    $region6: #{tpu_custom_call.1} parent=1 // loop_footer
      %s22 = sadd.s32 1, %s18
    $region7: #{tpu_custom_call.1} parent=1 // loop_footer_branch
      %17 = sbr.rel target = $region3
    $region8: #{tpu_custom_call.1} parent=1 // loop_exit
      _
    %1866 = vsyncpa [#allocation3], 1
    %s1867 = scalar_lea.sflag [#allocation3], 1
    %1868 = vsyncpa %s1867, 1
    %1869 = vsyncpa [#allocation6], 1
    %1870 = vsyncpa [#allocation4], 1
    %s1871 = scalar_lea.sflag [#allocation4], 1
    %1872 = vsyncpa %s1871, 1

</llo_original>
